<compile_context>
chip_gen: v7x
topology: tpu7x:2x2x1
jax: 0.10.0
libtpu: 0.0.40
codegen_flags: <defaults>
</compile_context>

<pallas_src>
import functools

import jax
import jax.numpy as jnp
import numpy as np
from jax import lax
from jax.experimental import pallas as pl
from jax.experimental.pallas import tpu as pltpu

NEG_SLOPE = 0.01  # PyTorch nn.LeakyReLU default negative_slope


def _conv_bias_lrelu_kernel(x_ref, w_ref, b_ref, o_ref, p_ref, *,
                            kh, kw, stride, tr, ow, cin):
    """One (batch, output-row-tile) grid step.

    x_ref: (s2, PH, Cin, PW)   phase-split, reflection-padded image of batch b
                               (VMEM-resident across this batch's row tiles)
    w_ref: (Cout, kh*kw*Cin)   flattened filter, K ordered (i, j, ci)
    b_ref: (Cout, 1)           f32 bias
    o_ref: (1, Cout, TR*OW)    flattened-NCHW output tile (rows r0..r0+TR-1)
    p_ref: (kh*kw*Cin, TR*OW)  VMEM im2col scratch
    """
    r0 = pl.program_id(1) * tr

    # Build the im2col slab once per tile with fully unrolled, unit-stride
    # strip copies (static sub-offsets; plain vld/vst, no in-kernel reshape).
    for t in range(kh * kw):
        i, j = divmod(t, kw)
        phase = (i % stride) * stride + (j % stride)
        src_col = j // stride
        for r in range(tr):
            p_ref[t * cin:(t + 1) * cin, r * ow:(r + 1) * ow] = (
                x_ref[phase, r0 + r + i // stride, :, pl.ds(src_col, ow)])

    # Single fused MXU matmul over all taps / channels / pixels of the tile
    # (K = Cin*kh*kw, N = TR*OW), f32 accumulation.
    acc = jnp.dot(w_ref[...], p_ref[...], preferred_element_type=jnp.float32)
    acc = acc + b_ref[...]                       # bias broadcast once per tile
    o_ref[0] = jnp.where(acc >= 0, acc, NEG_SLOPE * acc).astype(o_ref.dtype)


@functools.lru_cache(maxsize=1)
def _vmem_limit_bytes():
    """~3/4 of physical VMEM: ~96 MiB on 128-MiB parts, 48 MiB on v7x."""
    phys = None
    try:
        phys = int(pltpu.get_tpu_info().vmem_capacity_bytes)
    except Exception:
        phys = None
    if not phys:
        kind = jax.devices()[0].device_kind.lower()
        big = any(tag in kind for tag in ("v2", "v3", "v4", "v5", "v6"))
        phys = (128 if big else 64) * 1024 * 1024
    return (phys * 3) // 4


@functools.lru_cache(maxsize=None)
def _auto_compute_dtype(in_dtype):
    """bf16 operand storage on v6e/v7x (f32 accumulation); else input dtype."""
    kind = jax.devices()[0].device_kind.lower()
    if jnp.dtype(in_dtype) == jnp.dtype(jnp.float32) and (
            "v6" in kind or "v7" in kind or "7x" in kind):
        return jnp.dtype(jnp.bfloat16)
    return jnp.dtype(in_dtype)


def _pick_row_tile(n_batch, oh, ow, cout, cin, kh, kw, *,
                   in_bytes, cd_item, out_item, vmem_limit):
    """Output rows per grid step.

    Constraints: divides OH; flattened output block TR*OW is a multiple of 128
    (lane-dense stores) or TR == OH; total VMEM — including the double-buffered
    resident input image — stays under the per-generation limit.
    """
    k = kh * kw * cin
    cands = [d for d in range(1, oh + 1)
             if oh % d == 0 and ((d * ow) % 128 == 0 or d == oh)]
    fixed = 2 * in_bytes + 2 * cout * k * cd_item + (2 << 20)  # image x2 + W + slack

    def step_bytes(d):
        return (2 * cout * d * ow * out_item      # double-buffered output tile
                + k * d * ow * cd_item            # im2col scratch
                + cout * d * ow * 4)              # f32 accumulator value

    fit = [d for d in cands if fixed + step_bytes(d) <= vmem_limit]
    if not fit:
        # TODO(synk): halo'd row-tiling of the input (manual make_async_copy)
        # for padded images that do not fit in VMEM (v7x: 64 MiB / TensorCore).
        raise ValueError("padded input image does not fit in VMEM; "
                         "halo-tiled input path not implemented")
    pool = [d for d in fit if kh * kw * d <= 1024] or [min(fit)]  # unroll cap
    if n_batch == 1:
        busy = [d for d in pool if oh // d >= 2]  # give core 1 some tiles (v7x)
        if busy:
            return max(busy)
    return max(pool)


@functools.partial(jax.jit, static_argnames=("stride", "padding", "compute_dtype"))
def leaky_relu_conv2d(x, weight, bias, *, stride, padding, compute_dtype=None):
    """x: (N, Cin, H, W); weight: (Cout, Cin, KH, KW); bias: (Cout,)."""
    n, cin, h, w = x.shape
    cout, _, kh, kw = weight.shape
    out_dtype = x.dtype

    cdtype = (jnp.dtype(compute_dtype) if compute_dtype is not None
              else _auto_compute_dtype(x.dtype))

    # ReflectionPad2d + (stride>1) phase split + channel-minor transpose: all
    # copy-like ops fused by XLA into one producer pass over x.
    if padding > 0:
        xp = jnp.pad(x, ((0, 0), (0, 0), (padding, padding), (padding, padding)),
                     mode="reflect")
    else:
        xp = x
    hp, wp = h + 2 * padding, w + 2 * padding
    oh = (hp - kh) // stride + 1
    ow = (wp - kw) // stride + 1
    s2 = stride * stride

    if stride == 1:
        ph, pw = hp, wp
        phases = xp.transpose(0, 2, 1, 3)[:, None]           # (N,1,Hp,Cin,Wp)
    else:
        # Phase (pi, pj): phases[..., r, c, q] == xp[n, c, r*s + pi, q*s + pj],
        # so the strided conv becomes unit-stride slicing inside the kernel.
        ph, pw = -(-hp // stride), -(-wp // stride)
        parts = []
        for pi in range(stride):
            for pj in range(stride):
                v = xp[:, :, pi::stride, pj::stride]
                v = jnp.pad(v, ((0, 0), (0, 0),
                                (0, ph - v.shape[2]), (0, pw - v.shape[3])))
                parts.append(v.transpose(0, 2, 1, 3))         # (N, PH, Cin, PW)
        phases = jnp.stack(parts, axis=1)                     # (N,s2,PH,Cin,PW)

    # Tap offsets i//stride, j//stride must stay inside the phase frame.
    assert ph >= oh + (kh - 1) // stride, (ph, oh, kh, stride)
    assert pw >= ow + (kw - 1) // stride, (pw, ow, kw, stride)

    phases = phases.reshape(n * s2, ph, cin, pw).astype(cdtype)
    # K ordered (i, j, ci) to match the im2col slab built in the kernel.
    w_mat = weight.transpose(0, 2, 3, 1).reshape(cout, kh * kw * cin).astype(cdtype)
    b2 = bias.reshape(cout, 1).astype(jnp.float32)

    vmem_limit = _vmem_limit_bytes()
    tr = _pick_row_tile(
        n, oh, ow, cout, cin, kh, kw,
        in_bytes=s2 * ph * cin * pw * jnp.dtype(cdtype).itemsize,
        cd_item=jnp.dtype(cdtype).itemsize,
        out_item=jnp.dtype(out_dtype).itemsize,
        vmem_limit=vmem_limit)

    kernel = functools.partial(_conv_bias_lrelu_kernel, kh=kh, kw=kw,
                               stride=stride, tr=tr, ow=ow, cin=cin)

    out_flat = pl.pallas_call(
        kernel,
        # Flattened-NCHW output: lane-dense blocks, NCHW via a free reshape.
        out_shape=jax.ShapeDtypeStruct((n, cout, oh * ow), out_dtype),
        grid_spec=pltpu.PrefetchScalarGridSpec(
            num_scalar_prefetch=0,
            grid=(n, oh // tr),
            in_specs=[
                # Whole phase-split padded image of batch b; the block index
                # depends only on b, so it stays resident across row tiles.
                pl.BlockSpec((s2, ph, cin, pw), lambda b, t: (b, 0, 0, 0)),
                pl.BlockSpec((cout, kh * kw * cin), lambda b, t: (0, 0)),
                pl.BlockSpec((cout, 1), lambda b, t: (0, 0)),
            ],
            out_specs=pl.BlockSpec((1, cout, tr * ow), lambda b, t: (b, 0, t)),
            scratch_shapes=[pltpu.VMEM((kh * kw * cin, tr * ow), cdtype)],
        ),
        compiler_params=pltpu.CompilerParams(
            # N >= 2: cores split on batch (no duplicated input DMA on v7x);
            # N == 1: let cores split row tiles instead.
            dimension_semantics=(("parallel", "arbitrary") if n >= 2
                                 else ("arbitrary", "parallel")),
            vmem_limit_bytes=vmem_limit,
        ),
    )(phases, w_mat, b2)

    # Contiguous-split reshape (metadata only): (N, Cout, OH*OW) -> NCHW.
    return out_flat.reshape(n, cout, oh, ow)


def _reference(x, weight, bias, stride, padding):
    """Pure-JAX reference for correctness."""
    if padding > 0:
        x = jnp.pad(x, ((0, 0), (0, 0), (padding, padding), (padding, padding)),
                    mode="reflect")
    y = lax.conv_general_dilated(
        x, weight, window_strides=(stride, stride), padding="VALID",
        dimension_numbers=("NCHW", "OIHW", "NCHW"))
    y = y + bias.reshape(1, -1, 1, 1)
    return jnp.where(y >= 0, y, NEG_SLOPE * y)


if __name__ == "__main__":
    key = jax.random.PRNGKey(0)
    N, H, W = 2, 16, 16

    # (inplanes, outplanes, kernel_size, stride, padding) configs of the module
    configs = [
        (4, 8, 3, 1, 1),   # stride-1 3x3 block
        (4, 8, 3, 2, 1),   # stride-2 downsampling block
        (4, 8, 1, 1, 0),   # 1x1 conv block
    ]

    for cin, cout, ksz, stride, padding in configs:
        kx, kw_, kb, key = jax.random.split(key, 4)
        x = jax.random.normal(kx, (N, cin, H, W), dtype=jnp.float32)
        fan_in = cin * ksz * ksz
        bound = 1.0 / np.sqrt(fan_in)
        weight = jax.random.uniform(kw_, (cout, cin, ksz, ksz),
                                    minval=-bound, maxval=bound, dtype=jnp.float32)
        bias = jax.random.uniform(kb, (cout,), minval=-bound, maxval=bound,
                                  dtype=jnp.float32)

        ref = jax.block_until_ready(_reference(x, weight, bias, stride, padding))

        # f32 operand storage -> strict check against the reference.
        out = jax.block_until_ready(
            leaky_relu_conv2d(x, weight, bias, stride=stride, padding=padding,
                              compute_dtype=jnp.float32))
        assert out.shape == ref.shape, (out.shape, ref.shape)
        np.testing.assert_allclose(np.asarray(out), np.asarray(ref),
                                   rtol=1e-5, atol=1e-5)

        # Default path: bf16 operand storage on v6e/v7x (f32 accumulation),
        # f32 elsewhere -> loose check.
        out_auto = jax.block_until_ready(
            leaky_relu_conv2d(x, weight, bias, stride=stride, padding=padding))
        np.testing.assert_allclose(np.asarray(out_auto), np.asarray(ref),
                                   rtol=1e-1, atol=1e-1)

    print("KERNEL_OK")
</pallas_src>

<mosaic_0001>
module attributes {stable_mosaic.version = 11 : i64} {
  func.func @_conv_bias_lrelu_kernel(%arg0: i32, %arg1: i32, %arg2: memref<1x18x4x18xf32, #tpu.memory_space<vmem>>, %arg3: memref<8x36xf32, #tpu.memory_space<vmem>>, %arg4: memref<8x1xf32, #tpu.memory_space<vmem>>, %arg5: memref<1x8x256xf32, #tpu.memory_space<vmem>>, %arg6: memref<36x256xf32, #tpu.memory_space<vmem>>) attributes {dimension_semantics = [#tpu.dimension_semantics<parallel>, #tpu.dimension_semantics<arbitrary>], iteration_bounds = array<i64: 2, 1>, scalar_prefetch = 0 : i64, scratch_operands = 1 : i64, tpu.core_type = #tpu.core_type<tc>, window_params = [{transform_indices = @transform_0, window_bounds = array<i64: 1, 18, 4, 18>}, {pipeline_mode = #tpu.pipeline_mode<synchronous>, transform_indices = @transform_1, window_bounds = array<i64: 8, 36>}, {pipeline_mode = #tpu.pipeline_mode<synchronous>, transform_indices = @transform_2, window_bounds = array<i64: 8, 1>}, {transform_indices = @transform_3, window_bounds = array<i64: 1, 8, 256>}]} {
    %c16_i32 = arith.constant 16 : i32
    %0 = arith.muli %arg1, %c16_i32 : i32
    %c0_i32 = arith.constant 0 : i32
    %1 = arith.addi %0, %c0_i32 : i32
    %c0_i32_0 = arith.constant 0 : i32
    %2 = arith.addi %1, %c0_i32_0 : i32
    %c0 = arith.constant 0 : index
    %3 = arith.index_cast %2 : i32 to index
    %c0_1 = arith.constant 0 : index
    %c0_2 = arith.constant 0 : index
    %4 = vector.load %arg2[%c0, %3, %c0_1, %c0_2] : memref<1x18x4x18xf32, #tpu.memory_space<vmem>>, vector<1x1x4x16xf32>
    %5 = vector.shape_cast %4 : vector<1x1x4x16xf32> to vector<4x16xf32>
    %c0_3 = arith.constant 0 : index
    %c0_4 = arith.constant 0 : index
    %6 = vector.load %arg6[%c0_3, %c0_4] : memref<36x256xf32, #tpu.memory_space<vmem>>, vector<4x16xf32>
    tpu.vector_store %arg6[%c0_3, %c0_4], %5 {strides = array<i32>} : memref<36x256xf32, #tpu.memory_space<vmem>>, vector<4x16xf32>,
    %c1_i32 = arith.constant 1 : i32
    %7 = arith.addi %0, %c1_i32 : i32
    %c0_i32_5 = arith.constant 0 : i32
    %8 = arith.addi %7, %c0_i32_5 : i32
    %c0_6 = arith.constant 0 : index
    %9 = arith.index_cast %8 : i32 to index
    %c0_7 = arith.constant 0 : index
    %c0_8 = arith.constant 0 : index
    %10 = vector.load %arg2[%c0_6, %9, %c0_7, %c0_8] : memref<1x18x4x18xf32, #tpu.memory_space<vmem>>, vector<1x1x4x16xf32>
    %11 = vector.shape_cast %10 : vector<1x1x4x16xf32> to vector<4x16xf32>
    %c0_9 = arith.constant 0 : index
    %c16 = arith.constant 16 : index
    %12 = vector.load %arg6[%c0_9, %c16] : memref<36x256xf32, #tpu.memory_space<vmem>>, vector<4x16xf32>
    tpu.vector_store %arg6[%c0_9, %c16], %11 {strides = array<i32>} : memref<36x256xf32, #tpu.memory_space<vmem>>, vector<4x16xf32>,
    %c2_i32 = arith.constant 2 : i32
    %13 = arith.addi %0, %c2_i32 : i32
    %c0_i32_10 = arith.constant 0 : i32
    %14 = arith.addi %13, %c0_i32_10 : i32
    %c0_11 = arith.constant 0 : index
    %15 = arith.index_cast %14 : i32 to index
    %c0_12 = arith.constant 0 : index
    %c0_13 = arith.constant 0 : index
    %16 = vector.load %arg2[%c0_11, %15, %c0_12, %c0_13] : memref<1x18x4x18xf32, #tpu.memory_space<vmem>>, vector<1x1x4x16xf32>
    %17 = vector.shape_cast %16 : vector<1x1x4x16xf32> to vector<4x16xf32>
    %c0_14 = arith.constant 0 : index
    %c32 = arith.constant 32 : index
    %18 = vector.load %arg6[%c0_14, %c32] : memref<36x256xf32, #tpu.memory_space<vmem>>, vector<4x16xf32>
    tpu.vector_store %arg6[%c0_14, %c32], %17 {strides = array<i32>} : memref<36x256xf32, #tpu.memory_space<vmem>>, vector<4x16xf32>,
    %c3_i32 = arith.constant 3 : i32
    %19 = arith.addi %0, %c3_i32 : i32
    %c0_i32_15 = arith.constant 0 : i32
    %20 = arith.addi %19, %c0_i32_15 : i32
    %c0_16 = arith.constant 0 : index
    %21 = arith.index_cast %20 : i32 to index
    %c0_17 = arith.constant 0 : index
    %c0_18 = arith.constant 0 : index
    %22 = vector.load %arg2[%c0_16, %21, %c0_17, %c0_18] : memref<1x18x4x18xf32, #tpu.memory_space<vmem>>, vector<1x1x4x16xf32>
    %23 = vector.shape_cast %22 : vector<1x1x4x16xf32> to vector<4x16xf32>
    %c0_19 = arith.constant 0 : index
    %c48 = arith.constant 48 : index
    %24 = vector.load %arg6[%c0_19, %c48] : memref<36x256xf32, #tpu.memory_space<vmem>>, vector<4x16xf32>
    tpu.vector_store %arg6[%c0_19, %c48], %23 {strides = array<i32>} : memref<36x256xf32, #tpu.memory_space<vmem>>, vector<4x16xf32>,
    %c4_i32 = arith.constant 4 : i32
    %25 = arith.addi %0, %c4_i32 : i32
    %c0_i32_20 = arith.constant 0 : i32
    %26 = arith.addi %25, %c0_i32_20 : i32
    %c0_21 = arith.constant 0 : index
    %27 = arith.index_cast %26 : i32 to index
    %c0_22 = arith.constant 0 : index
    %c0_23 = arith.constant 0 : index
    %28 = vector.load %arg2[%c0_21, %27, %c0_22, %c0_23] : memref<1x18x4x18xf32, #tpu.memory_space<vmem>>, vector<1x1x4x16xf32>
    %29 = vector.shape_cast %28 : vector<1x1x4x16xf32> to vector<4x16xf32>
    %c0_24 = arith.constant 0 : index
    %c64 = arith.constant 64 : index
    %30 = vector.load %arg6[%c0_24, %c64] : memref<36x256xf32, #tpu.memory_space<vmem>>, vector<4x16xf32>
    tpu.vector_store %arg6[%c0_24, %c64], %29 {strides = array<i32>} : memref<36x256xf32, #tpu.memory_space<vmem>>, vector<4x16xf32>,
    %c5_i32 = arith.constant 5 : i32
    %31 = arith.addi %0, %c5_i32 : i32
    %c0_i32_25 = arith.constant 0 : i32
    %32 = arith.addi %31, %c0_i32_25 : i32
    %c0_26 = arith.constant 0 : index
    %33 = arith.index_cast %32 : i32 to index
    %c0_27 = arith.constant 0 : index
    %c0_28 = arith.constant 0 : index
    %34 = vector.load %arg2[%c0_26, %33, %c0_27, %c0_28] : memref<1x18x4x18xf32, #tpu.memory_space<vmem>>, vector<1x1x4x16xf32>
    %35 = vector.shape_cast %34 : vector<1x1x4x16xf32> to vector<4x16xf32>
    %c0_29 = arith.constant 0 : index
    %c80 = arith.constant 80 : index
    %36 = vector.load %arg6[%c0_29, %c80] : memref<36x256xf32, #tpu.memory_space<vmem>>, vector<4x16xf32>
    tpu.vector_store %arg6[%c0_29, %c80], %35 {strides = array<i32>} : memref<36x256xf32, #tpu.memory_space<vmem>>, vector<4x16xf32>,
    %c6_i32 = arith.constant 6 : i32
    %37 = arith.addi %0, %c6_i32 : i32
    %c0_i32_30 = arith.constant 0 : i32
    %38 = arith.addi %37, %c0_i32_30 : i32
    %c0_31 = arith.constant 0 : index
    %39 = arith.index_cast %38 : i32 to index
    %c0_32 = arith.constant 0 : index
    %c0_33 = arith.constant 0 : index
    %40 = vector.load %arg2[%c0_31, %39, %c0_32, %c0_33] : memref<1x18x4x18xf32, #tpu.memory_space<vmem>>, vector<1x1x4x16xf32>
    %41 = vector.shape_cast %40 : vector<1x1x4x16xf32> to vector<4x16xf32>
    %c0_34 = arith.constant 0 : index
    %c96 = arith.constant 96 : index
    %42 = vector.load %arg6[%c0_34, %c96] : memref<36x256xf32, #tpu.memory_space<vmem>>, vector<4x16xf32>
    tpu.vector_store %arg6[%c0_34, %c96], %41 {strides = array<i32>} : memref<36x256xf32, #tpu.memory_space<vmem>>, vector<4x16xf32>,
    %c7_i32 = arith.constant 7 : i32
    %43 = arith.addi %0, %c7_i32 : i32
    %c0_i32_35 = arith.constant 0 : i32
    %44 = arith.addi %43, %c0_i32_35 : i32
    %c0_36 = arith.constant 0 : index
    %45 = arith.index_cast %44 : i32 to index
    %c0_37 = arith.constant 0 : index
    %c0_38 = arith.constant 0 : index
    %46 = vector.load %arg2[%c0_36, %45, %c0_37, %c0_38] : memref<1x18x4x18xf32, #tpu.memory_space<vmem>>, vector<1x1x4x16xf32>
    %47 = vector.shape_cast %46 : vector<1x1x4x16xf32> to vector<4x16xf32>
    %c0_39 = arith.constant 0 : index
    %c112 = arith.constant 112 : index
    %48 = vector.load %arg6[%c0_39, %c112] : memref<36x256xf32, #tpu.memory_space<vmem>>, vector<4x16xf32>
    tpu.vector_store %arg6[%c0_39, %c112], %47 {strides = array<i32>} : memref<36x256xf32, #tpu.memory_space<vmem>>, vector<4x16xf32>,
    %c8_i32 = arith.constant 8 : i32
    %49 = arith.addi %0, %c8_i32 : i32
    %c0_i32_40 = arith.constant 0 : i32
    %50 = arith.addi %49, %c0_i32_40 : i32
    %c0_41 = arith.constant 0 : index
    %51 = arith.index_cast %50 : i32 to index
    %c0_42 = arith.constant 0 : index
    %c0_43 = arith.constant 0 : index
    %52 = vector.load %arg2[%c0_41, %51, %c0_42, %c0_43] : memref<1x18x4x18xf32, #tpu.memory_space<vmem>>, vector<1x1x4x16xf32>
    %53 = vector.shape_cast %52 : vector<1x1x4x16xf32> to vector<4x16xf32>
    %c0_44 = arith.constant 0 : index
    %c128 = arith.constant 128 : index
    %54 = vector.load %arg6[%c0_44, %c128] : memref<36x256xf32, #tpu.memory_space<vmem>>, vector<4x16xf32>
    tpu.vector_store %arg6[%c0_44, %c128], %53 {strides = array<i32>} : memref<36x256xf32, #tpu.memory_space<vmem>>, vector<4x16xf32>,
    %c9_i32 = arith.constant 9 : i32
    %55 = arith.addi %0, %c9_i32 : i32
    %c0_i32_45 = arith.constant 0 : i32
    %56 = arith.addi %55, %c0_i32_45 : i32
    %c0_46 = arith.constant 0 : index
    %57 = arith.index_cast %56 : i32 to index
    %c0_47 = arith.constant 0 : index
    %c0_48 = arith.constant 0 : index
    %58 = vector.load %arg2[%c0_46, %57, %c0_47, %c0_48] : memref<1x18x4x18xf32, #tpu.memory_space<vmem>>, vector<1x1x4x16xf32>
    %59 = vector.shape_cast %58 : vector<1x1x4x16xf32> to vector<4x16xf32>
    %c0_49 = arith.constant 0 : index
    %c144 = arith.constant 144 : index
    %60 = vector.load %arg6[%c0_49, %c144] : memref<36x256xf32, #tpu.memory_space<vmem>>, vector<4x16xf32>
    tpu.vector_store %arg6[%c0_49, %c144], %59 {strides = array<i32>} : memref<36x256xf32, #tpu.memory_space<vmem>>, vector<4x16xf32>,
    %c10_i32 = arith.constant 10 : i32
    %61 = arith.addi %0, %c10_i32 : i32
    %c0_i32_50 = arith.constant 0 : i32
    %62 = arith.addi %61, %c0_i32_50 : i32
    %c0_51 = arith.constant 0 : index
    %63 = arith.index_cast %62 : i32 to index
    %c0_52 = arith.constant 0 : index
    %c0_53 = arith.constant 0 : index
    %64 = vector.load %arg2[%c0_51, %63, %c0_52, %c0_53] : memref<1x18x4x18xf32, #tpu.memory_space<vmem>>, vector<1x1x4x16xf32>
    %65 = vector.shape_cast %64 : vector<1x1x4x16xf32> to vector<4x16xf32>
    %c0_54 = arith.constant 0 : index
    %c160 = arith.constant 160 : index
    %66 = vector.load %arg6[%c0_54, %c160] : memref<36x256xf32, #tpu.memory_space<vmem>>, vector<4x16xf32>
    tpu.vector_store %arg6[%c0_54, %c160], %65 {strides = array<i32>} : memref<36x256xf32, #tpu.memory_space<vmem>>, vector<4x16xf32>,
    %c11_i32 = arith.constant 11 : i32
    %67 = arith.addi %0, %c11_i32 : i32
    %c0_i32_55 = arith.constant 0 : i32
    %68 = arith.addi %67, %c0_i32_55 : i32
    %c0_56 = arith.constant 0 : index
    %69 = arith.index_cast %68 : i32 to index
    %c0_57 = arith.constant 0 : index
    %c0_58 = arith.constant 0 : index
    %70 = vector.load %arg2[%c0_56, %69, %c0_57, %c0_58] : memref<1x18x4x18xf32, #tpu.memory_space<vmem>>, vector<1x1x4x16xf32>
    %71 = vector.shape_cast %70 : vector<1x1x4x16xf32> to vector<4x16xf32>
    %c0_59 = arith.constant 0 : index
    %c176 = arith.constant 176 : index
    %72 = vector.load %arg6[%c0_59, %c176] : memref<36x256xf32, #tpu.memory_space<vmem>>, vector<4x16xf32>
    tpu.vector_store %arg6[%c0_59, %c176], %71 {strides = array<i32>} : memref<36x256xf32, #tpu.memory_space<vmem>>, vector<4x16xf32>,
    %c12_i32 = arith.constant 12 : i32
    %73 = arith.addi %0, %c12_i32 : i32
    %c0_i32_60 = arith.constant 0 : i32
    %74 = arith.addi %73, %c0_i32_60 : i32
    %c0_61 = arith.constant 0 : index
    %75 = arith.index_cast %74 : i32 to index
    %c0_62 = arith.constant 0 : index
    %c0_63 = arith.constant 0 : index
    %76 = vector.load %arg2[%c0_61, %75, %c0_62, %c0_63] : memref<1x18x4x18xf32, #tpu.memory_space<vmem>>, vector<1x1x4x16xf32>
    %77 = vector.shape_cast %76 : vector<1x1x4x16xf32> to vector<4x16xf32>
    %c0_64 = arith.constant 0 : index
    %c192 = arith.constant 192 : index
    %78 = vector.load %arg6[%c0_64, %c192] : memref<36x256xf32, #tpu.memory_space<vmem>>, vector<4x16xf32>
    tpu.vector_store %arg6[%c0_64, %c192], %77 {strides = array<i32>} : memref<36x256xf32, #tpu.memory_space<vmem>>, vector<4x16xf32>,
    %c13_i32 = arith.constant 13 : i32
    %79 = arith.addi %0, %c13_i32 : i32
    %c0_i32_65 = arith.constant 0 : i32
    %80 = arith.addi %79, %c0_i32_65 : i32
    %c0_66 = arith.constant 0 : index
    %81 = arith.index_cast %80 : i32 to index
    %c0_67 = arith.constant 0 : index
    %c0_68 = arith.constant 0 : index
    %82 = vector.load %arg2[%c0_66, %81, %c0_67, %c0_68] : memref<1x18x4x18xf32, #tpu.memory_space<vmem>>, vector<1x1x4x16xf32>
    %83 = vector.shape_cast %82 : vector<1x1x4x16xf32> to vector<4x16xf32>
    %c0_69 = arith.constant 0 : index
    %c208 = arith.constant 208 : index
    %84 = vector.load %arg6[%c0_69, %c208] : memref<36x256xf32, #tpu.memory_space<vmem>>, vector<4x16xf32>
    tpu.vector_store %arg6[%c0_69, %c208], %83 {strides = array<i32>} : memref<36x256xf32, #tpu.memory_space<vmem>>, vector<4x16xf32>,
    %c14_i32 = arith.constant 14 : i32
    %85 = arith.addi %0, %c14_i32 : i32
    %c0_i32_70 = arith.constant 0 : i32
    %86 = arith.addi %85, %c0_i32_70 : i32
    %c0_71 = arith.constant 0 : index
    %87 = arith.index_cast %86 : i32 to index
    %c0_72 = arith.constant 0 : index
    %c0_73 = arith.constant 0 : index
    %88 = vector.load %arg2[%c0_71, %87, %c0_72, %c0_73] : memref<1x18x4x18xf32, #tpu.memory_space<vmem>>, vector<1x1x4x16xf32>
    %89 = vector.shape_cast %88 : vector<1x1x4x16xf32> to vector<4x16xf32>
    %c0_74 = arith.constant 0 : index
    %c224 = arith.constant 224 : index
    %90 = vector.load %arg6[%c0_74, %c224] : memref<36x256xf32, #tpu.memory_space<vmem>>, vector<4x16xf32>
    tpu.vector_store %arg6[%c0_74, %c224], %89 {strides = array<i32>} : memref<36x256xf32, #tpu.memory_space<vmem>>, vector<4x16xf32>,
    %c15_i32 = arith.constant 15 : i32
    %91 = arith.addi %0, %c15_i32 : i32
    %c0_i32_75 = arith.constant 0 : i32
    %92 = arith.addi %91, %c0_i32_75 : i32
    %c0_76 = arith.constant 0 : index
    %93 = arith.index_cast %92 : i32 to index
    %c0_77 = arith.constant 0 : index
    %c0_78 = arith.constant 0 : index
    %94 = vector.load %arg2[%c0_76, %93, %c0_77, %c0_78] : memref<1x18x4x18xf32, #tpu.memory_space<vmem>>, vector<1x1x4x16xf32>
    %95 = vector.shape_cast %94 : vector<1x1x4x16xf32> to vector<4x16xf32>
    %c0_79 = arith.constant 0 : index
    %c240 = arith.constant 240 : index
    %96 = vector.load %arg6[%c0_79, %c240] : memref<36x256xf32, #tpu.memory_space<vmem>>, vector<4x16xf32>
    tpu.vector_store %arg6[%c0_79, %c240], %95 {strides = array<i32>} : memref<36x256xf32, #tpu.memory_space<vmem>>, vector<4x16xf32>,
    %c0_i32_80 = arith.constant 0 : i32
    %97 = arith.addi %0, %c0_i32_80 : i32
    %c0_i32_81 = arith.constant 0 : i32
    %98 = arith.addi %97, %c0_i32_81 : i32
    %c0_82 = arith.constant 0 : index
    %99 = arith.index_cast %98 : i32 to index
    %c0_83 = arith.constant 0 : index
    %c1 = arith.constant 1 : index
    %100 = vector.load %arg2[%c0_82, %99, %c0_83, %c1] : memref<1x18x4x18xf32, #tpu.memory_space<vmem>>, vector<1x1x4x16xf32>
    %101 = vector.shape_cast %100 : vector<1x1x4x16xf32> to vector<4x16xf32>
    %c4 = arith.constant 4 : index
    %c0_84 = arith.constant 0 : index
    %102 = vector.load %arg6[%c4, %c0_84] : memref<36x256xf32, #tpu.memory_space<vmem>>, vector<4x16xf32>
    tpu.vector_store %arg6[%c4, %c0_84], %101 {strides = array<i32>} : memref<36x256xf32, #tpu.memory_space<vmem>>, vector<4x16xf32>,
    %c1_i32_85 = arith.constant 1 : i32
    %103 = arith.addi %0, %c1_i32_85 : i32
    %c0_i32_86 = arith.constant 0 : i32
    %104 = arith.addi %103, %c0_i32_86 : i32
    %c0_87 = arith.constant 0 : index
    %105 = arith.index_cast %104 : i32 to index
    %c0_88 = arith.constant 0 : index
    %c1_89 = arith.constant 1 : index
    %106 = vector.load %arg2[%c0_87, %105, %c0_88, %c1_89] : memref<1x18x4x18xf32, #tpu.memory_space<vmem>>, vector<1x1x4x16xf32>
    %107 = vector.shape_cast %106 : vector<1x1x4x16xf32> to vector<4x16xf32>
    %c4_90 = arith.constant 4 : index
    %c16_91 = arith.constant 16 : index
    %108 = vector.load %arg6[%c4_90, %c16_91] : memref<36x256xf32, #tpu.memory_space<vmem>>, vector<4x16xf32>
    tpu.vector_store %arg6[%c4_90, %c16_91], %107 {strides = array<i32>} : memref<36x256xf32, #tpu.memory_space<vmem>>, vector<4x16xf32>,
    %c2_i32_92 = arith.constant 2 : i32
    %109 = arith.addi %0, %c2_i32_92 : i32
    %c0_i32_93 = arith.constant 0 : i32
    %110 = arith.addi %109, %c0_i32_93 : i32
    %c0_94 = arith.constant 0 : index
    %111 = arith.index_cast %110 : i32 to index
    %c0_95 = arith.constant 0 : index
    %c1_96 = arith.constant 1 : index
    %112 = vector.load %arg2[%c0_94, %111, %c0_95, %c1_96] : memref<1x18x4x18xf32, #tpu.memory_space<vmem>>, vector<1x1x4x16xf32>
    %113 = vector.shape_cast %112 : vector<1x1x4x16xf32> to vector<4x16xf32>
    %c4_97 = arith.constant 4 : index
    %c32_98 = arith.constant 32 : index
    %114 = vector.load %arg6[%c4_97, %c32_98] : memref<36x256xf32, #tpu.memory_space<vmem>>, vector<4x16xf32>
    tpu.vector_store %arg6[%c4_97, %c32_98], %113 {strides = array<i32>} : memref<36x256xf32, #tpu.memory_space<vmem>>, vector<4x16xf32>,
    %c3_i32_99 = arith.constant 3 : i32
    %115 = arith.addi %0, %c3_i32_99 : i32
    %c0_i32_100 = arith.constant 0 : i32
    %116 = arith.addi %115, %c0_i32_100 : i32
    %c0_101 = arith.constant 0 : index
    %117 = arith.index_cast %116 : i32 to index
    %c0_102 = arith.constant 0 : index
    %c1_103 = arith.constant 1 : index
    %118 = vector.load %arg2[%c0_101, %117, %c0_102, %c1_103] : memref<1x18x4x18xf32, #tpu.memory_space<vmem>>, vector<1x1x4x16xf32>
    %119 = vector.shape_cast %118 : vector<1x1x4x16xf32> to vector<4x16xf32>
    %c4_104 = arith.constant 4 : index
    %c48_105 = arith.constant 48 : index
    %120 = vector.load %arg6[%c4_104, %c48_105] : memref<36x256xf32, #tpu.memory_space<vmem>>, vector<4x16xf32>
    tpu.vector_store %arg6[%c4_104, %c48_105], %119 {strides = array<i32>} : memref<36x256xf32, #tpu.memory_space<vmem>>, vector<4x16xf32>,
    %c4_i32_106 = arith.constant 4 : i32
    %121 = arith.addi %0, %c4_i32_106 : i32
    %c0_i32_107 = arith.constant 0 : i32
    %122 = arith.addi %121, %c0_i32_107 : i32
    %c0_108 = arith.constant 0 : index
    %123 = arith.index_cast %122 : i32 to index
    %c0_109 = arith.constant 0 : index
    %c1_110 = arith.constant 1 : index
    %124 = vector.load %arg2[%c0_108, %123, %c0_109, %c1_110] : memref<1x18x4x18xf32, #tpu.memory_space<vmem>>, vector<1x1x4x16xf32>
    %125 = vector.shape_cast %124 : vector<1x1x4x16xf32> to vector<4x16xf32>
    %c4_111 = arith.constant 4 : index
    %c64_112 = arith.constant 64 : index
    %126 = vector.load %arg6[%c4_111, %c64_112] : memref<36x256xf32, #tpu.memory_space<vmem>>, vector<4x16xf32>
    tpu.vector_store %arg6[%c4_111, %c64_112], %125 {strides = array<i32>} : memref<36x256xf32, #tpu.memory_space<vmem>>, vector<4x16xf32>,
    %c5_i32_113 = arith.constant 5 : i32
    %127 = arith.addi %0, %c5_i32_113 : i32
    %c0_i32_114 = arith.constant 0 : i32
    %128 = arith.addi %127, %c0_i32_114 : i32
    %c0_115 = arith.constant 0 : index
    %129 = arith.index_cast %128 : i32 to index
    %c0_116 = arith.constant 0 : index
    %c1_117 = arith.constant 1 : index
    %130 = vector.load %arg2[%c0_115, %129, %c0_116, %c1_117] : memref<1x18x4x18xf32, #tpu.memory_space<vmem>>, vector<1x1x4x16xf32>
    %131 = vector.shape_cast %130 : vector<1x1x4x16xf32> to vector<4x16xf32>
    %c4_118 = arith.constant 4 : index
    %c80_119 = arith.constant 80 : index
    %132 = vector.load %arg6[%c4_118, %c80_119] : memref<36x256xf32, #tpu.memory_space<vmem>>, vector<4x16xf32>
    tpu.vector_store %arg6[%c4_118, %c80_119], %131 {strides = array<i32>} : memref<36x256xf32, #tpu.memory_space<vmem>>, vector<4x16xf32>,
    %c6_i32_120 = arith.constant 6 : i32
    %133 = arith.addi %0, %c6_i32_120 : i32
    %c0_i32_121 = arith.constant 0 : i32
    %134 = arith.addi %133, %c0_i32_121 : i32
    %c0_122 = arith.constant 0 : index
    %135 = arith.index_cast %134 : i32 to index
    %c0_123 = arith.constant 0 : index
    %c1_124 = arith.constant 1 : index
    %136 = vector.load %arg2[%c0_122, %135, %c0_123, %c1_124] : memref<1x18x4x18xf32, #tpu.memory_space<vmem>>, vector<1x1x4x16xf32>
    %137 = vector.shape_cast %136 : vector<1x1x4x16xf32> to vector<4x16xf32>
    %c4_125 = arith.constant 4 : index
    %c96_126 = arith.constant 96 : index
    %138 = vector.load %arg6[%c4_125, %c96_126] : memref<36x256xf32, #tpu.memory_space<vmem>>, vector<4x16xf32>
    tpu.vector_store %arg6[%c4_125, %c96_126], %137 {strides = array<i32>} : memref<36x256xf32, #tpu.memory_space<vmem>>, vector<4x16xf32>,
    %c7_i32_127 = arith.constant 7 : i32
    %139 = arith.addi %0, %c7_i32_127 : i32
    %c0_i32_128 = arith.constant 0 : i32
    %140 = arith.addi %139, %c0_i32_128 : i32
    %c0_129 = arith.constant 0 : index
    %141 = arith.index_cast %140 : i32 to index
    %c0_130 = arith.constant 0 : index
    %c1_131 = arith.constant 1 : index
    %142 = vector.load %arg2[%c0_129, %141, %c0_130, %c1_131] : memref<1x18x4x18xf32, #tpu.memory_space<vmem>>, vector<1x1x4x16xf32>
    %143 = vector.shape_cast %142 : vector<1x1x4x16xf32> to vector<4x16xf32>
    %c4_132 = arith.constant 4 : index
    %c112_133 = arith.constant 112 : index
    %144 = vector.load %arg6[%c4_132, %c112_133] : memref<36x256xf32, #tpu.memory_space<vmem>>, vector<4x16xf32>
    tpu.vector_store %arg6[%c4_132, %c112_133], %143 {strides = array<i32>} : memref<36x256xf32, #tpu.memory_space<vmem>>, vector<4x16xf32>,
    %c8_i32_134 = arith.constant 8 : i32
    %145 = arith.addi %0, %c8_i32_134 : i32
    %c0_i32_135 = arith.constant 0 : i32
    %146 = arith.addi %145, %c0_i32_135 : i32
    %c0_136 = arith.constant 0 : index
    %147 = arith.index_cast %146 : i32 to index
    %c0_137 = arith.constant 0 : index
    %c1_138 = arith.constant 1 : index
    %148 = vector.load %arg2[%c0_136, %147, %c0_137, %c1_138] : memref<1x18x4x18xf32, #tpu.memory_space<vmem>>, vector<1x1x4x16xf32>
    %149 = vector.shape_cast %148 : vector<1x1x4x16xf32> to vector<4x16xf32>
    %c4_139 = arith.constant 4 : index
    %c128_140 = arith.constant 128 : index
    %150 = vector.load %arg6[%c4_139, %c128_140] : memref<36x256xf32, #tpu.memory_space<vmem>>, vector<4x16xf32>
    tpu.vector_store %arg6[%c4_139, %c128_140], %149 {strides = array<i32>} : memref<36x256xf32, #tpu.memory_space<vmem>>, vector<4x16xf32>,
    %c9_i32_141 = arith.constant 9 : i32
    %151 = arith.addi %0, %c9_i32_141 : i32
    %c0_i32_142 = arith.constant 0 : i32
    %152 = arith.addi %151, %c0_i32_142 : i32
    %c0_143 = arith.constant 0 : index
    %153 = arith.index_cast %152 : i32 to index
    %c0_144 = arith.constant 0 : index
    %c1_145 = arith.constant 1 : index
    %154 = vector.load %arg2[%c0_143, %153, %c0_144, %c1_145] : memref<1x18x4x18xf32, #tpu.memory_space<vmem>>, vector<1x1x4x16xf32>
    %155 = vector.shape_cast %154 : vector<1x1x4x16xf32> to vector<4x16xf32>
    %c4_146 = arith.constant 4 : index
    %c144_147 = arith.constant 144 : index
    %156 = vector.load %arg6[%c4_146, %c144_147] : memref<36x256xf32, #tpu.memory_space<vmem>>, vector<4x16xf32>
    tpu.vector_store %arg6[%c4_146, %c144_147], %155 {strides = array<i32>} : memref<36x256xf32, #tpu.memory_space<vmem>>, vector<4x16xf32>,
    %c10_i32_148 = arith.constant 10 : i32
    %157 = arith.addi %0, %c10_i32_148 : i32
    %c0_i32_149 = arith.constant 0 : i32
    %158 = arith.addi %157, %c0_i32_149 : i32
    %c0_150 = arith.constant 0 : index
    %159 = arith.index_cast %158 : i32 to index
    %c0_151 = arith.constant 0 : index
    %c1_152 = arith.constant 1 : index
    %160 = vector.load %arg2[%c0_150, %159, %c0_151, %c1_152] : memref<1x18x4x18xf32, #tpu.memory_space<vmem>>, vector<1x1x4x16xf32>
    %161 = vector.shape_cast %160 : vector<1x1x4x16xf32> to vector<4x16xf32>
    %c4_153 = arith.constant 4 : index
    %c160_154 = arith.constant 160 : index
    %162 = vector.load %arg6[%c4_153, %c160_154] : memref<36x256xf32, #tpu.memory_space<vmem>>, vector<4x16xf32>
    tpu.vector_store %arg6[%c4_153, %c160_154], %161 {strides = array<i32>} : memref<36x256xf32, #tpu.memory_space<vmem>>, vector<4x16xf32>,
    %c11_i32_155 = arith.constant 11 : i32
    %163 = arith.addi %0, %c11_i32_155 : i32
    %c0_i32_156 = arith.constant 0 : i32
    %164 = arith.addi %163, %c0_i32_156 : i32
    %c0_157 = arith.constant 0 : index
    %165 = arith.index_cast %164 : i32 to index
    %c0_158 = arith.constant 0 : index
    %c1_159 = arith.constant 1 : index
    %166 = vector.load %arg2[%c0_157, %165, %c0_158, %c1_159] : memref<1x18x4x18xf32, #tpu.memory_space<vmem>>, vector<1x1x4x16xf32>
    %167 = vector.shape_cast %166 : vector<1x1x4x16xf32> to vector<4x16xf32>
    %c4_160 = arith.constant 4 : index
    %c176_161 = arith.constant 176 : index
    %168 = vector.load %arg6[%c4_160, %c176_161] : memref<36x256xf32, #tpu.memory_space<vmem>>, vector<4x16xf32>
    tpu.vector_store %arg6[%c4_160, %c176_161], %167 {strides = array<i32>} : memref<36x256xf32, #tpu.memory_space<vmem>>, vector<4x16xf32>,
    %c12_i32_162 = arith.constant 12 : i32
    %169 = arith.addi %0, %c12_i32_162 : i32
    %c0_i32_163 = arith.constant 0 : i32
    %170 = arith.addi %169, %c0_i32_163 : i32
    %c0_164 = arith.constant 0 : index
    %171 = arith.index_cast %170 : i32 to index
    %c0_165 = arith.constant 0 : index
    %c1_166 = arith.constant 1 : index
    %172 = vector.load %arg2[%c0_164, %171, %c0_165, %c1_166] : memref<1x18x4x18xf32, #tpu.memory_space<vmem>>, vector<1x1x4x16xf32>
    %173 = vector.shape_cast %172 : vector<1x1x4x16xf32> to vector<4x16xf32>
    %c4_167 = arith.constant 4 : index
    %c192_168 = arith.constant 192 : index
    %174 = vector.load %arg6[%c4_167, %c192_168] : memref<36x256xf32, #tpu.memory_space<vmem>>, vector<4x16xf32>
    tpu.vector_store %arg6[%c4_167, %c192_168], %173 {strides = array<i32>} : memref<36x256xf32, #tpu.memory_space<vmem>>, vector<4x16xf32>,
    %c13_i32_169 = arith.constant 13 : i32
    %175 = arith.addi %0, %c13_i32_169 : i32
    %c0_i32_170 = arith.constant 0 : i32
    %176 = arith.addi %175, %c0_i32_170 : i32
    %c0_171 = arith.constant 0 : index
    %177 = arith.index_cast %176 : i32 to index
    %c0_172 = arith.constant 0 : index
    %c1_173 = arith.constant 1 : index
    %178 = vector.load %arg2[%c0_171, %177, %c0_172, %c1_173] : memref<1x18x4x18xf32, #tpu.memory_space<vmem>>, vector<1x1x4x16xf32>
    %179 = vector.shape_cast %178 : vector<1x1x4x16xf32> to vector<4x16xf32>
    %c4_174 = arith.constant 4 : index
    %c208_175 = arith.constant 208 : index
    %180 = vector.load %arg6[%c4_174, %c208_175] : memref<36x256xf32, #tpu.memory_space<vmem>>, vector<4x16xf32>
    tpu.vector_store %arg6[%c4_174, %c208_175], %179 {strides = array<i32>} : memref<36x256xf32, #tpu.memory_space<vmem>>, vector<4x16xf32>,
    %c14_i32_176 = arith.constant 14 : i32
    %181 = arith.addi %0, %c14_i32_176 : i32
    %c0_i32_177 = arith.constant 0 : i32
    %182 = arith.addi %181, %c0_i32_177 : i32
    %c0_178 = arith.constant 0 : index
    %183 = arith.index_cast %182 : i32 to index
    %c0_179 = arith.constant 0 : index
    %c1_180 = arith.constant 1 : index
    %184 = vector.load %arg2[%c0_178, %183, %c0_179, %c1_180] : memref<1x18x4x18xf32, #tpu.memory_space<vmem>>, vector<1x1x4x16xf32>
    %185 = vector.shape_cast %184 : vector<1x1x4x16xf32> to vector<4x16xf32>
    %c4_181 = arith.constant 4 : index
    %c224_182 = arith.constant 224 : index
    %186 = vector.load %arg6[%c4_181, %c224_182] : memref<36x256xf32, #tpu.memory_space<vmem>>, vector<4x16xf32>
    tpu.vector_store %arg6[%c4_181, %c224_182], %185 {strides = array<i32>} : memref<36x256xf32, #tpu.memory_space<vmem>>, vector<4x16xf32>,
    %c15_i32_183 = arith.constant 15 : i32
    %187 = arith.addi %0, %c15_i32_183 : i32
    %c0_i32_184 = arith.constant 0 : i32
    %188 = arith.addi %187, %c0_i32_184 : i32
    %c0_185 = arith.constant 0 : index
    %189 = arith.index_cast %188 : i32 to index
    %c0_186 = arith.constant 0 : index
    %c1_187 = arith.constant 1 : index
    %190 = vector.load %arg2[%c0_185, %189, %c0_186, %c1_187] : memref<1x18x4x18xf32, #tpu.memory_space<vmem>>, vector<1x1x4x16xf32>
    %191 = vector.shape_cast %190 : vector<1x1x4x16xf32> to vector<4x16xf32>
    %c4_188 = arith.constant 4 : index
    %c240_189 = arith.constant 240 : index
    %192 = vector.load %arg6[%c4_188, %c240_189] : memref<36x256xf32, #tpu.memory_space<vmem>>, vector<4x16xf32>
    tpu.vector_store %arg6[%c4_188, %c240_189], %191 {strides = array<i32>} : memref<36x256xf32, #tpu.memory_space<vmem>>, vector<4x16xf32>,
    %c0_i32_190 = arith.constant 0 : i32
    %193 = arith.addi %0, %c0_i32_190 : i32
    %c0_i32_191 = arith.constant 0 : i32
    %194 = arith.addi %193, %c0_i32_191 : i32
    %c0_192 = arith.constant 0 : index
    %195 = arith.index_cast %194 : i32 to index
    %c0_193 = arith.constant 0 : index
    %c2 = arith.constant 2 : index
    %196 = vector.load %arg2[%c0_192, %195, %c0_193, %c2] : memref<1x18x4x18xf32, #tpu.memory_space<vmem>>, vector<1x1x4x16xf32>
    %197 = vector.shape_cast %196 : vector<1x1x4x16xf32> to vector<4x16xf32>
    %c8 = arith.constant 8 : index
    %c0_194 = arith.constant 0 : index
    %198 = vector.load %arg6[%c8, %c0_194] : memref<36x256xf32, #tpu.memory_space<vmem>>, vector<4x16xf32>
    tpu.vector_store %arg6[%c8, %c0_194], %197 {strides = array<i32>} : memref<36x256xf32, #tpu.memory_space<vmem>>, vector<4x16xf32>,
    %c1_i32_195 = arith.constant 1 : i32
    %199 = arith.addi %0, %c1_i32_195 : i32
    %c0_i32_196 = arith.constant 0 : i32
    %200 = arith.addi %199, %c0_i32_196 : i32
    %c0_197 = arith.constant 0 : index
    %201 = arith.index_cast %200 : i32 to index
    %c0_198 = arith.constant 0 : index
    %c2_199 = arith.constant 2 : index
    %202 = vector.load %arg2[%c0_197, %201, %c0_198, %c2_199] : memref<1x18x4x18xf32, #tpu.memory_space<vmem>>, vector<1x1x4x16xf32>
    %203 = vector.shape_cast %202 : vector<1x1x4x16xf32> to vector<4x16xf32>
    %c8_200 = arith.constant 8 : index
    %c16_201 = arith.constant 16 : index
    %204 = vector.load %arg6[%c8_200, %c16_201] : memref<36x256xf32, #tpu.memory_space<vmem>>, vector<4x16xf32>
    tpu.vector_store %arg6[%c8_200, %c16_201], %203 {strides = array<i32>} : memref<36x256xf32, #tpu.memory_space<vmem>>, vector<4x16xf32>,
    %c2_i32_202 = arith.constant 2 : i32
    %205 = arith.addi %0, %c2_i32_202 : i32
    %c0_i32_203 = arith.constant 0 : i32
    %206 = arith.addi %205, %c0_i32_203 : i32
    %c0_204 = arith.constant 0 : index
    %207 = arith.index_cast %206 : i32 to index
    %c0_205 = arith.constant 0 : index
    %c2_206 = arith.constant 2 : index
    %208 = vector.load %arg2[%c0_204, %207, %c0_205, %c2_206] : memref<1x18x4x18xf32, #tpu.memory_space<vmem>>, vector<1x1x4x16xf32>
    %209 = vector.shape_cast %208 : vector<1x1x4x16xf32> to vector<4x16xf32>
    %c8_207 = arith.constant 8 : index
    %c32_208 = arith.constant 32 : index
    %210 = vector.load %arg6[%c8_207, %c32_208] : memref<36x256xf32, #tpu.memory_space<vmem>>, vector<4x16xf32>
    tpu.vector_store %arg6[%c8_207, %c32_208], %209 {strides = array<i32>} : memref<36x256xf32, #tpu.memory_space<vmem>>, vector<4x16xf32>,
    %c3_i32_209 = arith.constant 3 : i32
    %211 = arith.addi %0, %c3_i32_209 : i32
    %c0_i32_210 = arith.constant 0 : i32
    %212 = arith.addi %211, %c0_i32_210 : i32
    %c0_211 = arith.constant 0 : index
    %213 = arith.index_cast %212 : i32 to index
    %c0_212 = arith.constant 0 : index
    %c2_213 = arith.constant 2 : index
    %214 = vector.load %arg2[%c0_211, %213, %c0_212, %c2_213] : memref<1x18x4x18xf32, #tpu.memory_space<vmem>>, vector<1x1x4x16xf32>
    %215 = vector.shape_cast %214 : vector<1x1x4x16xf32> to vector<4x16xf32>
    %c8_214 = arith.constant 8 : index
    %c48_215 = arith.constant 48 : index
    %216 = vector.load %arg6[%c8_214, %c48_215] : memref<36x256xf32, #tpu.memory_space<vmem>>, vector<4x16xf32>
    tpu.vector_store %arg6[%c8_214, %c48_215], %215 {strides = array<i32>} : memref<36x256xf32, #tpu.memory_space<vmem>>, vector<4x16xf32>,
    %c4_i32_216 = arith.constant 4 : i32
    %217 = arith.addi %0, %c4_i32_216 : i32
    %c0_i32_217 = arith.constant 0 : i32
    %218 = arith.addi %217, %c0_i32_217 : i32
    %c0_218 = arith.constant 0 : index
    %219 = arith.index_cast %218 : i32 to index
    %c0_219 = arith.constant 0 : index
    %c2_220 = arith.constant 2 : index
    %220 = vector.load %arg2[%c0_218, %219, %c0_219, %c2_220] : memref<1x18x4x18xf32, #tpu.memory_space<vmem>>, vector<1x1x4x16xf32>
    %221 = vector.shape_cast %220 : vector<1x1x4x16xf32> to vector<4x16xf32>
    %c8_221 = arith.constant 8 : index
    %c64_222 = arith.constant 64 : index
    %222 = vector.load %arg6[%c8_221, %c64_222] : memref<36x256xf32, #tpu.memory_space<vmem>>, vector<4x16xf32>
    tpu.vector_store %arg6[%c8_221, %c64_222], %221 {strides = array<i32>} : memref<36x256xf32, #tpu.memory_space<vmem>>, vector<4x16xf32>,
    %c5_i32_223 = arith.constant 5 : i32
    %223 = arith.addi %0, %c5_i32_223 : i32
    %c0_i32_224 = arith.constant 0 : i32
    %224 = arith.addi %223, %c0_i32_224 : i32
    %c0_225 = arith.constant 0 : index
    %225 = arith.index_cast %224 : i32 to index
    %c0_226 = arith.constant 0 : index
    %c2_227 = arith.constant 2 : index
    %226 = vector.load %arg2[%c0_225, %225, %c0_226, %c2_227] : memref<1x18x4x18xf32, #tpu.memory_space<vmem>>, vector<1x1x4x16xf32>
    %227 = vector.shape_cast %226 : vector<1x1x4x16xf32> to vector<4x16xf32>
    %c8_228 = arith.constant 8 : index
    %c80_229 = arith.constant 80 : index
    %228 = vector.load %arg6[%c8_228, %c80_229] : memref<36x256xf32, #tpu.memory_space<vmem>>, vector<4x16xf32>
    tpu.vector_store %arg6[%c8_228, %c80_229], %227 {strides = array<i32>} : memref<36x256xf32, #tpu.memory_space<vmem>>, vector<4x16xf32>,
    %c6_i32_230 = arith.constant 6 : i32
    %229 = arith.addi %0, %c6_i32_230 : i32
    %c0_i32_231 = arith.constant 0 : i32
    %230 = arith.addi %229, %c0_i32_231 : i32
    %c0_232 = arith.constant 0 : index
    %231 = arith.index_cast %230 : i32 to index
    %c0_233 = arith.constant 0 : index
    %c2_234 = arith.constant 2 : index
    %232 = vector.load %arg2[%c0_232, %231, %c0_233, %c2_234] : memref<1x18x4x18xf32, #tpu.memory_space<vmem>>, vector<1x1x4x16xf32>
    %233 = vector.shape_cast %232 : vector<1x1x4x16xf32> to vector<4x16xf32>
    %c8_235 = arith.constant 8 : index
    %c96_236 = arith.constant 96 : index
    %234 = vector.load %arg6[%c8_235, %c96_236] : memref<36x256xf32, #tpu.memory_space<vmem>>, vector<4x16xf32>
    tpu.vector_store %arg6[%c8_235, %c96_236], %233 {strides = array<i32>} : memref<36x256xf32, #tpu.memory_space<vmem>>, vector<4x16xf32>,
    %c7_i32_237 = arith.constant 7 : i32
    %235 = arith.addi %0, %c7_i32_237 : i32
    %c0_i32_238 = arith.constant 0 : i32
    %236 = arith.addi %235, %c0_i32_238 : i32
    %c0_239 = arith.constant 0 : index
    %237 = arith.index_cast %236 : i32 to index
    %c0_240 = arith.constant 0 : index
    %c2_241 = arith.constant 2 : index
    %238 = vector.load %arg2[%c0_239, %237, %c0_240, %c2_241] : memref<1x18x4x18xf32, #tpu.memory_space<vmem>>, vector<1x1x4x16xf32>
    %239 = vector.shape_cast %238 : vector<1x1x4x16xf32> to vector<4x16xf32>
    %c8_242 = arith.constant 8 : index
    %c112_243 = arith.constant 112 : index
    %240 = vector.load %arg6[%c8_242, %c112_243] : memref<36x256xf32, #tpu.memory_space<vmem>>, vector<4x16xf32>
    tpu.vector_store %arg6[%c8_242, %c112_243], %239 {strides = array<i32>} : memref<36x256xf32, #tpu.memory_space<vmem>>, vector<4x16xf32>,
    %c8_i32_244 = arith.constant 8 : i32
    %241 = arith.addi %0, %c8_i32_244 : i32
    %c0_i32_245 = arith.constant 0 : i32
    %242 = arith.addi %241, %c0_i32_245 : i32
    %c0_246 = arith.constant 0 : index
    %243 = arith.index_cast %242 : i32 to index
    %c0_247 = arith.constant 0 : index
    %c2_248 = arith.constant 2 : index
    %244 = vector.load %arg2[%c0_246, %243, %c0_247, %c2_248] : memref<1x18x4x18xf32, #tpu.memory_space<vmem>>, vector<1x1x4x16xf32>
    %245 = vector.shape_cast %244 : vector<1x1x4x16xf32> to vector<4x16xf32>
    %c8_249 = arith.constant 8 : index
    %c128_250 = arith.constant 128 : index
    %246 = vector.load %arg6[%c8_249, %c128_250] : memref<36x256xf32, #tpu.memory_space<vmem>>, vector<4x16xf32>
    tpu.vector_store %arg6[%c8_249, %c128_250], %245 {strides = array<i32>} : memref<36x256xf32, #tpu.memory_space<vmem>>, vector<4x16xf32>,
    %c9_i32_251 = arith.constant 9 : i32
    %247 = arith.addi %0, %c9_i32_251 : i32
    %c0_i32_252 = arith.constant 0 : i32
    %248 = arith.addi %247, %c0_i32_252 : i32
    %c0_253 = arith.constant 0 : index
    %249 = arith.index_cast %248 : i32 to index
    %c0_254 = arith.constant 0 : index
    %c2_255 = arith.constant 2 : index
    %250 = vector.load %arg2[%c0_253, %249, %c0_254, %c2_255] : memref<1x18x4x18xf32, #tpu.memory_space<vmem>>, vector<1x1x4x16xf32>
    %251 = vector.shape_cast %250 : vector<1x1x4x16xf32> to vector<4x16xf32>
    %c8_256 = arith.constant 8 : index
    %c144_257 = arith.constant 144 : index
    %252 = vector.load %arg6[%c8_256, %c144_257] : memref<36x256xf32, #tpu.memory_space<vmem>>, vector<4x16xf32>
    tpu.vector_store %arg6[%c8_256, %c144_257], %251 {strides = array<i32>} : memref<36x256xf32, #tpu.memory_space<vmem>>, vector<4x16xf32>,
    %c10_i32_258 = arith.constant 10 : i32
    %253 = arith.addi %0, %c10_i32_258 : i32
    %c0_i32_259 = arith.constant 0 : i32
    %254 = arith.addi %253, %c0_i32_259 : i32
    %c0_260 = arith.constant 0 : index
    %255 = arith.index_cast %254 : i32 to index
    %c0_261 = arith.constant 0 : index
    %c2_262 = arith.constant 2 : index
    %256 = vector.load %arg2[%c0_260, %255, %c0_261, %c2_262] : memref<1x18x4x18xf32, #tpu.memory_space<vmem>>, vector<1x1x4x16xf32>
    %257 = vector.shape_cast %256 : vector<1x1x4x16xf32> to vector<4x16xf32>
    %c8_263 = arith.constant 8 : index
    %c160_264 = arith.constant 160 : index
    %258 = vector.load %arg6[%c8_263, %c160_264] : memref<36x256xf32, #tpu.memory_space<vmem>>, vector<4x16xf32>
    tpu.vector_store %arg6[%c8_263, %c160_264], %257 {strides = array<i32>} : memref<36x256xf32, #tpu.memory_space<vmem>>, vector<4x16xf32>,
    %c11_i32_265 = arith.constant 11 : i32
    %259 = arith.addi %0, %c11_i32_265 : i32
    %c0_i32_266 = arith.constant 0 : i32
    %260 = arith.addi %259, %c0_i32_266 : i32
    %c0_267 = arith.constant 0 : index
    %261 = arith.index_cast %260 : i32 to index
    %c0_268 = arith.constant 0 : index
    %c2_269 = arith.constant 2 : index
    %262 = vector.load %arg2[%c0_267, %261, %c0_268, %c2_269] : memref<1x18x4x18xf32, #tpu.memory_space<vmem>>, vector<1x1x4x16xf32>
    %263 = vector.shape_cast %262 : vector<1x1x4x16xf32> to vector<4x16xf32>
    %c8_270 = arith.constant 8 : index
    %c176_271 = arith.constant 176 : index
    %264 = vector.load %arg6[%c8_270, %c176_271] : memref<36x256xf32, #tpu.memory_space<vmem>>, vector<4x16xf32>
    tpu.vector_store %arg6[%c8_270, %c176_271], %263 {strides = array<i32>} : memref<36x256xf32, #tpu.memory_space<vmem>>, vector<4x16xf32>,
    %c12_i32_272 = arith.constant 12 : i32
    %265 = arith.addi %0, %c12_i32_272 : i32
    %c0_i32_273 = arith.constant 0 : i32
    %266 = arith.addi %265, %c0_i32_273 : i32
    %c0_274 = arith.constant 0 : index
    %267 = arith.index_cast %266 : i32 to index
    %c0_275 = arith.constant 0 : index
    %c2_276 = arith.constant 2 : index
    %268 = vector.load %arg2[%c0_274, %267, %c0_275, %c2_276] : memref<1x18x4x18xf32, #tpu.memory_space<vmem>>, vector<1x1x4x16xf32>
    %269 = vector.shape_cast %268 : vector<1x1x4x16xf32> to vector<4x16xf32>
    %c8_277 = arith.constant 8 : index
    %c192_278 = arith.constant 192 : index
    %270 = vector.load %arg6[%c8_277, %c192_278] : memref<36x256xf32, #tpu.memory_space<vmem>>, vector<4x16xf32>
    tpu.vector_store %arg6[%c8_277, %c192_278], %269 {strides = array<i32>} : memref<36x256xf32, #tpu.memory_space<vmem>>, vector<4x16xf32>,
    %c13_i32_279 = arith.constant 13 : i32
    %271 = arith.addi %0, %c13_i32_279 : i32
    %c0_i32_280 = arith.constant 0 : i32
    %272 = arith.addi %271, %c0_i32_280 : i32
    %c0_281 = arith.constant 0 : index
    %273 = arith.index_cast %272 : i32 to index
    %c0_282 = arith.constant 0 : index
    %c2_283 = arith.constant 2 : index
    %274 = vector.load %arg2[%c0_281, %273, %c0_282, %c2_283] : memref<1x18x4x18xf32, #tpu.memory_space<vmem>>, vector<1x1x4x16xf32>
    %275 = vector.shape_cast %274 : vector<1x1x4x16xf32> to vector<4x16xf32>
    %c8_284 = arith.constant 8 : index
    %c208_285 = arith.constant 208 : index
    %276 = vector.load %arg6[%c8_284, %c208_285] : memref<36x256xf32, #tpu.memory_space<vmem>>, vector<4x16xf32>
    tpu.vector_store %arg6[%c8_284, %c208_285], %275 {strides = array<i32>} : memref<36x256xf32, #tpu.memory_space<vmem>>, vector<4x16xf32>,
    %c14_i32_286 = arith.constant 14 : i32
    %277 = arith.addi %0, %c14_i32_286 : i32
    %c0_i32_287 = arith.constant 0 : i32
    %278 = arith.addi %277, %c0_i32_287 : i32
    %c0_288 = arith.constant 0 : index
    %279 = arith.index_cast %278 : i32 to index
    %c0_289 = arith.constant 0 : index
    %c2_290 = arith.constant 2 : index
    %280 = vector.load %arg2[%c0_288, %279, %c0_289, %c2_290] : memref<1x18x4x18xf32, #tpu.memory_space<vmem>>, vector<1x1x4x16xf32>
    %281 = vector.shape_cast %280 : vector<1x1x4x16xf32> to vector<4x16xf32>
    %c8_291 = arith.constant 8 : index
    %c224_292 = arith.constant 224 : index
    %282 = vector.load %arg6[%c8_291, %c224_292] : memref<36x256xf32, #tpu.memory_space<vmem>>, vector<4x16xf32>
    tpu.vector_store %arg6[%c8_291, %c224_292], %281 {strides = array<i32>} : memref<36x256xf32, #tpu.memory_space<vmem>>, vector<4x16xf32>,
    %c15_i32_293 = arith.constant 15 : i32
    %283 = arith.addi %0, %c15_i32_293 : i32
    %c0_i32_294 = arith.constant 0 : i32
    %284 = arith.addi %283, %c0_i32_294 : i32
    %c0_295 = arith.constant 0 : index
    %285 = arith.index_cast %284 : i32 to index
    %c0_296 = arith.constant 0 : index
    %c2_297 = arith.constant 2 : index
    %286 = vector.load %arg2[%c0_295, %285, %c0_296, %c2_297] : memref<1x18x4x18xf32, #tpu.memory_space<vmem>>, vector<1x1x4x16xf32>
    %287 = vector.shape_cast %286 : vector<1x1x4x16xf32> to vector<4x16xf32>
    %c8_298 = arith.constant 8 : index
    %c240_299 = arith.constant 240 : index
    %288 = vector.load %arg6[%c8_298, %c240_299] : memref<36x256xf32, #tpu.memory_space<vmem>>, vector<4x16xf32>
    tpu.vector_store %arg6[%c8_298, %c240_299], %287 {strides = array<i32>} : memref<36x256xf32, #tpu.memory_space<vmem>>, vector<4x16xf32>,
    %c0_i32_300 = arith.constant 0 : i32
    %289 = arith.addi %0, %c0_i32_300 : i32
    %c1_i32_301 = arith.constant 1 : i32
    %290 = arith.addi %289, %c1_i32_301 : i32
    %c0_302 = arith.constant 0 : index
    %291 = arith.index_cast %290 : i32 to index
    %c0_303 = arith.constant 0 : index
    %c0_304 = arith.constant 0 : index
    %292 = vector.load %arg2[%c0_302, %291, %c0_303, %c0_304] : memref<1x18x4x18xf32, #tpu.memory_space<vmem>>, vector<1x1x4x16xf32>
    %293 = vector.shape_cast %292 : vector<1x1x4x16xf32> to vector<4x16xf32>
    %c12 = arith.constant 12 : index
    %c0_305 = arith.constant 0 : index
    %294 = vector.load %arg6[%c12, %c0_305] : memref<36x256xf32, #tpu.memory_space<vmem>>, vector<4x16xf32>
    tpu.vector_store %arg6[%c12, %c0_305], %293 {strides = array<i32>} : memref<36x256xf32, #tpu.memory_space<vmem>>, vector<4x16xf32>,
    %c1_i32_306 = arith.constant 1 : i32
    %295 = arith.addi %0, %c1_i32_306 : i32
    %c1_i32_307 = arith.constant 1 : i32
    %296 = arith.addi %295, %c1_i32_307 : i32
    %c0_308 = arith.constant 0 : index
    %297 = arith.index_cast %296 : i32 to index
    %c0_309 = arith.constant 0 : index
    %c0_310 = arith.constant 0 : index
    %298 = vector.load %arg2[%c0_308, %297, %c0_309, %c0_310] : memref<1x18x4x18xf32, #tpu.memory_space<vmem>>, vector<1x1x4x16xf32>
    %299 = vector.shape_cast %298 : vector<1x1x4x16xf32> to vector<4x16xf32>
    %c12_311 = arith.constant 12 : index
    %c16_312 = arith.constant 16 : index
    %300 = vector.load %arg6[%c12_311, %c16_312] : memref<36x256xf32, #tpu.memory_space<vmem>>, vector<4x16xf32>
    tpu.vector_store %arg6[%c12_311, %c16_312], %299 {strides = array<i32>} : memref<36x256xf32, #tpu.memory_space<vmem>>, vector<4x16xf32>,
    %c2_i32_313 = arith.constant 2 : i32
    %301 = arith.addi %0, %c2_i32_313 : i32
    %c1_i32_314 = arith.constant 1 : i32
    %302 = arith.addi %301, %c1_i32_314 : i32
    %c0_315 = arith.constant 0 : index
    %303 = arith.index_cast %302 : i32 to index
    %c0_316 = arith.constant 0 : index
    %c0_317 = arith.constant 0 : index
    %304 = vector.load %arg2[%c0_315, %303, %c0_316, %c0_317] : memref<1x18x4x18xf32, #tpu.memory_space<vmem>>, vector<1x1x4x16xf32>
    %305 = vector.shape_cast %304 : vector<1x1x4x16xf32> to vector<4x16xf32>
    %c12_318 = arith.constant 12 : index
    %c32_319 = arith.constant 32 : index
    %306 = vector.load %arg6[%c12_318, %c32_319] : memref<36x256xf32, #tpu.memory_space<vmem>>, vector<4x16xf32>
    tpu.vector_store %arg6[%c12_318, %c32_319], %305 {strides = array<i32>} : memref<36x256xf32, #tpu.memory_space<vmem>>, vector<4x16xf32>,
    %c3_i32_320 = arith.constant 3 : i32
    %307 = arith.addi %0, %c3_i32_320 : i32
    %c1_i32_321 = arith.constant 1 : i32
    %308 = arith.addi %307, %c1_i32_321 : i32
    %c0_322 = arith.constant 0 : index
    %309 = arith.index_cast %308 : i32 to index
    %c0_323 = arith.constant 0 : index
    %c0_324 = arith.constant 0 : index
    %310 = vector.load %arg2[%c0_322, %309, %c0_323, %c0_324] : memref<1x18x4x18xf32, #tpu.memory_space<vmem>>, vector<1x1x4x16xf32>
    %311 = vector.shape_cast %310 : vector<1x1x4x16xf32> to vector<4x16xf32>
    %c12_325 = arith.constant 12 : index
    %c48_326 = arith.constant 48 : index
    %312 = vector.load %arg6[%c12_325, %c48_326] : memref<36x256xf32, #tpu.memory_space<vmem>>, vector<4x16xf32>
    tpu.vector_store %arg6[%c12_325, %c48_326], %311 {strides = array<i32>} : memref<36x256xf32, #tpu.memory_space<vmem>>, vector<4x16xf32>,
    %c4_i32_327 = arith.constant 4 : i32
    %313 = arith.addi %0, %c4_i32_327 : i32
    %c1_i32_328 = arith.constant 1 : i32
    %314 = arith.addi %313, %c1_i32_328 : i32
    %c0_329 = arith.constant 0 : index
    %315 = arith.index_cast %314 : i32 to index
    %c0_330 = arith.constant 0 : index
    %c0_331 = arith.constant 0 : index
    %316 = vector.load %arg2[%c0_329, %315, %c0_330, %c0_331] : memref<1x18x4x18xf32, #tpu.memory_space<vmem>>, vector<1x1x4x16xf32>
    %317 = vector.shape_cast %316 : vector<1x1x4x16xf32> to vector<4x16xf32>
    %c12_332 = arith.constant 12 : index
    %c64_333 = arith.constant 64 : index
    %318 = vector.load %arg6[%c12_332, %c64_333] : memref<36x256xf32, #tpu.memory_space<vmem>>, vector<4x16xf32>
    tpu.vector_store %arg6[%c12_332, %c64_333], %317 {strides = array<i32>} : memref<36x256xf32, #tpu.memory_space<vmem>>, vector<4x16xf32>,
    %c5_i32_334 = arith.constant 5 : i32
    %319 = arith.addi %0, %c5_i32_334 : i32
    %c1_i32_335 = arith.constant 1 : i32
    %320 = arith.addi %319, %c1_i32_335 : i32
    %c0_336 = arith.constant 0 : index
    %321 = arith.index_cast %320 : i32 to index
    %c0_337 = arith.constant 0 : index
    %c0_338 = arith.constant 0 : index
    %322 = vector.load %arg2[%c0_336, %321, %c0_337, %c0_338] : memref<1x18x4x18xf32, #tpu.memory_space<vmem>>, vector<1x1x4x16xf32>
    %323 = vector.shape_cast %322 : vector<1x1x4x16xf32> to vector<4x16xf32>
    %c12_339 = arith.constant 12 : index
    %c80_340 = arith.constant 80 : index
    %324 = vector.load %arg6[%c12_339, %c80_340] : memref<36x256xf32, #tpu.memory_space<vmem>>, vector<4x16xf32>
    tpu.vector_store %arg6[%c12_339, %c80_340], %323 {strides = array<i32>} : memref<36x256xf32, #tpu.memory_space<vmem>>, vector<4x16xf32>,
    %c6_i32_341 = arith.constant 6 : i32
    %325 = arith.addi %0, %c6_i32_341 : i32
    %c1_i32_342 = arith.constant 1 : i32
    %326 = arith.addi %325, %c1_i32_342 : i32
    %c0_343 = arith.constant 0 : index
    %327 = arith.index_cast %326 : i32 to index
    %c0_344 = arith.constant 0 : index
    %c0_345 = arith.constant 0 : index
    %328 = vector.load %arg2[%c0_343, %327, %c0_344, %c0_345] : memref<1x18x4x18xf32, #tpu.memory_space<vmem>>, vector<1x1x4x16xf32>
    %329 = vector.shape_cast %328 : vector<1x1x4x16xf32> to vector<4x16xf32>
    %c12_346 = arith.constant 12 : index
    %c96_347 = arith.constant 96 : index
    %330 = vector.load %arg6[%c12_346, %c96_347] : memref<36x256xf32, #tpu.memory_space<vmem>>, vector<4x16xf32>
    tpu.vector_store %arg6[%c12_346, %c96_347], %329 {strides = array<i32>} : memref<36x256xf32, #tpu.memory_space<vmem>>, vector<4x16xf32>,
    %c7_i32_348 = arith.constant 7 : i32
    %331 = arith.addi %0, %c7_i32_348 : i32
    %c1_i32_349 = arith.constant 1 : i32
    %332 = arith.addi %331, %c1_i32_349 : i32
    %c0_350 = arith.constant 0 : index
    %333 = arith.index_cast %332 : i32 to index
    %c0_351 = arith.constant 0 : index
    %c0_352 = arith.constant 0 : index
    %334 = vector.load %arg2[%c0_350, %333, %c0_351, %c0_352] : memref<1x18x4x18xf32, #tpu.memory_space<vmem>>, vector<1x1x4x16xf32>
    %335 = vector.shape_cast %334 : vector<1x1x4x16xf32> to vector<4x16xf32>
    %c12_353 = arith.constant 12 : index
    %c112_354 = arith.constant 112 : index
    %336 = vector.load %arg6[%c12_353, %c112_354] : memref<36x256xf32, #tpu.memory_space<vmem>>, vector<4x16xf32>
    tpu.vector_store %arg6[%c12_353, %c112_354], %335 {strides = array<i32>} : memref<36x256xf32, #tpu.memory_space<vmem>>, vector<4x16xf32>,
    %c8_i32_355 = arith.constant 8 : i32
    %337 = arith.addi %0, %c8_i32_355 : i32
    %c1_i32_356 = arith.constant 1 : i32
    %338 = arith.addi %337, %c1_i32_356 : i32
    %c0_357 = arith.constant 0 : index
    %339 = arith.index_cast %338 : i32 to index
    %c0_358 = arith.constant 0 : index
    %c0_359 = arith.constant 0 : index
    %340 = vector.load %arg2[%c0_357, %339, %c0_358, %c0_359] : memref<1x18x4x18xf32, #tpu.memory_space<vmem>>, vector<1x1x4x16xf32>
    %341 = vector.shape_cast %340 : vector<1x1x4x16xf32> to vector<4x16xf32>
    %c12_360 = arith.constant 12 : index
    %c128_361 = arith.constant 128 : index
    %342 = vector.load %arg6[%c12_360, %c128_361] : memref<36x256xf32, #tpu.memory_space<vmem>>, vector<4x16xf32>
    tpu.vector_store %arg6[%c12_360, %c128_361], %341 {strides = array<i32>} : memref<36x256xf32, #tpu.memory_space<vmem>>, vector<4x16xf32>,
    %c9_i32_362 = arith.constant 9 : i32
    %343 = arith.addi %0, %c9_i32_362 : i32
    %c1_i32_363 = arith.constant 1 : i32
    %344 = arith.addi %343, %c1_i32_363 : i32
    %c0_364 = arith.constant 0 : index
    %345 = arith.index_cast %344 : i32 to index
    %c0_365 = arith.constant 0 : index
    %c0_366 = arith.constant 0 : index
    %346 = vector.load %arg2[%c0_364, %345, %c0_365, %c0_366] : memref<1x18x4x18xf32, #tpu.memory_space<vmem>>, vector<1x1x4x16xf32>
    %347 = vector.shape_cast %346 : vector<1x1x4x16xf32> to vector<4x16xf32>
    %c12_367 = arith.constant 12 : index
    %c144_368 = arith.constant 144 : index
    %348 = vector.load %arg6[%c12_367, %c144_368] : memref<36x256xf32, #tpu.memory_space<vmem>>, vector<4x16xf32>
    tpu.vector_store %arg6[%c12_367, %c144_368], %347 {strides = array<i32>} : memref<36x256xf32, #tpu.memory_space<vmem>>, vector<4x16xf32>,
    %c10_i32_369 = arith.constant 10 : i32
    %349 = arith.addi %0, %c10_i32_369 : i32
    %c1_i32_370 = arith.constant 1 : i32
    %350 = arith.addi %349, %c1_i32_370 : i32
    %c0_371 = arith.constant 0 : index
    %351 = arith.index_cast %350 : i32 to index
    %c0_372 = arith.constant 0 : index
    %c0_373 = arith.constant 0 : index
    %352 = vector.load %arg2[%c0_371, %351, %c0_372, %c0_373] : memref<1x18x4x18xf32, #tpu.memory_space<vmem>>, vector<1x1x4x16xf32>
    %353 = vector.shape_cast %352 : vector<1x1x4x16xf32> to vector<4x16xf32>
    %c12_374 = arith.constant 12 : index
    %c160_375 = arith.constant 160 : index
    %354 = vector.load %arg6[%c12_374, %c160_375] : memref<36x256xf32, #tpu.memory_space<vmem>>, vector<4x16xf32>
    tpu.vector_store %arg6[%c12_374, %c160_375], %353 {strides = array<i32>} : memref<36x256xf32, #tpu.memory_space<vmem>>, vector<4x16xf32>,
    %c11_i32_376 = arith.constant 11 : i32
    %355 = arith.addi %0, %c11_i32_376 : i32
    %c1_i32_377 = arith.constant 1 : i32
    %356 = arith.addi %355, %c1_i32_377 : i32
    %c0_378 = arith.constant 0 : index
    %357 = arith.index_cast %356 : i32 to index
    %c0_379 = arith.constant 0 : index
    %c0_380 = arith.constant 0 : index
    %358 = vector.load %arg2[%c0_378, %357, %c0_379, %c0_380] : memref<1x18x4x18xf32, #tpu.memory_space<vmem>>, vector<1x1x4x16xf32>
    %359 = vector.shape_cast %358 : vector<1x1x4x16xf32> to vector<4x16xf32>
    %c12_381 = arith.constant 12 : index
    %c176_382 = arith.constant 176 : index
    %360 = vector.load %arg6[%c12_381, %c176_382] : memref<36x256xf32, #tpu.memory_space<vmem>>, vector<4x16xf32>
    tpu.vector_store %arg6[%c12_381, %c176_382], %359 {strides = array<i32>} : memref<36x256xf32, #tpu.memory_space<vmem>>, vector<4x16xf32>,
    %c12_i32_383 = arith.constant 12 : i32
    %361 = arith.addi %0, %c12_i32_383 : i32
    %c1_i32_384 = arith.constant 1 : i32
    %362 = arith.addi %361, %c1_i32_384 : i32
    %c0_385 = arith.constant 0 : index
    %363 = arith.index_cast %362 : i32 to index
    %c0_386 = arith.constant 0 : index
    %c0_387 = arith.constant 0 : index
    %364 = vector.load %arg2[%c0_385, %363, %c0_386, %c0_387] : memref<1x18x4x18xf32, #tpu.memory_space<vmem>>, vector<1x1x4x16xf32>
    %365 = vector.shape_cast %364 : vector<1x1x4x16xf32> to vector<4x16xf32>
    %c12_388 = arith.constant 12 : index
    %c192_389 = arith.constant 192 : index
    %366 = vector.load %arg6[%c12_388, %c192_389] : memref<36x256xf32, #tpu.memory_space<vmem>>, vector<4x16xf32>
    tpu.vector_store %arg6[%c12_388, %c192_389], %365 {strides = array<i32>} : memref<36x256xf32, #tpu.memory_space<vmem>>, vector<4x16xf32>,
    %c13_i32_390 = arith.constant 13 : i32
    %367 = arith.addi %0, %c13_i32_390 : i32
    %c1_i32_391 = arith.constant 1 : i32
    %368 = arith.addi %367, %c1_i32_391 : i32
    %c0_392 = arith.constant 0 : index
    %369 = arith.index_cast %368 : i32 to index
    %c0_393 = arith.constant 0 : index
    %c0_394 = arith.constant 0 : index
    %370 = vector.load %arg2[%c0_392, %369, %c0_393, %c0_394] : memref<1x18x4x18xf32, #tpu.memory_space<vmem>>, vector<1x1x4x16xf32>
    %371 = vector.shape_cast %370 : vector<1x1x4x16xf32> to vector<4x16xf32>
    %c12_395 = arith.constant 12 : index
    %c208_396 = arith.constant 208 : index
    %372 = vector.load %arg6[%c12_395, %c208_396] : memref<36x256xf32, #tpu.memory_space<vmem>>, vector<4x16xf32>
    tpu.vector_store %arg6[%c12_395, %c208_396], %371 {strides = array<i32>} : memref<36x256xf32, #tpu.memory_space<vmem>>, vector<4x16xf32>,
    %c14_i32_397 = arith.constant 14 : i32
    %373 = arith.addi %0, %c14_i32_397 : i32
    %c1_i32_398 = arith.constant 1 : i32
    %374 = arith.addi %373, %c1_i32_398 : i32
    %c0_399 = arith.constant 0 : index
    %375 = arith.index_cast %374 : i32 to index
    %c0_400 = arith.constant 0 : index
    %c0_401 = arith.constant 0 : index
    %376 = vector.load %arg2[%c0_399, %375, %c0_400, %c0_401] : memref<1x18x4x18xf32, #tpu.memory_space<vmem>>, vector<1x1x4x16xf32>
    %377 = vector.shape_cast %376 : vector<1x1x4x16xf32> to vector<4x16xf32>
    %c12_402 = arith.constant 12 : index
    %c224_403 = arith.constant 224 : index
    %378 = vector.load %arg6[%c12_402, %c224_403] : memref<36x256xf32, #tpu.memory_space<vmem>>, vector<4x16xf32>
    tpu.vector_store %arg6[%c12_402, %c224_403], %377 {strides = array<i32>} : memref<36x256xf32, #tpu.memory_space<vmem>>, vector<4x16xf32>,
    %c15_i32_404 = arith.constant 15 : i32
    %379 = arith.addi %0, %c15_i32_404 : i32
    %c1_i32_405 = arith.constant 1 : i32
    %380 = arith.addi %379, %c1_i32_405 : i32
    %c0_406 = arith.constant 0 : index
    %381 = arith.index_cast %380 : i32 to index
    %c0_407 = arith.constant 0 : index
    %c0_408 = arith.constant 0 : index
    %382 = vector.load %arg2[%c0_406, %381, %c0_407, %c0_408] : memref<1x18x4x18xf32, #tpu.memory_space<vmem>>, vector<1x1x4x16xf32>
    %383 = vector.shape_cast %382 : vector<1x1x4x16xf32> to vector<4x16xf32>
    %c12_409 = arith.constant 12 : index
    %c240_410 = arith.constant 240 : index
    %384 = vector.load %arg6[%c12_409, %c240_410] : memref<36x256xf32, #tpu.memory_space<vmem>>, vector<4x16xf32>
    tpu.vector_store %arg6[%c12_409, %c240_410], %383 {strides = array<i32>} : memref<36x256xf32, #tpu.memory_space<vmem>>, vector<4x16xf32>,
    %c0_i32_411 = arith.constant 0 : i32
    %385 = arith.addi %0, %c0_i32_411 : i32
    %c1_i32_412 = arith.constant 1 : i32
    %386 = arith.addi %385, %c1_i32_412 : i32
    %c0_413 = arith.constant 0 : index
    %387 = arith.index_cast %386 : i32 to index
    %c0_414 = arith.constant 0 : index
    %c1_415 = arith.constant 1 : index
    %388 = vector.load %arg2[%c0_413, %387, %c0_414, %c1_415] : memref<1x18x4x18xf32, #tpu.memory_space<vmem>>, vector<1x1x4x16xf32>
    %389 = vector.shape_cast %388 : vector<1x1x4x16xf32> to vector<4x16xf32>
    %c16_416 = arith.constant 16 : index
    %c0_417 = arith.constant 0 : index
    %390 = vector.load %arg6[%c16_416, %c0_417] : memref<36x256xf32, #tpu.memory_space<vmem>>, vector<4x16xf32>
    tpu.vector_store %arg6[%c16_416, %c0_417], %389 {strides = array<i32>} : memref<36x256xf32, #tpu.memory_space<vmem>>, vector<4x16xf32>,
    %c1_i32_418 = arith.constant 1 : i32
    %391 = arith.addi %0, %c1_i32_418 : i32
    %c1_i32_419 = arith.constant 1 : i32
    %392 = arith.addi %391, %c1_i32_419 : i32
    %c0_420 = arith.constant 0 : index
    %393 = arith.index_cast %392 : i32 to index
    %c0_421 = arith.constant 0 : index
    %c1_422 = arith.constant 1 : index
    %394 = vector.load %arg2[%c0_420, %393, %c0_421, %c1_422] : memref<1x18x4x18xf32, #tpu.memory_space<vmem>>, vector<1x1x4x16xf32>
    %395 = vector.shape_cast %394 : vector<1x1x4x16xf32> to vector<4x16xf32>
    %c16_423 = arith.constant 16 : index
    %c16_424 = arith.constant 16 : index
    %396 = vector.load %arg6[%c16_423, %c16_424] : memref<36x256xf32, #tpu.memory_space<vmem>>, vector<4x16xf32>
    tpu.vector_store %arg6[%c16_423, %c16_424], %395 {strides = array<i32>} : memref<36x256xf32, #tpu.memory_space<vmem>>, vector<4x16xf32>,
    %c2_i32_425 = arith.constant 2 : i32
    %397 = arith.addi %0, %c2_i32_425 : i32
    %c1_i32_426 = arith.constant 1 : i32
    %398 = arith.addi %397, %c1_i32_426 : i32
    %c0_427 = arith.constant 0 : index
    %399 = arith.index_cast %398 : i32 to index
    %c0_428 = arith.constant 0 : index
    %c1_429 = arith.constant 1 : index
    %400 = vector.load %arg2[%c0_427, %399, %c0_428, %c1_429] : memref<1x18x4x18xf32, #tpu.memory_space<vmem>>, vector<1x1x4x16xf32>
    %401 = vector.shape_cast %400 : vector<1x1x4x16xf32> to vector<4x16xf32>
    %c16_430 = arith.constant 16 : index
    %c32_431 = arith.constant 32 : index
    %402 = vector.load %arg6[%c16_430, %c32_431] : memref<36x256xf32, #tpu.memory_space<vmem>>, vector<4x16xf32>
    tpu.vector_store %arg6[%c16_430, %c32_431], %401 {strides = array<i32>} : memref<36x256xf32, #tpu.memory_space<vmem>>, vector<4x16xf32>,
    %c3_i32_432 = arith.constant 3 : i32
    %403 = arith.addi %0, %c3_i32_432 : i32
    %c1_i32_433 = arith.constant 1 : i32
    %404 = arith.addi %403, %c1_i32_433 : i32
    %c0_434 = arith.constant 0 : index
    %405 = arith.index_cast %404 : i32 to index
    %c0_435 = arith.constant 0 : index
    %c1_436 = arith.constant 1 : index
    %406 = vector.load %arg2[%c0_434, %405, %c0_435, %c1_436] : memref<1x18x4x18xf32, #tpu.memory_space<vmem>>, vector<1x1x4x16xf32>
    %407 = vector.shape_cast %406 : vector<1x1x4x16xf32> to vector<4x16xf32>
    %c16_437 = arith.constant 16 : index
    %c48_438 = arith.constant 48 : index
    %408 = vector.load %arg6[%c16_437, %c48_438] : memref<36x256xf32, #tpu.memory_space<vmem>>, vector<4x16xf32>
    tpu.vector_store %arg6[%c16_437, %c48_438], %407 {strides = array<i32>} : memref<36x256xf32, #tpu.memory_space<vmem>>, vector<4x16xf32>,
    %c4_i32_439 = arith.constant 4 : i32
    %409 = arith.addi %0, %c4_i32_439 : i32
    %c1_i32_440 = arith.constant 1 : i32
    %410 = arith.addi %409, %c1_i32_440 : i32
    %c0_441 = arith.constant 0 : index
    %411 = arith.index_cast %410 : i32 to index
    %c0_442 = arith.constant 0 : index
    %c1_443 = arith.constant 1 : index
    %412 = vector.load %arg2[%c0_441, %411, %c0_442, %c1_443] : memref<1x18x4x18xf32, #tpu.memory_space<vmem>>, vector<1x1x4x16xf32>
    %413 = vector.shape_cast %412 : vector<1x1x4x16xf32> to vector<4x16xf32>
    %c16_444 = arith.constant 16 : index
    %c64_445 = arith.constant 64 : index
    %414 = vector.load %arg6[%c16_444, %c64_445] : memref<36x256xf32, #tpu.memory_space<vmem>>, vector<4x16xf32>
    tpu.vector_store %arg6[%c16_444, %c64_445], %413 {strides = array<i32>} : memref<36x256xf32, #tpu.memory_space<vmem>>, vector<4x16xf32>,
    %c5_i32_446 = arith.constant 5 : i32
    %415 = arith.addi %0, %c5_i32_446 : i32
    %c1_i32_447 = arith.constant 1 : i32
    %416 = arith.addi %415, %c1_i32_447 : i32
    %c0_448 = arith.constant 0 : index
    %417 = arith.index_cast %416 : i32 to index
    %c0_449 = arith.constant 0 : index
    %c1_450 = arith.constant 1 : index
    %418 = vector.load %arg2[%c0_448, %417, %c0_449, %c1_450] : memref<1x18x4x18xf32, #tpu.memory_space<vmem>>, vector<1x1x4x16xf32>
    %419 = vector.shape_cast %418 : vector<1x1x4x16xf32> to vector<4x16xf32>
    %c16_451 = arith.constant 16 : index
    %c80_452 = arith.constant 80 : index
    %420 = vector.load %arg6[%c16_451, %c80_452] : memref<36x256xf32, #tpu.memory_space<vmem>>, vector<4x16xf32>
    tpu.vector_store %arg6[%c16_451, %c80_452], %419 {strides = array<i32>} : memref<36x256xf32, #tpu.memory_space<vmem>>, vector<4x16xf32>,
    %c6_i32_453 = arith.constant 6 : i32
    %421 = arith.addi %0, %c6_i32_453 : i32
    %c1_i32_454 = arith.constant 1 : i32
    %422 = arith.addi %421, %c1_i32_454 : i32
    %c0_455 = arith.constant 0 : index
    %423 = arith.index_cast %422 : i32 to index
    %c0_456 = arith.constant 0 : index
    %c1_457 = arith.constant 1 : index
    %424 = vector.load %arg2[%c0_455, %423, %c0_456, %c1_457] : memref<1x18x4x18xf32, #tpu.memory_space<vmem>>, vector<1x1x4x16xf32>
    %425 = vector.shape_cast %424 : vector<1x1x4x16xf32> to vector<4x16xf32>
    %c16_458 = arith.constant 16 : index
    %c96_459 = arith.constant 96 : index
    %426 = vector.load %arg6[%c16_458, %c96_459] : memref<36x256xf32, #tpu.memory_space<vmem>>, vector<4x16xf32>
    tpu.vector_store %arg6[%c16_458, %c96_459], %425 {strides = array<i32>} : memref<36x256xf32, #tpu.memory_space<vmem>>, vector<4x16xf32>,
    %c7_i32_460 = arith.constant 7 : i32
    %427 = arith.addi %0, %c7_i32_460 : i32
    %c1_i32_461 = arith.constant 1 : i32
    %428 = arith.addi %427, %c1_i32_461 : i32
    %c0_462 = arith.constant 0 : index
    %429 = arith.index_cast %428 : i32 to index
    %c0_463 = arith.constant 0 : index
    %c1_464 = arith.constant 1 : index
    %430 = vector.load %arg2[%c0_462, %429, %c0_463, %c1_464] : memref<1x18x4x18xf32, #tpu.memory_space<vmem>>, vector<1x1x4x16xf32>
    %431 = vector.shape_cast %430 : vector<1x1x4x16xf32> to vector<4x16xf32>
    %c16_465 = arith.constant 16 : index
    %c112_466 = arith.constant 112 : index
    %432 = vector.load %arg6[%c16_465, %c112_466] : memref<36x256xf32, #tpu.memory_space<vmem>>, vector<4x16xf32>
    tpu.vector_store %arg6[%c16_465, %c112_466], %431 {strides = array<i32>} : memref<36x256xf32, #tpu.memory_space<vmem>>, vector<4x16xf32>,
    %c8_i32_467 = arith.constant 8 : i32
    %433 = arith.addi %0, %c8_i32_467 : i32
    %c1_i32_468 = arith.constant 1 : i32
    %434 = arith.addi %433, %c1_i32_468 : i32
    %c0_469 = arith.constant 0 : index
    %435 = arith.index_cast %434 : i32 to index
    %c0_470 = arith.constant 0 : index
    %c1_471 = arith.constant 1 : index
    %436 = vector.load %arg2[%c0_469, %435, %c0_470, %c1_471] : memref<1x18x4x18xf32, #tpu.memory_space<vmem>>, vector<1x1x4x16xf32>
    %437 = vector.shape_cast %436 : vector<1x1x4x16xf32> to vector<4x16xf32>
    %c16_472 = arith.constant 16 : index
    %c128_473 = arith.constant 128 : index
    %438 = vector.load %arg6[%c16_472, %c128_473] : memref<36x256xf32, #tpu.memory_space<vmem>>, vector<4x16xf32>
    tpu.vector_store %arg6[%c16_472, %c128_473], %437 {strides = array<i32>} : memref<36x256xf32, #tpu.memory_space<vmem>>, vector<4x16xf32>,
    %c9_i32_474 = arith.constant 9 : i32
    %439 = arith.addi %0, %c9_i32_474 : i32
    %c1_i32_475 = arith.constant 1 : i32
    %440 = arith.addi %439, %c1_i32_475 : i32
    %c0_476 = arith.constant 0 : index
    %441 = arith.index_cast %440 : i32 to index
    %c0_477 = arith.constant 0 : index
    %c1_478 = arith.constant 1 : index
    %442 = vector.load %arg2[%c0_476, %441, %c0_477, %c1_478] : memref<1x18x4x18xf32, #tpu.memory_space<vmem>>, vector<1x1x4x16xf32>
    %443 = vector.shape_cast %442 : vector<1x1x4x16xf32> to vector<4x16xf32>
    %c16_479 = arith.constant 16 : index
    %c144_480 = arith.constant 144 : index
    %444 = vector.load %arg6[%c16_479, %c144_480] : memref<36x256xf32, #tpu.memory_space<vmem>>, vector<4x16xf32>
    tpu.vector_store %arg6[%c16_479, %c144_480], %443 {strides = array<i32>} : memref<36x256xf32, #tpu.memory_space<vmem>>, vector<4x16xf32>,
    %c10_i32_481 = arith.constant 10 : i32
    %445 = arith.addi %0, %c10_i32_481 : i32
    %c1_i32_482 = arith.constant 1 : i32
    %446 = arith.addi %445, %c1_i32_482 : i32
    %c0_483 = arith.constant 0 : index
    %447 = arith.index_cast %446 : i32 to index
    %c0_484 = arith.constant 0 : index
    %c1_485 = arith.constant 1 : index
    %448 = vector.load %arg2[%c0_483, %447, %c0_484, %c1_485] : memref<1x18x4x18xf32, #tpu.memory_space<vmem>>, vector<1x1x4x16xf32>
    %449 = vector.shape_cast %448 : vector<1x1x4x16xf32> to vector<4x16xf32>
    %c16_486 = arith.constant 16 : index
    %c160_487 = arith.constant 160 : index
    %450 = vector.load %arg6[%c16_486, %c160_487] : memref<36x256xf32, #tpu.memory_space<vmem>>, vector<4x16xf32>
    tpu.vector_store %arg6[%c16_486, %c160_487], %449 {strides = array<i32>} : memref<36x256xf32, #tpu.memory_space<vmem>>, vector<4x16xf32>,
    %c11_i32_488 = arith.constant 11 : i32
    %451 = arith.addi %0, %c11_i32_488 : i32
    %c1_i32_489 = arith.constant 1 : i32
    %452 = arith.addi %451, %c1_i32_489 : i32
    %c0_490 = arith.constant 0 : index
    %453 = arith.index_cast %452 : i32 to index
    %c0_491 = arith.constant 0 : index
    %c1_492 = arith.constant 1 : index
    %454 = vector.load %arg2[%c0_490, %453, %c0_491, %c1_492] : memref<1x18x4x18xf32, #tpu.memory_space<vmem>>, vector<1x1x4x16xf32>
    %455 = vector.shape_cast %454 : vector<1x1x4x16xf32> to vector<4x16xf32>
    %c16_493 = arith.constant 16 : index
    %c176_494 = arith.constant 176 : index
    %456 = vector.load %arg6[%c16_493, %c176_494] : memref<36x256xf32, #tpu.memory_space<vmem>>, vector<4x16xf32>
    tpu.vector_store %arg6[%c16_493, %c176_494], %455 {strides = array<i32>} : memref<36x256xf32, #tpu.memory_space<vmem>>, vector<4x16xf32>,
    %c12_i32_495 = arith.constant 12 : i32
    %457 = arith.addi %0, %c12_i32_495 : i32
    %c1_i32_496 = arith.constant 1 : i32
    %458 = arith.addi %457, %c1_i32_496 : i32
    %c0_497 = arith.constant 0 : index
    %459 = arith.index_cast %458 : i32 to index
    %c0_498 = arith.constant 0 : index
    %c1_499 = arith.constant 1 : index
    %460 = vector.load %arg2[%c0_497, %459, %c0_498, %c1_499] : memref<1x18x4x18xf32, #tpu.memory_space<vmem>>, vector<1x1x4x16xf32>
    %461 = vector.shape_cast %460 : vector<1x1x4x16xf32> to vector<4x16xf32>
    %c16_500 = arith.constant 16 : index
    %c192_501 = arith.constant 192 : index
    %462 = vector.load %arg6[%c16_500, %c192_501] : memref<36x256xf32, #tpu.memory_space<vmem>>, vector<4x16xf32>
    tpu.vector_store %arg6[%c16_500, %c192_501], %461 {strides = array<i32>} : memref<36x256xf32, #tpu.memory_space<vmem>>, vector<4x16xf32>,
    %c13_i32_502 = arith.constant 13 : i32
    %463 = arith.addi %0, %c13_i32_502 : i32
    %c1_i32_503 = arith.constant 1 : i32
    %464 = arith.addi %463, %c1_i32_503 : i32
    %c0_504 = arith.constant 0 : index
    %465 = arith.index_cast %464 : i32 to index
    %c0_505 = arith.constant 0 : index
    %c1_506 = arith.constant 1 : index
    %466 = vector.load %arg2[%c0_504, %465, %c0_505, %c1_506] : memref<1x18x4x18xf32, #tpu.memory_space<vmem>>, vector<1x1x4x16xf32>
    %467 = vector.shape_cast %466 : vector<1x1x4x16xf32> to vector<4x16xf32>
    %c16_507 = arith.constant 16 : index
    %c208_508 = arith.constant 208 : index
    %468 = vector.load %arg6[%c16_507, %c208_508] : memref<36x256xf32, #tpu.memory_space<vmem>>, vector<4x16xf32>
    tpu.vector_store %arg6[%c16_507, %c208_508], %467 {strides = array<i32>} : memref<36x256xf32, #tpu.memory_space<vmem>>, vector<4x16xf32>,
    %c14_i32_509 = arith.constant 14 : i32
    %469 = arith.addi %0, %c14_i32_509 : i32
    %c1_i32_510 = arith.constant 1 : i32
    %470 = arith.addi %469, %c1_i32_510 : i32
    %c0_511 = arith.constant 0 : index
    %471 = arith.index_cast %470 : i32 to index
    %c0_512 = arith.constant 0 : index
    %c1_513 = arith.constant 1 : index
    %472 = vector.load %arg2[%c0_511, %471, %c0_512, %c1_513] : memref<1x18x4x18xf32, #tpu.memory_space<vmem>>, vector<1x1x4x16xf32>
    %473 = vector.shape_cast %472 : vector<1x1x4x16xf32> to vector<4x16xf32>
    %c16_514 = arith.constant 16 : index
    %c224_515 = arith.constant 224 : index
    %474 = vector.load %arg6[%c16_514, %c224_515] : memref<36x256xf32, #tpu.memory_space<vmem>>, vector<4x16xf32>
    tpu.vector_store %arg6[%c16_514, %c224_515], %473 {strides = array<i32>} : memref<36x256xf32, #tpu.memory_space<vmem>>, vector<4x16xf32>,
    %c15_i32_516 = arith.constant 15 : i32
    %475 = arith.addi %0, %c15_i32_516 : i32
    %c1_i32_517 = arith.constant 1 : i32
    %476 = arith.addi %475, %c1_i32_517 : i32
    %c0_518 = arith.constant 0 : index
    %477 = arith.index_cast %476 : i32 to index
    %c0_519 = arith.constant 0 : index
    %c1_520 = arith.constant 1 : index
    %478 = vector.load %arg2[%c0_518, %477, %c0_519, %c1_520] : memref<1x18x4x18xf32, #tpu.memory_space<vmem>>, vector<1x1x4x16xf32>
    %479 = vector.shape_cast %478 : vector<1x1x4x16xf32> to vector<4x16xf32>
    %c16_521 = arith.constant 16 : index
    %c240_522 = arith.constant 240 : index
    %480 = vector.load %arg6[%c16_521, %c240_522] : memref<36x256xf32, #tpu.memory_space<vmem>>, vector<4x16xf32>
    tpu.vector_store %arg6[%c16_521, %c240_522], %479 {strides = array<i32>} : memref<36x256xf32, #tpu.memory_space<vmem>>, vector<4x16xf32>,
    %c0_i32_523 = arith.constant 0 : i32
    %481 = arith.addi %0, %c0_i32_523 : i32
    %c1_i32_524 = arith.constant 1 : i32
    %482 = arith.addi %481, %c1_i32_524 : i32
    %c0_525 = arith.constant 0 : index
    %483 = arith.index_cast %482 : i32 to index
    %c0_526 = arith.constant 0 : index
    %c2_527 = arith.constant 2 : index
    %484 = vector.load %arg2[%c0_525, %483, %c0_526, %c2_527] : memref<1x18x4x18xf32, #tpu.memory_space<vmem>>, vector<1x1x4x16xf32>
    %485 = vector.shape_cast %484 : vector<1x1x4x16xf32> to vector<4x16xf32>
    %c20 = arith.constant 20 : index
    %c0_528 = arith.constant 0 : index
    %486 = vector.load %arg6[%c20, %c0_528] : memref<36x256xf32, #tpu.memory_space<vmem>>, vector<4x16xf32>
    tpu.vector_store %arg6[%c20, %c0_528], %485 {strides = array<i32>} : memref<36x256xf32, #tpu.memory_space<vmem>>, vector<4x16xf32>,
    %c1_i32_529 = arith.constant 1 : i32
    %487 = arith.addi %0, %c1_i32_529 : i32
    %c1_i32_530 = arith.constant 1 : i32
    %488 = arith.addi %487, %c1_i32_530 : i32
    %c0_531 = arith.constant 0 : index
    %489 = arith.index_cast %488 : i32 to index
    %c0_532 = arith.constant 0 : index
    %c2_533 = arith.constant 2 : index
    %490 = vector.load %arg2[%c0_531, %489, %c0_532, %c2_533] : memref<1x18x4x18xf32, #tpu.memory_space<vmem>>, vector<1x1x4x16xf32>
    %491 = vector.shape_cast %490 : vector<1x1x4x16xf32> to vector<4x16xf32>
    %c20_534 = arith.constant 20 : index
    %c16_535 = arith.constant 16 : index
    %492 = vector.load %arg6[%c20_534, %c16_535] : memref<36x256xf32, #tpu.memory_space<vmem>>, vector<4x16xf32>
    tpu.vector_store %arg6[%c20_534, %c16_535], %491 {strides = array<i32>} : memref<36x256xf32, #tpu.memory_space<vmem>>, vector<4x16xf32>,
    %c2_i32_536 = arith.constant 2 : i32
    %493 = arith.addi %0, %c2_i32_536 : i32
    %c1_i32_537 = arith.constant 1 : i32
    %494 = arith.addi %493, %c1_i32_537 : i32
    %c0_538 = arith.constant 0 : index
    %495 = arith.index_cast %494 : i32 to index
    %c0_539 = arith.constant 0 : index
    %c2_540 = arith.constant 2 : index
    %496 = vector.load %arg2[%c0_538, %495, %c0_539, %c2_540] : memref<1x18x4x18xf32, #tpu.memory_space<vmem>>, vector<1x1x4x16xf32>
    %497 = vector.shape_cast %496 : vector<1x1x4x16xf32> to vector<4x16xf32>
    %c20_541 = arith.constant 20 : index
    %c32_542 = arith.constant 32 : index
    %498 = vector.load %arg6[%c20_541, %c32_542] : memref<36x256xf32, #tpu.memory_space<vmem>>, vector<4x16xf32>
    tpu.vector_store %arg6[%c20_541, %c32_542], %497 {strides = array<i32>} : memref<36x256xf32, #tpu.memory_space<vmem>>, vector<4x16xf32>,
    %c3_i32_543 = arith.constant 3 : i32
    %499 = arith.addi %0, %c3_i32_543 : i32
    %c1_i32_544 = arith.constant 1 : i32
    %500 = arith.addi %499, %c1_i32_544 : i32
    %c0_545 = arith.constant 0 : index
    %501 = arith.index_cast %500 : i32 to index
    %c0_546 = arith.constant 0 : index
    %c2_547 = arith.constant 2 : index
    %502 = vector.load %arg2[%c0_545, %501, %c0_546, %c2_547] : memref<1x18x4x18xf32, #tpu.memory_space<vmem>>, vector<1x1x4x16xf32>
    %503 = vector.shape_cast %502 : vector<1x1x4x16xf32> to vector<4x16xf32>
    %c20_548 = arith.constant 20 : index
    %c48_549 = arith.constant 48 : index
    %504 = vector.load %arg6[%c20_548, %c48_549] : memref<36x256xf32, #tpu.memory_space<vmem>>, vector<4x16xf32>
    tpu.vector_store %arg6[%c20_548, %c48_549], %503 {strides = array<i32>} : memref<36x256xf32, #tpu.memory_space<vmem>>, vector<4x16xf32>,
    %c4_i32_550 = arith.constant 4 : i32
    %505 = arith.addi %0, %c4_i32_550 : i32
    %c1_i32_551 = arith.constant 1 : i32
    %506 = arith.addi %505, %c1_i32_551 : i32
    %c0_552 = arith.constant 0 : index
    %507 = arith.index_cast %506 : i32 to index
    %c0_553 = arith.constant 0 : index
    %c2_554 = arith.constant 2 : index
    %508 = vector.load %arg2[%c0_552, %507, %c0_553, %c2_554] : memref<1x18x4x18xf32, #tpu.memory_space<vmem>>, vector<1x1x4x16xf32>
    %509 = vector.shape_cast %508 : vector<1x1x4x16xf32> to vector<4x16xf32>
    %c20_555 = arith.constant 20 : index
    %c64_556 = arith.constant 64 : index
    %510 = vector.load %arg6[%c20_555, %c64_556] : memref<36x256xf32, #tpu.memory_space<vmem>>, vector<4x16xf32>
    tpu.vector_store %arg6[%c20_555, %c64_556], %509 {strides = array<i32>} : memref<36x256xf32, #tpu.memory_space<vmem>>, vector<4x16xf32>,
    %c5_i32_557 = arith.constant 5 : i32
    %511 = arith.addi %0, %c5_i32_557 : i32
    %c1_i32_558 = arith.constant 1 : i32
    %512 = arith.addi %511, %c1_i32_558 : i32
    %c0_559 = arith.constant 0 : index
    %513 = arith.index_cast %512 : i32 to index
    %c0_560 = arith.constant 0 : index
    %c2_561 = arith.constant 2 : index
    %514 = vector.load %arg2[%c0_559, %513, %c0_560, %c2_561] : memref<1x18x4x18xf32, #tpu.memory_space<vmem>>, vector<1x1x4x16xf32>
    %515 = vector.shape_cast %514 : vector<1x1x4x16xf32> to vector<4x16xf32>
    %c20_562 = arith.constant 20 : index
    %c80_563 = arith.constant 80 : index
    %516 = vector.load %arg6[%c20_562, %c80_563] : memref<36x256xf32, #tpu.memory_space<vmem>>, vector<4x16xf32>
    tpu.vector_store %arg6[%c20_562, %c80_563], %515 {strides = array<i32>} : memref<36x256xf32, #tpu.memory_space<vmem>>, vector<4x16xf32>,
    %c6_i32_564 = arith.constant 6 : i32
    %517 = arith.addi %0, %c6_i32_564 : i32
    %c1_i32_565 = arith.constant 1 : i32
    %518 = arith.addi %517, %c1_i32_565 : i32
    %c0_566 = arith.constant 0 : index
    %519 = arith.index_cast %518 : i32 to index
    %c0_567 = arith.constant 0 : index
    %c2_568 = arith.constant 2 : index
    %520 = vector.load %arg2[%c0_566, %519, %c0_567, %c2_568] : memref<1x18x4x18xf32, #tpu.memory_space<vmem>>, vector<1x1x4x16xf32>
    %521 = vector.shape_cast %520 : vector<1x1x4x16xf32> to vector<4x16xf32>
    %c20_569 = arith.constant 20 : index
    %c96_570 = arith.constant 96 : index
    %522 = vector.load %arg6[%c20_569, %c96_570] : memref<36x256xf32, #tpu.memory_space<vmem>>, vector<4x16xf32>
    tpu.vector_store %arg6[%c20_569, %c96_570], %521 {strides = array<i32>} : memref<36x256xf32, #tpu.memory_space<vmem>>, vector<4x16xf32>,
    %c7_i32_571 = arith.constant 7 : i32
    %523 = arith.addi %0, %c7_i32_571 : i32
    %c1_i32_572 = arith.constant 1 : i32
    %524 = arith.addi %523, %c1_i32_572 : i32
    %c0_573 = arith.constant 0 : index
    %525 = arith.index_cast %524 : i32 to index
    %c0_574 = arith.constant 0 : index
    %c2_575 = arith.constant 2 : index
    %526 = vector.load %arg2[%c0_573, %525, %c0_574, %c2_575] : memref<1x18x4x18xf32, #tpu.memory_space<vmem>>, vector<1x1x4x16xf32>
    %527 = vector.shape_cast %526 : vector<1x1x4x16xf32> to vector<4x16xf32>
    %c20_576 = arith.constant 20 : index
    %c112_577 = arith.constant 112 : index
    %528 = vector.load %arg6[%c20_576, %c112_577] : memref<36x256xf32, #tpu.memory_space<vmem>>, vector<4x16xf32>
    tpu.vector_store %arg6[%c20_576, %c112_577], %527 {strides = array<i32>} : memref<36x256xf32, #tpu.memory_space<vmem>>, vector<4x16xf32>,
    %c8_i32_578 = arith.constant 8 : i32
    %529 = arith.addi %0, %c8_i32_578 : i32
    %c1_i32_579 = arith.constant 1 : i32
    %530 = arith.addi %529, %c1_i32_579 : i32
    %c0_580 = arith.constant 0 : index
    %531 = arith.index_cast %530 : i32 to index
    %c0_581 = arith.constant 0 : index
    %c2_582 = arith.constant 2 : index
    %532 = vector.load %arg2[%c0_580, %531, %c0_581, %c2_582] : memref<1x18x4x18xf32, #tpu.memory_space<vmem>>, vector<1x1x4x16xf32>
    %533 = vector.shape_cast %532 : vector<1x1x4x16xf32> to vector<4x16xf32>
    %c20_583 = arith.constant 20 : index
    %c128_584 = arith.constant 128 : index
    %534 = vector.load %arg6[%c20_583, %c128_584] : memref<36x256xf32, #tpu.memory_space<vmem>>, vector<4x16xf32>
    tpu.vector_store %arg6[%c20_583, %c128_584], %533 {strides = array<i32>} : memref<36x256xf32, #tpu.memory_space<vmem>>, vector<4x16xf32>,
    %c9_i32_585 = arith.constant 9 : i32
    %535 = arith.addi %0, %c9_i32_585 : i32
    %c1_i32_586 = arith.constant 1 : i32
    %536 = arith.addi %535, %c1_i32_586 : i32
    %c0_587 = arith.constant 0 : index
    %537 = arith.index_cast %536 : i32 to index
    %c0_588 = arith.constant 0 : index
    %c2_589 = arith.constant 2 : index
    %538 = vector.load %arg2[%c0_587, %537, %c0_588, %c2_589] : memref<1x18x4x18xf32, #tpu.memory_space<vmem>>, vector<1x1x4x16xf32>
    %539 = vector.shape_cast %538 : vector<1x1x4x16xf32> to vector<4x16xf32>
    %c20_590 = arith.constant 20 : index
    %c144_591 = arith.constant 144 : index
    %540 = vector.load %arg6[%c20_590, %c144_591] : memref<36x256xf32, #tpu.memory_space<vmem>>, vector<4x16xf32>
    tpu.vector_store %arg6[%c20_590, %c144_591], %539 {strides = array<i32>} : memref<36x256xf32, #tpu.memory_space<vmem>>, vector<4x16xf32>,
    %c10_i32_592 = arith.constant 10 : i32
    %541 = arith.addi %0, %c10_i32_592 : i32
    %c1_i32_593 = arith.constant 1 : i32
    %542 = arith.addi %541, %c1_i32_593 : i32
    %c0_594 = arith.constant 0 : index
    %543 = arith.index_cast %542 : i32 to index
    %c0_595 = arith.constant 0 : index
    %c2_596 = arith.constant 2 : index
    %544 = vector.load %arg2[%c0_594, %543, %c0_595, %c2_596] : memref<1x18x4x18xf32, #tpu.memory_space<vmem>>, vector<1x1x4x16xf32>
    %545 = vector.shape_cast %544 : vector<1x1x4x16xf32> to vector<4x16xf32>
    %c20_597 = arith.constant 20 : index
    %c160_598 = arith.constant 160 : index
    %546 = vector.load %arg6[%c20_597, %c160_598] : memref<36x256xf32, #tpu.memory_space<vmem>>, vector<4x16xf32>
    tpu.vector_store %arg6[%c20_597, %c160_598], %545 {strides = array<i32>} : memref<36x256xf32, #tpu.memory_space<vmem>>, vector<4x16xf32>,
    %c11_i32_599 = arith.constant 11 : i32
    %547 = arith.addi %0, %c11_i32_599 : i32
    %c1_i32_600 = arith.constant 1 : i32
    %548 = arith.addi %547, %c1_i32_600 : i32
    %c0_601 = arith.constant 0 : index
    %549 = arith.index_cast %548 : i32 to index
    %c0_602 = arith.constant 0 : index
    %c2_603 = arith.constant 2 : index
    %550 = vector.load %arg2[%c0_601, %549, %c0_602, %c2_603] : memref<1x18x4x18xf32, #tpu.memory_space<vmem>>, vector<1x1x4x16xf32>
    %551 = vector.shape_cast %550 : vector<1x1x4x16xf32> to vector<4x16xf32>
    %c20_604 = arith.constant 20 : index
    %c176_605 = arith.constant 176 : index
    %552 = vector.load %arg6[%c20_604, %c176_605] : memref<36x256xf32, #tpu.memory_space<vmem>>, vector<4x16xf32>
    tpu.vector_store %arg6[%c20_604, %c176_605], %551 {strides = array<i32>} : memref<36x256xf32, #tpu.memory_space<vmem>>, vector<4x16xf32>,
    %c12_i32_606 = arith.constant 12 : i32
    %553 = arith.addi %0, %c12_i32_606 : i32
    %c1_i32_607 = arith.constant 1 : i32
    %554 = arith.addi %553, %c1_i32_607 : i32
    %c0_608 = arith.constant 0 : index
    %555 = arith.index_cast %554 : i32 to index
    %c0_609 = arith.constant 0 : index
    %c2_610 = arith.constant 2 : index
    %556 = vector.load %arg2[%c0_608, %555, %c0_609, %c2_610] : memref<1x18x4x18xf32, #tpu.memory_space<vmem>>, vector<1x1x4x16xf32>
    %557 = vector.shape_cast %556 : vector<1x1x4x16xf32> to vector<4x16xf32>
    %c20_611 = arith.constant 20 : index
    %c192_612 = arith.constant 192 : index
    %558 = vector.load %arg6[%c20_611, %c192_612] : memref<36x256xf32, #tpu.memory_space<vmem>>, vector<4x16xf32>
    tpu.vector_store %arg6[%c20_611, %c192_612], %557 {strides = array<i32>} : memref<36x256xf32, #tpu.memory_space<vmem>>, vector<4x16xf32>,
    %c13_i32_613 = arith.constant 13 : i32
    %559 = arith.addi %0, %c13_i32_613 : i32
    %c1_i32_614 = arith.constant 1 : i32
    %560 = arith.addi %559, %c1_i32_614 : i32
    %c0_615 = arith.constant 0 : index
    %561 = arith.index_cast %560 : i32 to index
    %c0_616 = arith.constant 0 : index
    %c2_617 = arith.constant 2 : index
    %562 = vector.load %arg2[%c0_615, %561, %c0_616, %c2_617] : memref<1x18x4x18xf32, #tpu.memory_space<vmem>>, vector<1x1x4x16xf32>
    %563 = vector.shape_cast %562 : vector<1x1x4x16xf32> to vector<4x16xf32>
    %c20_618 = arith.constant 20 : index
    %c208_619 = arith.constant 208 : index
    %564 = vector.load %arg6[%c20_618, %c208_619] : memref<36x256xf32, #tpu.memory_space<vmem>>, vector<4x16xf32>
    tpu.vector_store %arg6[%c20_618, %c208_619], %563 {strides = array<i32>} : memref<36x256xf32, #tpu.memory_space<vmem>>, vector<4x16xf32>,
    %c14_i32_620 = arith.constant 14 : i32
    %565 = arith.addi %0, %c14_i32_620 : i32
    %c1_i32_621 = arith.constant 1 : i32
    %566 = arith.addi %565, %c1_i32_621 : i32
    %c0_622 = arith.constant 0 : index
    %567 = arith.index_cast %566 : i32 to index
    %c0_623 = arith.constant 0 : index
    %c2_624 = arith.constant 2 : index
    %568 = vector.load %arg2[%c0_622, %567, %c0_623, %c2_624] : memref<1x18x4x18xf32, #tpu.memory_space<vmem>>, vector<1x1x4x16xf32>
    %569 = vector.shape_cast %568 : vector<1x1x4x16xf32> to vector<4x16xf32>
    %c20_625 = arith.constant 20 : index
    %c224_626 = arith.constant 224 : index
    %570 = vector.load %arg6[%c20_625, %c224_626] : memref<36x256xf32, #tpu.memory_space<vmem>>, vector<4x16xf32>
    tpu.vector_store %arg6[%c20_625, %c224_626], %569 {strides = array<i32>} : memref<36x256xf32, #tpu.memory_space<vmem>>, vector<4x16xf32>,
    %c15_i32_627 = arith.constant 15 : i32
    %571 = arith.addi %0, %c15_i32_627 : i32
    %c1_i32_628 = arith.constant 1 : i32
    %572 = arith.addi %571, %c1_i32_628 : i32
    %c0_629 = arith.constant 0 : index
    %573 = arith.index_cast %572 : i32 to index
    %c0_630 = arith.constant 0 : index
    %c2_631 = arith.constant 2 : index
    %574 = vector.load %arg2[%c0_629, %573, %c0_630, %c2_631] : memref<1x18x4x18xf32, #tpu.memory_space<vmem>>, vector<1x1x4x16xf32>
    %575 = vector.shape_cast %574 : vector<1x1x4x16xf32> to vector<4x16xf32>
    %c20_632 = arith.constant 20 : index
    %c240_633 = arith.constant 240 : index
    %576 = vector.load %arg6[%c20_632, %c240_633] : memref<36x256xf32, #tpu.memory_space<vmem>>, vector<4x16xf32>
    tpu.vector_store %arg6[%c20_632, %c240_633], %575 {strides = array<i32>} : memref<36x256xf32, #tpu.memory_space<vmem>>, vector<4x16xf32>,
    %c0_i32_634 = arith.constant 0 : i32
    %577 = arith.addi %0, %c0_i32_634 : i32
    %c2_i32_635 = arith.constant 2 : i32
    %578 = arith.addi %577, %c2_i32_635 : i32
    %c0_636 = arith.constant 0 : index
    %579 = arith.index_cast %578 : i32 to index
    %c0_637 = arith.constant 0 : index
    %c0_638 = arith.constant 0 : index
    %580 = vector.load %arg2[%c0_636, %579, %c0_637, %c0_638] : memref<1x18x4x18xf32, #tpu.memory_space<vmem>>, vector<1x1x4x16xf32>
    %581 = vector.shape_cast %580 : vector<1x1x4x16xf32> to vector<4x16xf32>
    %c24 = arith.constant 24 : index
    %c0_639 = arith.constant 0 : index
    %582 = vector.load %arg6[%c24, %c0_639] : memref<36x256xf32, #tpu.memory_space<vmem>>, vector<4x16xf32>
    tpu.vector_store %arg6[%c24, %c0_639], %581 {strides = array<i32>} : memref<36x256xf32, #tpu.memory_space<vmem>>, vector<4x16xf32>,
    %c1_i32_640 = arith.constant 1 : i32
    %583 = arith.addi %0, %c1_i32_640 : i32
    %c2_i32_641 = arith.constant 2 : i32
    %584 = arith.addi %583, %c2_i32_641 : i32
    %c0_642 = arith.constant 0 : index
    %585 = arith.index_cast %584 : i32 to index
    %c0_643 = arith.constant 0 : index
    %c0_644 = arith.constant 0 : index
    %586 = vector.load %arg2[%c0_642, %585, %c0_643, %c0_644] : memref<1x18x4x18xf32, #tpu.memory_space<vmem>>, vector<1x1x4x16xf32>
    %587 = vector.shape_cast %586 : vector<1x1x4x16xf32> to vector<4x16xf32>
    %c24_645 = arith.constant 24 : index
    %c16_646 = arith.constant 16 : index
    %588 = vector.load %arg6[%c24_645, %c16_646] : memref<36x256xf32, #tpu.memory_space<vmem>>, vector<4x16xf32>
    tpu.vector_store %arg6[%c24_645, %c16_646], %587 {strides = array<i32>} : memref<36x256xf32, #tpu.memory_space<vmem>>, vector<4x16xf32>,
    %c2_i32_647 = arith.constant 2 : i32
    %589 = arith.addi %0, %c2_i32_647 : i32
    %c2_i32_648 = arith.constant 2 : i32
    %590 = arith.addi %589, %c2_i32_648 : i32
    %c0_649 = arith.constant 0 : index
    %591 = arith.index_cast %590 : i32 to index
    %c0_650 = arith.constant 0 : index
    %c0_651 = arith.constant 0 : index
    %592 = vector.load %arg2[%c0_649, %591, %c0_650, %c0_651] : memref<1x18x4x18xf32, #tpu.memory_space<vmem>>, vector<1x1x4x16xf32>
    %593 = vector.shape_cast %592 : vector<1x1x4x16xf32> to vector<4x16xf32>
    %c24_652 = arith.constant 24 : index
    %c32_653 = arith.constant 32 : index
    %594 = vector.load %arg6[%c24_652, %c32_653] : memref<36x256xf32, #tpu.memory_space<vmem>>, vector<4x16xf32>
    tpu.vector_store %arg6[%c24_652, %c32_653], %593 {strides = array<i32>} : memref<36x256xf32, #tpu.memory_space<vmem>>, vector<4x16xf32>,
    %c3_i32_654 = arith.constant 3 : i32
    %595 = arith.addi %0, %c3_i32_654 : i32
    %c2_i32_655 = arith.constant 2 : i32
    %596 = arith.addi %595, %c2_i32_655 : i32
    %c0_656 = arith.constant 0 : index
    %597 = arith.index_cast %596 : i32 to index
    %c0_657 = arith.constant 0 : index
    %c0_658 = arith.constant 0 : index
    %598 = vector.load %arg2[%c0_656, %597, %c0_657, %c0_658] : memref<1x18x4x18xf32, #tpu.memory_space<vmem>>, vector<1x1x4x16xf32>
    %599 = vector.shape_cast %598 : vector<1x1x4x16xf32> to vector<4x16xf32>
    %c24_659 = arith.constant 24 : index
    %c48_660 = arith.constant 48 : index
    %600 = vector.load %arg6[%c24_659, %c48_660] : memref<36x256xf32, #tpu.memory_space<vmem>>, vector<4x16xf32>
    tpu.vector_store %arg6[%c24_659, %c48_660], %599 {strides = array<i32>} : memref<36x256xf32, #tpu.memory_space<vmem>>, vector<4x16xf32>,
    %c4_i32_661 = arith.constant 4 : i32
    %601 = arith.addi %0, %c4_i32_661 : i32
    %c2_i32_662 = arith.constant 2 : i32
    %602 = arith.addi %601, %c2_i32_662 : i32
    %c0_663 = arith.constant 0 : index
    %603 = arith.index_cast %602 : i32 to index
    %c0_664 = arith.constant 0 : index
    %c0_665 = arith.constant 0 : index
    %604 = vector.load %arg2[%c0_663, %603, %c0_664, %c0_665] : memref<1x18x4x18xf32, #tpu.memory_space<vmem>>, vector<1x1x4x16xf32>
    %605 = vector.shape_cast %604 : vector<1x1x4x16xf32> to vector<4x16xf32>
    %c24_666 = arith.constant 24 : index
    %c64_667 = arith.constant 64 : index
    %606 = vector.load %arg6[%c24_666, %c64_667] : memref<36x256xf32, #tpu.memory_space<vmem>>, vector<4x16xf32>
    tpu.vector_store %arg6[%c24_666, %c64_667], %605 {strides = array<i32>} : memref<36x256xf32, #tpu.memory_space<vmem>>, vector<4x16xf32>,
    %c5_i32_668 = arith.constant 5 : i32
    %607 = arith.addi %0, %c5_i32_668 : i32
    %c2_i32_669 = arith.constant 2 : i32
    %608 = arith.addi %607, %c2_i32_669 : i32
    %c0_670 = arith.constant 0 : index
    %609 = arith.index_cast %608 : i32 to index
    %c0_671 = arith.constant 0 : index
    %c0_672 = arith.constant 0 : index
    %610 = vector.load %arg2[%c0_670, %609, %c0_671, %c0_672] : memref<1x18x4x18xf32, #tpu.memory_space<vmem>>, vector<1x1x4x16xf32>
    %611 = vector.shape_cast %610 : vector<1x1x4x16xf32> to vector<4x16xf32>
    %c24_673 = arith.constant 24 : index
    %c80_674 = arith.constant 80 : index
    %612 = vector.load %arg6[%c24_673, %c80_674] : memref<36x256xf32, #tpu.memory_space<vmem>>, vector<4x16xf32>
    tpu.vector_store %arg6[%c24_673, %c80_674], %611 {strides = array<i32>} : memref<36x256xf32, #tpu.memory_space<vmem>>, vector<4x16xf32>,
    %c6_i32_675 = arith.constant 6 : i32
    %613 = arith.addi %0, %c6_i32_675 : i32
    %c2_i32_676 = arith.constant 2 : i32
    %614 = arith.addi %613, %c2_i32_676 : i32
    %c0_677 = arith.constant 0 : index
    %615 = arith.index_cast %614 : i32 to index
    %c0_678 = arith.constant 0 : index
    %c0_679 = arith.constant 0 : index
    %616 = vector.load %arg2[%c0_677, %615, %c0_678, %c0_679] : memref<1x18x4x18xf32, #tpu.memory_space<vmem>>, vector<1x1x4x16xf32>
    %617 = vector.shape_cast %616 : vector<1x1x4x16xf32> to vector<4x16xf32>
    %c24_680 = arith.constant 24 : index
    %c96_681 = arith.constant 96 : index
    %618 = vector.load %arg6[%c24_680, %c96_681] : memref<36x256xf32, #tpu.memory_space<vmem>>, vector<4x16xf32>
    tpu.vector_store %arg6[%c24_680, %c96_681], %617 {strides = array<i32>} : memref<36x256xf32, #tpu.memory_space<vmem>>, vector<4x16xf32>,
    %c7_i32_682 = arith.constant 7 : i32
    %619 = arith.addi %0, %c7_i32_682 : i32
    %c2_i32_683 = arith.constant 2 : i32
    %620 = arith.addi %619, %c2_i32_683 : i32
    %c0_684 = arith.constant 0 : index
    %621 = arith.index_cast %620 : i32 to index
    %c0_685 = arith.constant 0 : index
    %c0_686 = arith.constant 0 : index
    %622 = vector.load %arg2[%c0_684, %621, %c0_685, %c0_686] : memref<1x18x4x18xf32, #tpu.memory_space<vmem>>, vector<1x1x4x16xf32>
    %623 = vector.shape_cast %622 : vector<1x1x4x16xf32> to vector<4x16xf32>
    %c24_687 = arith.constant 24 : index
    %c112_688 = arith.constant 112 : index
    %624 = vector.load %arg6[%c24_687, %c112_688] : memref<36x256xf32, #tpu.memory_space<vmem>>, vector<4x16xf32>
    tpu.vector_store %arg6[%c24_687, %c112_688], %623 {strides = array<i32>} : memref<36x256xf32, #tpu.memory_space<vmem>>, vector<4x16xf32>,
    %c8_i32_689 = arith.constant 8 : i32
    %625 = arith.addi %0, %c8_i32_689 : i32
    %c2_i32_690 = arith.constant 2 : i32
    %626 = arith.addi %625, %c2_i32_690 : i32
    %c0_691 = arith.constant 0 : index
    %627 = arith.index_cast %626 : i32 to index
    %c0_692 = arith.constant 0 : index
    %c0_693 = arith.constant 0 : index
    %628 = vector.load %arg2[%c0_691, %627, %c0_692, %c0_693] : memref<1x18x4x18xf32, #tpu.memory_space<vmem>>, vector<1x1x4x16xf32>
    %629 = vector.shape_cast %628 : vector<1x1x4x16xf32> to vector<4x16xf32>
    %c24_694 = arith.constant 24 : index
    %c128_695 = arith.constant 128 : index
    %630 = vector.load %arg6[%c24_694, %c128_695] : memref<36x256xf32, #tpu.memory_space<vmem>>, vector<4x16xf32>
    tpu.vector_store %arg6[%c24_694, %c128_695], %629 {strides = array<i32>} : memref<36x256xf32, #tpu.memory_space<vmem>>, vector<4x16xf32>,
    %c9_i32_696 = arith.constant 9 : i32
    %631 = arith.addi %0, %c9_i32_696 : i32
    %c2_i32_697 = arith.constant 2 : i32
    %632 = arith.addi %631, %c2_i32_697 : i32
    %c0_698 = arith.constant 0 : index
    %633 = arith.index_cast %632 : i32 to index
    %c0_699 = arith.constant 0 : index
    %c0_700 = arith.constant 0 : index
    %634 = vector.load %arg2[%c0_698, %633, %c0_699, %c0_700] : memref<1x18x4x18xf32, #tpu.memory_space<vmem>>, vector<1x1x4x16xf32>
    %635 = vector.shape_cast %634 : vector<1x1x4x16xf32> to vector<4x16xf32>
    %c24_701 = arith.constant 24 : index
    %c144_702 = arith.constant 144 : index
    %636 = vector.load %arg6[%c24_701, %c144_702] : memref<36x256xf32, #tpu.memory_space<vmem>>, vector<4x16xf32>
    tpu.vector_store %arg6[%c24_701, %c144_702], %635 {strides = array<i32>} : memref<36x256xf32, #tpu.memory_space<vmem>>, vector<4x16xf32>,
    %c10_i32_703 = arith.constant 10 : i32
    %637 = arith.addi %0, %c10_i32_703 : i32
    %c2_i32_704 = arith.constant 2 : i32
    %638 = arith.addi %637, %c2_i32_704 : i32
    %c0_705 = arith.constant 0 : index
    %639 = arith.index_cast %638 : i32 to index
    %c0_706 = arith.constant 0 : index
    %c0_707 = arith.constant 0 : index
    %640 = vector.load %arg2[%c0_705, %639, %c0_706, %c0_707] : memref<1x18x4x18xf32, #tpu.memory_space<vmem>>, vector<1x1x4x16xf32>
    %641 = vector.shape_cast %640 : vector<1x1x4x16xf32> to vector<4x16xf32>
    %c24_708 = arith.constant 24 : index
    %c160_709 = arith.constant 160 : index
    %642 = vector.load %arg6[%c24_708, %c160_709] : memref<36x256xf32, #tpu.memory_space<vmem>>, vector<4x16xf32>
    tpu.vector_store %arg6[%c24_708, %c160_709], %641 {strides = array<i32>} : memref<36x256xf32, #tpu.memory_space<vmem>>, vector<4x16xf32>,
    %c11_i32_710 = arith.constant 11 : i32
    %643 = arith.addi %0, %c11_i32_710 : i32
    %c2_i32_711 = arith.constant 2 : i32
    %644 = arith.addi %643, %c2_i32_711 : i32
    %c0_712 = arith.constant 0 : index
    %645 = arith.index_cast %644 : i32 to index
    %c0_713 = arith.constant 0 : index
    %c0_714 = arith.constant 0 : index
    %646 = vector.load %arg2[%c0_712, %645, %c0_713, %c0_714] : memref<1x18x4x18xf32, #tpu.memory_space<vmem>>, vector<1x1x4x16xf32>
    %647 = vector.shape_cast %646 : vector<1x1x4x16xf32> to vector<4x16xf32>
    %c24_715 = arith.constant 24 : index
    %c176_716 = arith.constant 176 : index
    %648 = vector.load %arg6[%c24_715, %c176_716] : memref<36x256xf32, #tpu.memory_space<vmem>>, vector<4x16xf32>
    tpu.vector_store %arg6[%c24_715, %c176_716], %647 {strides = array<i32>} : memref<36x256xf32, #tpu.memory_space<vmem>>, vector<4x16xf32>,
    %c12_i32_717 = arith.constant 12 : i32
    %649 = arith.addi %0, %c12_i32_717 : i32
    %c2_i32_718 = arith.constant 2 : i32
    %650 = arith.addi %649, %c2_i32_718 : i32
    %c0_719 = arith.constant 0 : index
    %651 = arith.index_cast %650 : i32 to index
    %c0_720 = arith.constant 0 : index
    %c0_721 = arith.constant 0 : index
    %652 = vector.load %arg2[%c0_719, %651, %c0_720, %c0_721] : memref<1x18x4x18xf32, #tpu.memory_space<vmem>>, vector<1x1x4x16xf32>
    %653 = vector.shape_cast %652 : vector<1x1x4x16xf32> to vector<4x16xf32>
    %c24_722 = arith.constant 24 : index
    %c192_723 = arith.constant 192 : index
    %654 = vector.load %arg6[%c24_722, %c192_723] : memref<36x256xf32, #tpu.memory_space<vmem>>, vector<4x16xf32>
    tpu.vector_store %arg6[%c24_722, %c192_723], %653 {strides = array<i32>} : memref<36x256xf32, #tpu.memory_space<vmem>>, vector<4x16xf32>,
    %c13_i32_724 = arith.constant 13 : i32
    %655 = arith.addi %0, %c13_i32_724 : i32
    %c2_i32_725 = arith.constant 2 : i32
    %656 = arith.addi %655, %c2_i32_725 : i32
    %c0_726 = arith.constant 0 : index
    %657 = arith.index_cast %656 : i32 to index
    %c0_727 = arith.constant 0 : index
    %c0_728 = arith.constant 0 : index
    %658 = vector.load %arg2[%c0_726, %657, %c0_727, %c0_728] : memref<1x18x4x18xf32, #tpu.memory_space<vmem>>, vector<1x1x4x16xf32>
    %659 = vector.shape_cast %658 : vector<1x1x4x16xf32> to vector<4x16xf32>
    %c24_729 = arith.constant 24 : index
    %c208_730 = arith.constant 208 : index
    %660 = vector.load %arg6[%c24_729, %c208_730] : memref<36x256xf32, #tpu.memory_space<vmem>>, vector<4x16xf32>
    tpu.vector_store %arg6[%c24_729, %c208_730], %659 {strides = array<i32>} : memref<36x256xf32, #tpu.memory_space<vmem>>, vector<4x16xf32>,
    %c14_i32_731 = arith.constant 14 : i32
    %661 = arith.addi %0, %c14_i32_731 : i32
    %c2_i32_732 = arith.constant 2 : i32
    %662 = arith.addi %661, %c2_i32_732 : i32
    %c0_733 = arith.constant 0 : index
    %663 = arith.index_cast %662 : i32 to index
    %c0_734 = arith.constant 0 : index
    %c0_735 = arith.constant 0 : index
    %664 = vector.load %arg2[%c0_733, %663, %c0_734, %c0_735] : memref<1x18x4x18xf32, #tpu.memory_space<vmem>>, vector<1x1x4x16xf32>
    %665 = vector.shape_cast %664 : vector<1x1x4x16xf32> to vector<4x16xf32>
    %c24_736 = arith.constant 24 : index
    %c224_737 = arith.constant 224 : index
    %666 = vector.load %arg6[%c24_736, %c224_737] : memref<36x256xf32, #tpu.memory_space<vmem>>, vector<4x16xf32>
    tpu.vector_store %arg6[%c24_736, %c224_737], %665 {strides = array<i32>} : memref<36x256xf32, #tpu.memory_space<vmem>>, vector<4x16xf32>,
    %c15_i32_738 = arith.constant 15 : i32
    %667 = arith.addi %0, %c15_i32_738 : i32
    %c2_i32_739 = arith.constant 2 : i32
    %668 = arith.addi %667, %c2_i32_739 : i32
    %c0_740 = arith.constant 0 : index
    %669 = arith.index_cast %668 : i32 to index
    %c0_741 = arith.constant 0 : index
    %c0_742 = arith.constant 0 : index
    %670 = vector.load %arg2[%c0_740, %669, %c0_741, %c0_742] : memref<1x18x4x18xf32, #tpu.memory_space<vmem>>, vector<1x1x4x16xf32>
    %671 = vector.shape_cast %670 : vector<1x1x4x16xf32> to vector<4x16xf32>
    %c24_743 = arith.constant 24 : index
    %c240_744 = arith.constant 240 : index
    %672 = vector.load %arg6[%c24_743, %c240_744] : memref<36x256xf32, #tpu.memory_space<vmem>>, vector<4x16xf32>
    tpu.vector_store %arg6[%c24_743, %c240_744], %671 {strides = array<i32>} : memref<36x256xf32, #tpu.memory_space<vmem>>, vector<4x16xf32>,
    %c0_i32_745 = arith.constant 0 : i32
    %673 = arith.addi %0, %c0_i32_745 : i32
    %c2_i32_746 = arith.constant 2 : i32
    %674 = arith.addi %673, %c2_i32_746 : i32
    %c0_747 = arith.constant 0 : index
    %675 = arith.index_cast %674 : i32 to index
    %c0_748 = arith.constant 0 : index
    %c1_749 = arith.constant 1 : index
    %676 = vector.load %arg2[%c0_747, %675, %c0_748, %c1_749] : memref<1x18x4x18xf32, #tpu.memory_space<vmem>>, vector<1x1x4x16xf32>
    %677 = vector.shape_cast %676 : vector<1x1x4x16xf32> to vector<4x16xf32>
    %c28 = arith.constant 28 : index
    %c0_750 = arith.constant 0 : index
    %678 = vector.load %arg6[%c28, %c0_750] : memref<36x256xf32, #tpu.memory_space<vmem>>, vector<4x16xf32>
    tpu.vector_store %arg6[%c28, %c0_750], %677 {strides = array<i32>} : memref<36x256xf32, #tpu.memory_space<vmem>>, vector<4x16xf32>,
    %c1_i32_751 = arith.constant 1 : i32
    %679 = arith.addi %0, %c1_i32_751 : i32
    %c2_i32_752 = arith.constant 2 : i32
    %680 = arith.addi %679, %c2_i32_752 : i32
    %c0_753 = arith.constant 0 : index
    %681 = arith.index_cast %680 : i32 to index
    %c0_754 = arith.constant 0 : index
    %c1_755 = arith.constant 1 : index
    %682 = vector.load %arg2[%c0_753, %681, %c0_754, %c1_755] : memref<1x18x4x18xf32, #tpu.memory_space<vmem>>, vector<1x1x4x16xf32>
    %683 = vector.shape_cast %682 : vector<1x1x4x16xf32> to vector<4x16xf32>
    %c28_756 = arith.constant 28 : index
    %c16_757 = arith.constant 16 : index
    %684 = vector.load %arg6[%c28_756, %c16_757] : memref<36x256xf32, #tpu.memory_space<vmem>>, vector<4x16xf32>
    tpu.vector_store %arg6[%c28_756, %c16_757], %683 {strides = array<i32>} : memref<36x256xf32, #tpu.memory_space<vmem>>, vector<4x16xf32>,
    %c2_i32_758 = arith.constant 2 : i32
    %685 = arith.addi %0, %c2_i32_758 : i32
    %c2_i32_759 = arith.constant 2 : i32
    %686 = arith.addi %685, %c2_i32_759 : i32
    %c0_760 = arith.constant 0 : index
    %687 = arith.index_cast %686 : i32 to index
    %c0_761 = arith.constant 0 : index
    %c1_762 = arith.constant 1 : index
    %688 = vector.load %arg2[%c0_760, %687, %c0_761, %c1_762] : memref<1x18x4x18xf32, #tpu.memory_space<vmem>>, vector<1x1x4x16xf32>
    %689 = vector.shape_cast %688 : vector<1x1x4x16xf32> to vector<4x16xf32>
    %c28_763 = arith.constant 28 : index
    %c32_764 = arith.constant 32 : index
    %690 = vector.load %arg6[%c28_763, %c32_764] : memref<36x256xf32, #tpu.memory_space<vmem>>, vector<4x16xf32>
    tpu.vector_store %arg6[%c28_763, %c32_764], %689 {strides = array<i32>} : memref<36x256xf32, #tpu.memory_space<vmem>>, vector<4x16xf32>,
    %c3_i32_765 = arith.constant 3 : i32
    %691 = arith.addi %0, %c3_i32_765 : i32
    %c2_i32_766 = arith.constant 2 : i32
    %692 = arith.addi %691, %c2_i32_766 : i32
    %c0_767 = arith.constant 0 : index
    %693 = arith.index_cast %692 : i32 to index
    %c0_768 = arith.constant 0 : index
    %c1_769 = arith.constant 1 : index
    %694 = vector.load %arg2[%c0_767, %693, %c0_768, %c1_769] : memref<1x18x4x18xf32, #tpu.memory_space<vmem>>, vector<1x1x4x16xf32>
    %695 = vector.shape_cast %694 : vector<1x1x4x16xf32> to vector<4x16xf32>
    %c28_770 = arith.constant 28 : index
    %c48_771 = arith.constant 48 : index
    %696 = vector.load %arg6[%c28_770, %c48_771] : memref<36x256xf32, #tpu.memory_space<vmem>>, vector<4x16xf32>
    tpu.vector_store %arg6[%c28_770, %c48_771], %695 {strides = array<i32>} : memref<36x256xf32, #tpu.memory_space<vmem>>, vector<4x16xf32>,
    %c4_i32_772 = arith.constant 4 : i32
    %697 = arith.addi %0, %c4_i32_772 : i32
    %c2_i32_773 = arith.constant 2 : i32
    %698 = arith.addi %697, %c2_i32_773 : i32
    %c0_774 = arith.constant 0 : index
    %699 = arith.index_cast %698 : i32 to index
    %c0_775 = arith.constant 0 : index
    %c1_776 = arith.constant 1 : index
    %700 = vector.load %arg2[%c0_774, %699, %c0_775, %c1_776] : memref<1x18x4x18xf32, #tpu.memory_space<vmem>>, vector<1x1x4x16xf32>
    %701 = vector.shape_cast %700 : vector<1x1x4x16xf32> to vector<4x16xf32>
    %c28_777 = arith.constant 28 : index
    %c64_778 = arith.constant 64 : index
    %702 = vector.load %arg6[%c28_777, %c64_778] : memref<36x256xf32, #tpu.memory_space<vmem>>, vector<4x16xf32>
    tpu.vector_store %arg6[%c28_777, %c64_778], %701 {strides = array<i32>} : memref<36x256xf32, #tpu.memory_space<vmem>>, vector<4x16xf32>,
    %c5_i32_779 = arith.constant 5 : i32
    %703 = arith.addi %0, %c5_i32_779 : i32
    %c2_i32_780 = arith.constant 2 : i32
    %704 = arith.addi %703, %c2_i32_780 : i32
    %c0_781 = arith.constant 0 : index
    %705 = arith.index_cast %704 : i32 to index
    %c0_782 = arith.constant 0 : index
    %c1_783 = arith.constant 1 : index
    %706 = vector.load %arg2[%c0_781, %705, %c0_782, %c1_783] : memref<1x18x4x18xf32, #tpu.memory_space<vmem>>, vector<1x1x4x16xf32>
    %707 = vector.shape_cast %706 : vector<1x1x4x16xf32> to vector<4x16xf32>
    %c28_784 = arith.constant 28 : index
    %c80_785 = arith.constant 80 : index
    %708 = vector.load %arg6[%c28_784, %c80_785] : memref<36x256xf32, #tpu.memory_space<vmem>>, vector<4x16xf32>
    tpu.vector_store %arg6[%c28_784, %c80_785], %707 {strides = array<i32>} : memref<36x256xf32, #tpu.memory_space<vmem>>, vector<4x16xf32>,
    %c6_i32_786 = arith.constant 6 : i32
    %709 = arith.addi %0, %c6_i32_786 : i32
    %c2_i32_787 = arith.constant 2 : i32
    %710 = arith.addi %709, %c2_i32_787 : i32
    %c0_788 = arith.constant 0 : index
    %711 = arith.index_cast %710 : i32 to index
    %c0_789 = arith.constant 0 : index
    %c1_790 = arith.constant 1 : index
    %712 = vector.load %arg2[%c0_788, %711, %c0_789, %c1_790] : memref<1x18x4x18xf32, #tpu.memory_space<vmem>>, vector<1x1x4x16xf32>
    %713 = vector.shape_cast %712 : vector<1x1x4x16xf32> to vector<4x16xf32>
    %c28_791 = arith.constant 28 : index
    %c96_792 = arith.constant 96 : index
    %714 = vector.load %arg6[%c28_791, %c96_792] : memref<36x256xf32, #tpu.memory_space<vmem>>, vector<4x16xf32>
    tpu.vector_store %arg6[%c28_791, %c96_792], %713 {strides = array<i32>} : memref<36x256xf32, #tpu.memory_space<vmem>>, vector<4x16xf32>,
    %c7_i32_793 = arith.constant 7 : i32
    %715 = arith.addi %0, %c7_i32_793 : i32
    %c2_i32_794 = arith.constant 2 : i32
    %716 = arith.addi %715, %c2_i32_794 : i32
    %c0_795 = arith.constant 0 : index
    %717 = arith.index_cast %716 : i32 to index
    %c0_796 = arith.constant 0 : index
    %c1_797 = arith.constant 1 : index
    %718 = vector.load %arg2[%c0_795, %717, %c0_796, %c1_797] : memref<1x18x4x18xf32, #tpu.memory_space<vmem>>, vector<1x1x4x16xf32>
    %719 = vector.shape_cast %718 : vector<1x1x4x16xf32> to vector<4x16xf32>
    %c28_798 = arith.constant 28 : index
    %c112_799 = arith.constant 112 : index
    %720 = vector.load %arg6[%c28_798, %c112_799] : memref<36x256xf32, #tpu.memory_space<vmem>>, vector<4x16xf32>
    tpu.vector_store %arg6[%c28_798, %c112_799], %719 {strides = array<i32>} : memref<36x256xf32, #tpu.memory_space<vmem>>, vector<4x16xf32>,
    %c8_i32_800 = arith.constant 8 : i32
    %721 = arith.addi %0, %c8_i32_800 : i32
    %c2_i32_801 = arith.constant 2 : i32
    %722 = arith.addi %721, %c2_i32_801 : i32
    %c0_802 = arith.constant 0 : index
    %723 = arith.index_cast %722 : i32 to index
    %c0_803 = arith.constant 0 : index
    %c1_804 = arith.constant 1 : index
    %724 = vector.load %arg2[%c0_802, %723, %c0_803, %c1_804] : memref<1x18x4x18xf32, #tpu.memory_space<vmem>>, vector<1x1x4x16xf32>
    %725 = vector.shape_cast %724 : vector<1x1x4x16xf32> to vector<4x16xf32>
    %c28_805 = arith.constant 28 : index
    %c128_806 = arith.constant 128 : index
    %726 = vector.load %arg6[%c28_805, %c128_806] : memref<36x256xf32, #tpu.memory_space<vmem>>, vector<4x16xf32>
    tpu.vector_store %arg6[%c28_805, %c128_806], %725 {strides = array<i32>} : memref<36x256xf32, #tpu.memory_space<vmem>>, vector<4x16xf32>,
    %c9_i32_807 = arith.constant 9 : i32
    %727 = arith.addi %0, %c9_i32_807 : i32
    %c2_i32_808 = arith.constant 2 : i32
    %728 = arith.addi %727, %c2_i32_808 : i32
    %c0_809 = arith.constant 0 : index
    %729 = arith.index_cast %728 : i32 to index
    %c0_810 = arith.constant 0 : index
    %c1_811 = arith.constant 1 : index
    %730 = vector.load %arg2[%c0_809, %729, %c0_810, %c1_811] : memref<1x18x4x18xf32, #tpu.memory_space<vmem>>, vector<1x1x4x16xf32>
    %731 = vector.shape_cast %730 : vector<1x1x4x16xf32> to vector<4x16xf32>
    %c28_812 = arith.constant 28 : index
    %c144_813 = arith.constant 144 : index
    %732 = vector.load %arg6[%c28_812, %c144_813] : memref<36x256xf32, #tpu.memory_space<vmem>>, vector<4x16xf32>
    tpu.vector_store %arg6[%c28_812, %c144_813], %731 {strides = array<i32>} : memref<36x256xf32, #tpu.memory_space<vmem>>, vector<4x16xf32>,
    %c10_i32_814 = arith.constant 10 : i32
    %733 = arith.addi %0, %c10_i32_814 : i32
    %c2_i32_815 = arith.constant 2 : i32
    %734 = arith.addi %733, %c2_i32_815 : i32
    %c0_816 = arith.constant 0 : index
    %735 = arith.index_cast %734 : i32 to index
    %c0_817 = arith.constant 0 : index
    %c1_818 = arith.constant 1 : index
    %736 = vector.load %arg2[%c0_816, %735, %c0_817, %c1_818] : memref<1x18x4x18xf32, #tpu.memory_space<vmem>>, vector<1x1x4x16xf32>
    %737 = vector.shape_cast %736 : vector<1x1x4x16xf32> to vector<4x16xf32>
    %c28_819 = arith.constant 28 : index
    %c160_820 = arith.constant 160 : index
    %738 = vector.load %arg6[%c28_819, %c160_820] : memref<36x256xf32, #tpu.memory_space<vmem>>, vector<4x16xf32>
    tpu.vector_store %arg6[%c28_819, %c160_820], %737 {strides = array<i32>} : memref<36x256xf32, #tpu.memory_space<vmem>>, vector<4x16xf32>,
    %c11_i32_821 = arith.constant 11 : i32
    %739 = arith.addi %0, %c11_i32_821 : i32
    %c2_i32_822 = arith.constant 2 : i32
    %740 = arith.addi %739, %c2_i32_822 : i32
    %c0_823 = arith.constant 0 : index
    %741 = arith.index_cast %740 : i32 to index
    %c0_824 = arith.constant 0 : index
    %c1_825 = arith.constant 1 : index
    %742 = vector.load %arg2[%c0_823, %741, %c0_824, %c1_825] : memref<1x18x4x18xf32, #tpu.memory_space<vmem>>, vector<1x1x4x16xf32>
    %743 = vector.shape_cast %742 : vector<1x1x4x16xf32> to vector<4x16xf32>
    %c28_826 = arith.constant 28 : index
    %c176_827 = arith.constant 176 : index
    %744 = vector.load %arg6[%c28_826, %c176_827] : memref<36x256xf32, #tpu.memory_space<vmem>>, vector<4x16xf32>
    tpu.vector_store %arg6[%c28_826, %c176_827], %743 {strides = array<i32>} : memref<36x256xf32, #tpu.memory_space<vmem>>, vector<4x16xf32>,
    %c12_i32_828 = arith.constant 12 : i32
    %745 = arith.addi %0, %c12_i32_828 : i32
    %c2_i32_829 = arith.constant 2 : i32
    %746 = arith.addi %745, %c2_i32_829 : i32
    %c0_830 = arith.constant 0 : index
    %747 = arith.index_cast %746 : i32 to index
    %c0_831 = arith.constant 0 : index
    %c1_832 = arith.constant 1 : index
    %748 = vector.load %arg2[%c0_830, %747, %c0_831, %c1_832] : memref<1x18x4x18xf32, #tpu.memory_space<vmem>>, vector<1x1x4x16xf32>
    %749 = vector.shape_cast %748 : vector<1x1x4x16xf32> to vector<4x16xf32>
    %c28_833 = arith.constant 28 : index
    %c192_834 = arith.constant 192 : index
    %750 = vector.load %arg6[%c28_833, %c192_834] : memref<36x256xf32, #tpu.memory_space<vmem>>, vector<4x16xf32>
    tpu.vector_store %arg6[%c28_833, %c192_834], %749 {strides = array<i32>} : memref<36x256xf32, #tpu.memory_space<vmem>>, vector<4x16xf32>,
    %c13_i32_835 = arith.constant 13 : i32
    %751 = arith.addi %0, %c13_i32_835 : i32
    %c2_i32_836 = arith.constant 2 : i32
    %752 = arith.addi %751, %c2_i32_836 : i32
    %c0_837 = arith.constant 0 : index
    %753 = arith.index_cast %752 : i32 to index
    %c0_838 = arith.constant 0 : index
    %c1_839 = arith.constant 1 : index
    %754 = vector.load %arg2[%c0_837, %753, %c0_838, %c1_839] : memref<1x18x4x18xf32, #tpu.memory_space<vmem>>, vector<1x1x4x16xf32>
    %755 = vector.shape_cast %754 : vector<1x1x4x16xf32> to vector<4x16xf32>
    %c28_840 = arith.constant 28 : index
    %c208_841 = arith.constant 208 : index
    %756 = vector.load %arg6[%c28_840, %c208_841] : memref<36x256xf32, #tpu.memory_space<vmem>>, vector<4x16xf32>
    tpu.vector_store %arg6[%c28_840, %c208_841], %755 {strides = array<i32>} : memref<36x256xf32, #tpu.memory_space<vmem>>, vector<4x16xf32>,
    %c14_i32_842 = arith.constant 14 : i32
    %757 = arith.addi %0, %c14_i32_842 : i32
    %c2_i32_843 = arith.constant 2 : i32
    %758 = arith.addi %757, %c2_i32_843 : i32
    %c0_844 = arith.constant 0 : index
    %759 = arith.index_cast %758 : i32 to index
    %c0_845 = arith.constant 0 : index
    %c1_846 = arith.constant 1 : index
    %760 = vector.load %arg2[%c0_844, %759, %c0_845, %c1_846] : memref<1x18x4x18xf32, #tpu.memory_space<vmem>>, vector<1x1x4x16xf32>
    %761 = vector.shape_cast %760 : vector<1x1x4x16xf32> to vector<4x16xf32>
    %c28_847 = arith.constant 28 : index
    %c224_848 = arith.constant 224 : index
    %762 = vector.load %arg6[%c28_847, %c224_848] : memref<36x256xf32, #tpu.memory_space<vmem>>, vector<4x16xf32>
    tpu.vector_store %arg6[%c28_847, %c224_848], %761 {strides = array<i32>} : memref<36x256xf32, #tpu.memory_space<vmem>>, vector<4x16xf32>,
    %c15_i32_849 = arith.constant 15 : i32
    %763 = arith.addi %0, %c15_i32_849 : i32
    %c2_i32_850 = arith.constant 2 : i32
    %764 = arith.addi %763, %c2_i32_850 : i32
    %c0_851 = arith.constant 0 : index
    %765 = arith.index_cast %764 : i32 to index
    %c0_852 = arith.constant 0 : index
    %c1_853 = arith.constant 1 : index
    %766 = vector.load %arg2[%c0_851, %765, %c0_852, %c1_853] : memref<1x18x4x18xf32, #tpu.memory_space<vmem>>, vector<1x1x4x16xf32>
    %767 = vector.shape_cast %766 : vector<1x1x4x16xf32> to vector<4x16xf32>
    %c28_854 = arith.constant 28 : index
    %c240_855 = arith.constant 240 : index
    %768 = vector.load %arg6[%c28_854, %c240_855] : memref<36x256xf32, #tpu.memory_space<vmem>>, vector<4x16xf32>
    tpu.vector_store %arg6[%c28_854, %c240_855], %767 {strides = array<i32>} : memref<36x256xf32, #tpu.memory_space<vmem>>, vector<4x16xf32>,
    %c0_i32_856 = arith.constant 0 : i32
    %769 = arith.addi %0, %c0_i32_856 : i32
    %c2_i32_857 = arith.constant 2 : i32
    %770 = arith.addi %769, %c2_i32_857 : i32
    %c0_858 = arith.constant 0 : index
    %771 = arith.index_cast %770 : i32 to index
    %c0_859 = arith.constant 0 : index
    %c2_860 = arith.constant 2 : index
    %772 = vector.load %arg2[%c0_858, %771, %c0_859, %c2_860] : memref<1x18x4x18xf32, #tpu.memory_space<vmem>>, vector<1x1x4x16xf32>
    %773 = vector.shape_cast %772 : vector<1x1x4x16xf32> to vector<4x16xf32>
    %c32_861 = arith.constant 32 : index
    %c0_862 = arith.constant 0 : index
    %774 = vector.load %arg6[%c32_861, %c0_862] : memref<36x256xf32, #tpu.memory_space<vmem>>, vector<4x16xf32>
    tpu.vector_store %arg6[%c32_861, %c0_862], %773 {strides = array<i32>} : memref<36x256xf32, #tpu.memory_space<vmem>>, vector<4x16xf32>,
    %c1_i32_863 = arith.constant 1 : i32
    %775 = arith.addi %0, %c1_i32_863 : i32
    %c2_i32_864 = arith.constant 2 : i32
    %776 = arith.addi %775, %c2_i32_864 : i32
    %c0_865 = arith.constant 0 : index
    %777 = arith.index_cast %776 : i32 to index
    %c0_866 = arith.constant 0 : index
    %c2_867 = arith.constant 2 : index
    %778 = vector.load %arg2[%c0_865, %777, %c0_866, %c2_867] : memref<1x18x4x18xf32, #tpu.memory_space<vmem>>, vector<1x1x4x16xf32>
    %779 = vector.shape_cast %778 : vector<1x1x4x16xf32> to vector<4x16xf32>
    %c32_868 = arith.constant 32 : index
    %c16_869 = arith.constant 16 : index
    %780 = vector.load %arg6[%c32_868, %c16_869] : memref<36x256xf32, #tpu.memory_space<vmem>>, vector<4x16xf32>
    tpu.vector_store %arg6[%c32_868, %c16_869], %779 {strides = array<i32>} : memref<36x256xf32, #tpu.memory_space<vmem>>, vector<4x16xf32>,
    %c2_i32_870 = arith.constant 2 : i32
    %781 = arith.addi %0, %c2_i32_870 : i32
    %c2_i32_871 = arith.constant 2 : i32
    %782 = arith.addi %781, %c2_i32_871 : i32
    %c0_872 = arith.constant 0 : index
    %783 = arith.index_cast %782 : i32 to index
    %c0_873 = arith.constant 0 : index
    %c2_874 = arith.constant 2 : index
    %784 = vector.load %arg2[%c0_872, %783, %c0_873, %c2_874] : memref<1x18x4x18xf32, #tpu.memory_space<vmem>>, vector<1x1x4x16xf32>
    %785 = vector.shape_cast %784 : vector<1x1x4x16xf32> to vector<4x16xf32>
    %c32_875 = arith.constant 32 : index
    %c32_876 = arith.constant 32 : index
    %786 = vector.load %arg6[%c32_875, %c32_876] : memref<36x256xf32, #tpu.memory_space<vmem>>, vector<4x16xf32>
    tpu.vector_store %arg6[%c32_875, %c32_876], %785 {strides = array<i32>} : memref<36x256xf32, #tpu.memory_space<vmem>>, vector<4x16xf32>,
    %c3_i32_877 = arith.constant 3 : i32
    %787 = arith.addi %0, %c3_i32_877 : i32
    %c2_i32_878 = arith.constant 2 : i32
    %788 = arith.addi %787, %c2_i32_878 : i32
    %c0_879 = arith.constant 0 : index
    %789 = arith.index_cast %788 : i32 to index
    %c0_880 = arith.constant 0 : index
    %c2_881 = arith.constant 2 : index
    %790 = vector.load %arg2[%c0_879, %789, %c0_880, %c2_881] : memref<1x18x4x18xf32, #tpu.memory_space<vmem>>, vector<1x1x4x16xf32>
    %791 = vector.shape_cast %790 : vector<1x1x4x16xf32> to vector<4x16xf32>
    %c32_882 = arith.constant 32 : index
    %c48_883 = arith.constant 48 : index
    %792 = vector.load %arg6[%c32_882, %c48_883] : memref<36x256xf32, #tpu.memory_space<vmem>>, vector<4x16xf32>
    tpu.vector_store %arg6[%c32_882, %c48_883], %791 {strides = array<i32>} : memref<36x256xf32, #tpu.memory_space<vmem>>, vector<4x16xf32>,
    %c4_i32_884 = arith.constant 4 : i32
    %793 = arith.addi %0, %c4_i32_884 : i32
    %c2_i32_885 = arith.constant 2 : i32
    %794 = arith.addi %793, %c2_i32_885 : i32
    %c0_886 = arith.constant 0 : index
    %795 = arith.index_cast %794 : i32 to index
    %c0_887 = arith.constant 0 : index
    %c2_888 = arith.constant 2 : index
    %796 = vector.load %arg2[%c0_886, %795, %c0_887, %c2_888] : memref<1x18x4x18xf32, #tpu.memory_space<vmem>>, vector<1x1x4x16xf32>
    %797 = vector.shape_cast %796 : vector<1x1x4x16xf32> to vector<4x16xf32>
    %c32_889 = arith.constant 32 : index
    %c64_890 = arith.constant 64 : index
    %798 = vector.load %arg6[%c32_889, %c64_890] : memref<36x256xf32, #tpu.memory_space<vmem>>, vector<4x16xf32>
    tpu.vector_store %arg6[%c32_889, %c64_890], %797 {strides = array<i32>} : memref<36x256xf32, #tpu.memory_space<vmem>>, vector<4x16xf32>,
    %c5_i32_891 = arith.constant 5 : i32
    %799 = arith.addi %0, %c5_i32_891 : i32
    %c2_i32_892 = arith.constant 2 : i32
    %800 = arith.addi %799, %c2_i32_892 : i32
    %c0_893 = arith.constant 0 : index
    %801 = arith.index_cast %800 : i32 to index
    %c0_894 = arith.constant 0 : index
    %c2_895 = arith.constant 2 : index
    %802 = vector.load %arg2[%c0_893, %801, %c0_894, %c2_895] : memref<1x18x4x18xf32, #tpu.memory_space<vmem>>, vector<1x1x4x16xf32>
    %803 = vector.shape_cast %802 : vector<1x1x4x16xf32> to vector<4x16xf32>
    %c32_896 = arith.constant 32 : index
    %c80_897 = arith.constant 80 : index
    %804 = vector.load %arg6[%c32_896, %c80_897] : memref<36x256xf32, #tpu.memory_space<vmem>>, vector<4x16xf32>
    tpu.vector_store %arg6[%c32_896, %c80_897], %803 {strides = array<i32>} : memref<36x256xf32, #tpu.memory_space<vmem>>, vector<4x16xf32>,
    %c6_i32_898 = arith.constant 6 : i32
    %805 = arith.addi %0, %c6_i32_898 : i32
    %c2_i32_899 = arith.constant 2 : i32
    %806 = arith.addi %805, %c2_i32_899 : i32
    %c0_900 = arith.constant 0 : index
    %807 = arith.index_cast %806 : i32 to index
    %c0_901 = arith.constant 0 : index
    %c2_902 = arith.constant 2 : index
    %808 = vector.load %arg2[%c0_900, %807, %c0_901, %c2_902] : memref<1x18x4x18xf32, #tpu.memory_space<vmem>>, vector<1x1x4x16xf32>
    %809 = vector.shape_cast %808 : vector<1x1x4x16xf32> to vector<4x16xf32>
    %c32_903 = arith.constant 32 : index
    %c96_904 = arith.constant 96 : index
    %810 = vector.load %arg6[%c32_903, %c96_904] : memref<36x256xf32, #tpu.memory_space<vmem>>, vector<4x16xf32>
    tpu.vector_store %arg6[%c32_903, %c96_904], %809 {strides = array<i32>} : memref<36x256xf32, #tpu.memory_space<vmem>>, vector<4x16xf32>,
    %c7_i32_905 = arith.constant 7 : i32
    %811 = arith.addi %0, %c7_i32_905 : i32
    %c2_i32_906 = arith.constant 2 : i32
    %812 = arith.addi %811, %c2_i32_906 : i32
    %c0_907 = arith.constant 0 : index
    %813 = arith.index_cast %812 : i32 to index
    %c0_908 = arith.constant 0 : index
    %c2_909 = arith.constant 2 : index
    %814 = vector.load %arg2[%c0_907, %813, %c0_908, %c2_909] : memref<1x18x4x18xf32, #tpu.memory_space<vmem>>, vector<1x1x4x16xf32>
    %815 = vector.shape_cast %814 : vector<1x1x4x16xf32> to vector<4x16xf32>
    %c32_910 = arith.constant 32 : index
    %c112_911 = arith.constant 112 : index
    %816 = vector.load %arg6[%c32_910, %c112_911] : memref<36x256xf32, #tpu.memory_space<vmem>>, vector<4x16xf32>
    tpu.vector_store %arg6[%c32_910, %c112_911], %815 {strides = array<i32>} : memref<36x256xf32, #tpu.memory_space<vmem>>, vector<4x16xf32>,
    %c8_i32_912 = arith.constant 8 : i32
    %817 = arith.addi %0, %c8_i32_912 : i32
    %c2_i32_913 = arith.constant 2 : i32
    %818 = arith.addi %817, %c2_i32_913 : i32
    %c0_914 = arith.constant 0 : index
    %819 = arith.index_cast %818 : i32 to index
    %c0_915 = arith.constant 0 : index
    %c2_916 = arith.constant 2 : index
    %820 = vector.load %arg2[%c0_914, %819, %c0_915, %c2_916] : memref<1x18x4x18xf32, #tpu.memory_space<vmem>>, vector<1x1x4x16xf32>
    %821 = vector.shape_cast %820 : vector<1x1x4x16xf32> to vector<4x16xf32>
    %c32_917 = arith.constant 32 : index
    %c128_918 = arith.constant 128 : index
    %822 = vector.load %arg6[%c32_917, %c128_918] : memref<36x256xf32, #tpu.memory_space<vmem>>, vector<4x16xf32>
    tpu.vector_store %arg6[%c32_917, %c128_918], %821 {strides = array<i32>} : memref<36x256xf32, #tpu.memory_space<vmem>>, vector<4x16xf32>,
    %c9_i32_919 = arith.constant 9 : i32
    %823 = arith.addi %0, %c9_i32_919 : i32
    %c2_i32_920 = arith.constant 2 : i32
    %824 = arith.addi %823, %c2_i32_920 : i32
    %c0_921 = arith.constant 0 : index
    %825 = arith.index_cast %824 : i32 to index
    %c0_922 = arith.constant 0 : index
    %c2_923 = arith.constant 2 : index
    %826 = vector.load %arg2[%c0_921, %825, %c0_922, %c2_923] : memref<1x18x4x18xf32, #tpu.memory_space<vmem>>, vector<1x1x4x16xf32>
    %827 = vector.shape_cast %826 : vector<1x1x4x16xf32> to vector<4x16xf32>
    %c32_924 = arith.constant 32 : index
    %c144_925 = arith.constant 144 : index
    %828 = vector.load %arg6[%c32_924, %c144_925] : memref<36x256xf32, #tpu.memory_space<vmem>>, vector<4x16xf32>
    tpu.vector_store %arg6[%c32_924, %c144_925], %827 {strides = array<i32>} : memref<36x256xf32, #tpu.memory_space<vmem>>, vector<4x16xf32>,
    %c10_i32_926 = arith.constant 10 : i32
    %829 = arith.addi %0, %c10_i32_926 : i32
    %c2_i32_927 = arith.constant 2 : i32
    %830 = arith.addi %829, %c2_i32_927 : i32
    %c0_928 = arith.constant 0 : index
    %831 = arith.index_cast %830 : i32 to index
    %c0_929 = arith.constant 0 : index
    %c2_930 = arith.constant 2 : index
    %832 = vector.load %arg2[%c0_928, %831, %c0_929, %c2_930] : memref<1x18x4x18xf32, #tpu.memory_space<vmem>>, vector<1x1x4x16xf32>
    %833 = vector.shape_cast %832 : vector<1x1x4x16xf32> to vector<4x16xf32>
    %c32_931 = arith.constant 32 : index
    %c160_932 = arith.constant 160 : index
    %834 = vector.load %arg6[%c32_931, %c160_932] : memref<36x256xf32, #tpu.memory_space<vmem>>, vector<4x16xf32>
    tpu.vector_store %arg6[%c32_931, %c160_932], %833 {strides = array<i32>} : memref<36x256xf32, #tpu.memory_space<vmem>>, vector<4x16xf32>,
    %c11_i32_933 = arith.constant 11 : i32
    %835 = arith.addi %0, %c11_i32_933 : i32
    %c2_i32_934 = arith.constant 2 : i32
    %836 = arith.addi %835, %c2_i32_934 : i32
    %c0_935 = arith.constant 0 : index
    %837 = arith.index_cast %836 : i32 to index
    %c0_936 = arith.constant 0 : index
    %c2_937 = arith.constant 2 : index
    %838 = vector.load %arg2[%c0_935, %837, %c0_936, %c2_937] : memref<1x18x4x18xf32, #tpu.memory_space<vmem>>, vector<1x1x4x16xf32>
    %839 = vector.shape_cast %838 : vector<1x1x4x16xf32> to vector<4x16xf32>
    %c32_938 = arith.constant 32 : index
    %c176_939 = arith.constant 176 : index
    %840 = vector.load %arg6[%c32_938, %c176_939] : memref<36x256xf32, #tpu.memory_space<vmem>>, vector<4x16xf32>
    tpu.vector_store %arg6[%c32_938, %c176_939], %839 {strides = array<i32>} : memref<36x256xf32, #tpu.memory_space<vmem>>, vector<4x16xf32>,
    %c12_i32_940 = arith.constant 12 : i32
    %841 = arith.addi %0, %c12_i32_940 : i32
    %c2_i32_941 = arith.constant 2 : i32
    %842 = arith.addi %841, %c2_i32_941 : i32
    %c0_942 = arith.constant 0 : index
    %843 = arith.index_cast %842 : i32 to index
    %c0_943 = arith.constant 0 : index
    %c2_944 = arith.constant 2 : index
    %844 = vector.load %arg2[%c0_942, %843, %c0_943, %c2_944] : memref<1x18x4x18xf32, #tpu.memory_space<vmem>>, vector<1x1x4x16xf32>
    %845 = vector.shape_cast %844 : vector<1x1x4x16xf32> to vector<4x16xf32>
    %c32_945 = arith.constant 32 : index
    %c192_946 = arith.constant 192 : index
    %846 = vector.load %arg6[%c32_945, %c192_946] : memref<36x256xf32, #tpu.memory_space<vmem>>, vector<4x16xf32>
    tpu.vector_store %arg6[%c32_945, %c192_946], %845 {strides = array<i32>} : memref<36x256xf32, #tpu.memory_space<vmem>>, vector<4x16xf32>,
    %c13_i32_947 = arith.constant 13 : i32
    %847 = arith.addi %0, %c13_i32_947 : i32
    %c2_i32_948 = arith.constant 2 : i32
    %848 = arith.addi %847, %c2_i32_948 : i32
    %c0_949 = arith.constant 0 : index
    %849 = arith.index_cast %848 : i32 to index
    %c0_950 = arith.constant 0 : index
    %c2_951 = arith.constant 2 : index
    %850 = vector.load %arg2[%c0_949, %849, %c0_950, %c2_951] : memref<1x18x4x18xf32, #tpu.memory_space<vmem>>, vector<1x1x4x16xf32>
    %851 = vector.shape_cast %850 : vector<1x1x4x16xf32> to vector<4x16xf32>
    %c32_952 = arith.constant 32 : index
    %c208_953 = arith.constant 208 : index
    %852 = vector.load %arg6[%c32_952, %c208_953] : memref<36x256xf32, #tpu.memory_space<vmem>>, vector<4x16xf32>
    tpu.vector_store %arg6[%c32_952, %c208_953], %851 {strides = array<i32>} : memref<36x256xf32, #tpu.memory_space<vmem>>, vector<4x16xf32>,
    %c14_i32_954 = arith.constant 14 : i32
    %853 = arith.addi %0, %c14_i32_954 : i32
    %c2_i32_955 = arith.constant 2 : i32
    %854 = arith.addi %853, %c2_i32_955 : i32
    %c0_956 = arith.constant 0 : index
    %855 = arith.index_cast %854 : i32 to index
    %c0_957 = arith.constant 0 : index
    %c2_958 = arith.constant 2 : index
    %856 = vector.load %arg2[%c0_956, %855, %c0_957, %c2_958] : memref<1x18x4x18xf32, #tpu.memory_space<vmem>>, vector<1x1x4x16xf32>
    %857 = vector.shape_cast %856 : vector<1x1x4x16xf32> to vector<4x16xf32>
    %c32_959 = arith.constant 32 : index
    %c224_960 = arith.constant 224 : index
    %858 = vector.load %arg6[%c32_959, %c224_960] : memref<36x256xf32, #tpu.memory_space<vmem>>, vector<4x16xf32>
    tpu.vector_store %arg6[%c32_959, %c224_960], %857 {strides = array<i32>} : memref<36x256xf32, #tpu.memory_space<vmem>>, vector<4x16xf32>,
    %c15_i32_961 = arith.constant 15 : i32
    %859 = arith.addi %0, %c15_i32_961 : i32
    %c2_i32_962 = arith.constant 2 : i32
    %860 = arith.addi %859, %c2_i32_962 : i32
    %c0_963 = arith.constant 0 : index
    %861 = arith.index_cast %860 : i32 to index
    %c0_964 = arith.constant 0 : index
    %c2_965 = arith.constant 2 : index
    %862 = vector.load %arg2[%c0_963, %861, %c0_964, %c2_965] : memref<1x18x4x18xf32, #tpu.memory_space<vmem>>, vector<1x1x4x16xf32>
    %863 = vector.shape_cast %862 : vector<1x1x4x16xf32> to vector<4x16xf32>
    %c32_966 = arith.constant 32 : index
    %c240_967 = arith.constant 240 : index
    %864 = vector.load %arg6[%c32_966, %c240_967] : memref<36x256xf32, #tpu.memory_space<vmem>>, vector<4x16xf32>
    tpu.vector_store %arg6[%c32_966, %c240_967], %863 {strides = array<i32>} : memref<36x256xf32, #tpu.memory_space<vmem>>, vector<4x16xf32>,
    %c0_968 = arith.constant 0 : index
    %c0_969 = arith.constant 0 : index
    %865 = vector.load %arg3[%c0_968, %c0_969] : memref<8x36xf32, #tpu.memory_space<vmem>>, vector<8x36xf32>
    %c0_970 = arith.constant 0 : index
    %c0_971 = arith.constant 0 : index
    %866 = vector.load %arg6[%c0_970, %c0_971] : memref<36x256xf32, #tpu.memory_space<vmem>>, vector<36x256xf32>
    %cst = arith.constant dense<0.000000e+00> : vector<8x256xf32>
    %867 = tpu.matmul %865, %866, %cst {dimension_numbers = #tpu.dot_dimension_numbers<[1], [0], [0], [1], [0, 0, 1, 1], [], []>} : vector<8x36xf32>, vector<36x256xf32>, vector<8x256xf32> -> vector<8x256xf32>
    %c0_972 = arith.constant 0 : index
    %c0_973 = arith.constant 0 : index
    %868 = vector.load %arg4[%c0_972, %c0_973] : memref<8x1xf32, #tpu.memory_space<vmem>>, vector<8x1xf32>
    %869 = vector.broadcast %868 : vector<8x1xf32> to vector<8x256xf32>
    %870 = arith.addf %867, %869 : vector<8x256xf32>
    %cst_974 = arith.constant 0.000000e+00 : f32
    %871 = vector.broadcast %cst_974 : f32 to vector<8x256xf32>
    %872 = arith.cmpf oge, %870, %871 : vector<8x256xf32>
    %cst_975 = arith.constant 0.00999999977 : f32
    %873 = vector.broadcast %cst_975 : f32 to vector<8x256xf32>
    %874 = arith.mulf %873, %870 : vector<8x256xf32>
    %875 = arith.select %872, %870, %874 : vector<8x256xi1>, vector<8x256xf32>
    %c0_976 = arith.constant 0 : index
    %c0_977 = arith.constant 0 : index
    %c0_978 = arith.constant 0 : index
    %876 = vector.load %arg5[%c0_976, %c0_977, %c0_978] : memref<1x8x256xf32, #tpu.memory_space<vmem>>, vector<1x8x256xf32>
    %877 = vector.shape_cast %876 : vector<1x8x256xf32> to vector<8x256xf32>
    %878 = vector.shape_cast %875 : vector<8x256xf32> to vector<1x8x256xf32>
    tpu.vector_store %arg5[%c0_976, %c0_977, %c0_978], %878 {strides = array<i32>} : memref<1x8x256xf32, #tpu.memory_space<vmem>>, vector<1x8x256xf32>,
    return
  }
  func.func @transform_0(%arg0: i32, %arg1: i32) -> (i32, i32, i32, i32) {
    %c0_i32 = arith.constant 0 : i32
    %c0_i32_0 = arith.constant 0 : i32
    %c0_i32_1 = arith.constant 0 : i32
    %c0_i32_2 = arith.constant 0 : i32
    return %arg0, %c0_i32, %c0_i32_0, %c0_i32_1 : i32, i32, i32, i32
  }
  func.func @transform_1(%arg0: i32, %arg1: i32) -> (i32, i32) {
    %c0_i32 = arith.constant 0 : i32
    %c0_i32_0 = arith.constant 0 : i32
    %c0_i32_1 = arith.constant 0 : i32
    return %c0_i32, %c0_i32_0 : i32, i32
  }
  func.func @transform_2(%arg0: i32, %arg1: i32) -> (i32, i32) {
    %c0_i32 = arith.constant 0 : i32
    %c0_i32_0 = arith.constant 0 : i32
    %c0_i32_1 = arith.constant 0 : i32
    return %c0_i32, %c0_i32_0 : i32, i32
  }
  func.func @transform_3(%arg0: i32, %arg1: i32) -> (i32, i32, i32) {
    %c0_i32 = arith.constant 0 : i32
    %c0_i32_0 = arith.constant 0 : i32
    return %arg0, %c0_i32, %arg1 : i32, i32, i32
  }
}

</mosaic_0001>

<llo_original>
// kernel: leaky_relu_conv2d.1
$region0: #{leaky_relu_conv2d.1}
  #allocation0 [shape = 'u32[]', space=smem, size = 0x4, offset = 0x4, fixed_abs, tag = 'smem constant byte address 0x4 - core index']
  #allocation1 [shape = 'u32[144,128]{1,0:T(1,128)}', space=vmem, size = 0x12000, scoped, tag = 'internal scratch']
  #allocation2 [shape = 'f32[36,256]{1,0:T(8,128)}', space=vmem, size = 0xa000, scoped, tag = 'scratch operand']
  %s0 = inlined_call_operand.vmem [shape: f32[2,18,4,18], index: 0, kind: input, shape index: {}]
  %s1 = inlined_call_operand.vmem [shape: f32[8,36], index: 1, kind: input, shape index: {}]
  %s2 = inlined_call_operand.vmem [shape: f32[8,1], index: 2, kind: input, shape index: {}]
  %s3 = inlined_call_operand.vmem [shape: f32[2,8,256], index: 3, kind: output, shape index: {}]
  %s4 = sld [smem:[#allocation0]]
  $region45: #{leaky_relu_conv2d.1} parent=0
    _
  %s6 = ssub.s32 1, %s4
  %s7 = scalar_select 0, %s6, %s4
  loop: start=0, step=1, limit=4
  $region2: #{leaky_relu_conv2d.1} parent=0 // loop_pre_header
    _
  $region3: #{leaky_relu_conv2d.1} parent=0 // loop_header
    %s9 = sphi 0, %s13
    %p10 = scmp.ge.s32.totalorder %s9, 4
    %s16 = sphi 0, %s28
    %s17 = sphi 0, %s24
    %s18 = sphi 0, %s16
    %s19 = sphi 0, %s17
    %s20 = sphi 0, %s18
    %s21 = sphi 0, %s19
    %s31 = sphi 0, %s33
    %s34 = sphi 0, %s31
    %s35 = sphi 0, %s34
    %s51 = sphi 0, %s35
    %s55 = sphi 0, %s55
    %s57 = sphi 0, %s55
    %s58 = sphi 0, %s57
    %s72 = sphi 0, %s58
    %s76 = sphi 0, %s76
    %s78 = sphi 0, %s76
    %s79 = sphi 0, %s78
    %s93 = sphi 0, %s79
    %s101 = sphi 0, %s103
    %s104 = sphi 0, %s101
    %s105 = sphi 0, %s104
    %s121 = sphi 0, %s105
  $region4: #{leaky_relu_conv2d.1} parent=0 // loop_header_branch
    %12 = sbr.rel (%p10) target = $region8
  $region5: #{leaky_relu_conv2d.1} parent=0 // loop_body
    %s14 = ssub.s32 %s9, 1
    %s15 = ssub.s32 %s9, 2
    %s22 = sadd.s32 1, %s17
    %p23 = scmp.ge.s32.totalorder %s22, 1
    %s24 = scalar_select %p23, 0, %s22
    %s25 = sadd.s32 1, %s16
    %s26 = scalar_select %p23, %s25, %s16
    %p27 = scmp.ge.s32.totalorder %s26, 2
    %s28 = scalar_select %p27, 0, %s26
    %s29 = ssub.s32 %s16, %s28
    %p30 = scmp.eq.s32.totalorder %s29, 0
    %s32 = sadd.s32 %s31, 1
    %s33 = scalar_select %p30, %s31, %s32
    %p36 = pneg %p30
    %p37 = scmp.eq.s32.totalorder %s9, 1
    %p38 = por %p36, %p37
    %p39 = scmp.ne.s32.totalorder %s31, %s34
    %p40 = scmp.eq.s32.totalorder %s9, 0
    %p41 = por %p39, %p40
    %p42 = scmp.ne.s32.totalorder %s31, %s34
    %p43 = scmp.eq.s32.totalorder %s14, 1
    %p44 = por %p42, %p43
    %p45 = scmp.ne.s32.totalorder %s34, %s35
    %p46 = scmp.eq.s32.totalorder %s14, 0
    %p47 = por %p45, %p46
    %p48 = scmp.ne.s32.totalorder %s34, %s35
    %p49 = scmp.eq.s32.totalorder %s15, 1
    %p50 = por %p48, %p49
    %p52 = scmp.ne.s32.totalorder %s35, %s51
    %p53 = scmp.eq.s32.totalorder %s15, 0
    %p54 = por %p52, %p53
    %s56 = sadd.s32 %s55, 1
    %p59 = scmp.eq.s32.totalorder %s9, 1
    %p60 = scmp.ne.s32.totalorder %s55, %s57
    %p61 = scmp.eq.s32.totalorder %s9, 0
    %p62 = por %p60, %p61
    %p63 = scmp.ne.s32.totalorder %s55, %s57
    %p64 = scmp.eq.s32.totalorder %s14, 1
    %p65 = por %p63, %p64
    %p66 = scmp.ne.s32.totalorder %s57, %s58
    %p67 = scmp.eq.s32.totalorder %s14, 0
    %p68 = por %p66, %p67
    %p69 = scmp.ne.s32.totalorder %s57, %s58
    %p70 = scmp.eq.s32.totalorder %s15, 1
    %p71 = por %p69, %p70
    %p73 = scmp.ne.s32.totalorder %s58, %s72
    %p74 = scmp.eq.s32.totalorder %s15, 0
    %p75 = por %p73, %p74
    %s77 = sadd.s32 %s76, 1
    %p80 = scmp.eq.s32.totalorder %s9, 1
    %p81 = scmp.ne.s32.totalorder %s76, %s78
    %p82 = scmp.eq.s32.totalorder %s9, 0
    %p83 = por %p81, %p82
    %p84 = scmp.ne.s32.totalorder %s76, %s78
    %p85 = scmp.eq.s32.totalorder %s14, 1
    %p86 = por %p84, %p85
    %p87 = scmp.ne.s32.totalorder %s78, %s79
    %p88 = scmp.eq.s32.totalorder %s14, 0
    %p89 = por %p87, %p88
    %p90 = scmp.ne.s32.totalorder %s78, %s79
    %p91 = scmp.eq.s32.totalorder %s15, 1
    %p92 = por %p90, %p91
    %p94 = scmp.ne.s32.totalorder %s79, %s93
    %p95 = scmp.eq.s32.totalorder %s15, 0
    %p96 = por %p94, %p95
    %s97 = ssub.s32 %s16, %s28
    %s98 = ssub.s32 %s17, %s24
    %s99 = sor.u32 %s97, %s98
    %p100 = scmp.eq.s32.totalorder %s99, 0
    %s102 = sadd.s32 %s101, 1
    %s103 = scalar_select %p100, %s101, %s102
    %p106 = pneg %p100
    %p107 = scmp.eq.s32.totalorder %s9, 1
    %p108 = por %p106, %p107
    %p109 = scmp.ne.s32.totalorder %s101, %s104
    %p110 = scmp.eq.s32.totalorder %s9, 0
    %p111 = por %p109, %p110
    %p112 = scmp.ne.s32.totalorder %s101, %s104
    %p113 = scmp.eq.s32.totalorder %s14, 1
    %p114 = por %p112, %p113
    %p115 = scmp.ne.s32.totalorder %s104, %s105
    %p116 = scmp.eq.s32.totalorder %s14, 0
    %p117 = por %p115, %p116
    %p118 = scmp.ne.s32.totalorder %s104, %s105
    %p119 = scmp.eq.s32.totalorder %s15, 1
    %p120 = por %p118, %p119
    %p122 = scmp.ne.s32.totalorder %s105, %s121
    %p123 = scmp.eq.s32.totalorder %s15, 0
    %p124 = por %p122, %p123
    %p125 = scmp.le.s32.totalorder 1, %s9
    %p126 = scmp.lt.s32.totalorder %s9, 3
    %p127 = pnand %p125, %p126
    %p128 = pneg %p127
    // Predicated region
    $region9: #{leaky_relu_conv2d.1} parent=5 // pred_check
      _
    $region10: #{leaky_relu_conv2d.1} parent=5 // pred_check_branch
      %130 = sbr.rel (%p127) target = $region12
    $region11: #{leaky_relu_conv2d.1} parent=5 // pred_region
      %s131 = ssub.s32 %s9, 1
      // Predicated region
      $region13: #{leaky_relu_conv2d.1} parent=11 // pred_check
        %p132 = pneg %p68
      $region14: #{leaky_relu_conv2d.1} parent=11 // pred_check_branch
        %134 = sbr.rel (%p132) target = $region16
      $region15: #{leaky_relu_conv2d.1} parent=11 // pred_region
        _
      $region16: #{leaky_relu_conv2d.1} parent=11 // pred_fallthru
        _
      // Predicated region
      $region17: #{leaky_relu_conv2d.1} parent=11 // pred_check
        %p135 = pneg %p89
      $region18: #{leaky_relu_conv2d.1} parent=11 // pred_check_branch
        %137 = sbr.rel (%p135) target = $region20
      $region19: #{leaky_relu_conv2d.1} parent=11 // pred_region
        _
      $region20: #{leaky_relu_conv2d.1} parent=11 // pred_fallthru
        _
    $region12: #{leaky_relu_conv2d.1} parent=5 // pred_fallthru
      _
    %p138 = scmp.lt.s32.totalorder %s9, 2
    // Predicated region
    $region21: #{leaky_relu_conv2d.1} parent=5 // pred_check
      %p139 = pneg %p138
    $region22: #{leaky_relu_conv2d.1} parent=5 // pred_check_branch
      %141 = sbr.rel (%p139) target = $region24
    $region23: #{leaky_relu_conv2d.1} parent=5 // pred_region
      // Predicated region
      $region25: #{leaky_relu_conv2d.1} parent=23 // pred_check
        %p142 = pneg %p41
      $region26: #{leaky_relu_conv2d.1} parent=23 // pred_check_branch
        %144 = sbr.rel (%p142) target = $region28
      $region27: #{leaky_relu_conv2d.1} parent=23 // pred_region
        %p145 = scmp.lt.s32.totalorder %s16, 1
        %s146 = scalar_select %p145, %s16, 1
        %s147 = smul.addr %s146, 18
        %s148 = smul.addr %s147, 4
        %s149 = scalar_lea.vmem %s0, %s148
      $region28: #{leaky_relu_conv2d.1} parent=23 // pred_fallthru
        _
    $region24: #{leaky_relu_conv2d.1} parent=5 // pred_fallthru
      _
    %p150 = scmp.le.s32.totalorder 1, %s9
    %p151 = scmp.lt.s32.totalorder %s9, 3
    %p152 = pnand %p150, %p151
    %p153 = pneg %p152
    // Predicated region
    $region29: #{leaky_relu_conv2d.1} parent=5 // pred_check
      _
    $region30: #{leaky_relu_conv2d.1} parent=5 // pred_check_branch
      %155 = sbr.rel (%p152) target = $region32
    $region31: #{leaky_relu_conv2d.1} parent=5 // pred_region
      %s156 = ssub.s32 %s9, 1
      %p157 = scmp.lt.s32.totalorder %s18, 1
      %s158 = scalar_select %p157, %s18, 1
      %s159 = smul.addr %s158, 18
      %s160 = smul.addr %s159, 4
      %s161 = scalar_lea.vmem %s0, %s160
      %p162 = pneg %p47
      %p163 = pneg %p44
      %p164 = pneg %p68
      %p165 = pneg %p65
      %p166 = pneg %p89
      %p167 = pneg %p86
      %p168 = pneg %p117
      %p169 = pneg %p114
      %s170 = smul.u32 2, %s19
      %p171 = scmp.lt.s32.totalorder %s18, 1
      %s172 = scalar_select %p171, %s18, 1
      %p173 = scmp.lt.s32.totalorder %s170, 1
      %s174 = scalar_select %p173, %s170, 1
      %s175 = smul.addr %s172, 2
      %s176 = sadd.s32 %s174, %s175
      %s177 = smul.addr %s176, 8
      %s178 = scalar_lea.vmem %s3, %s177
      %p179 = scmp.lt.s32.totalorder %s18, 1
      %s180 = scalar_select %p179, %s18, 1
      %s181 = smul.addr %s180, 18
      %s182 = smul.addr %s181, 4
      %s183 = scalar_lea.vmem %s0, %s182
      %s184 = smul.u32 2, %s19
      %p185 = scmp.lt.s32.totalorder %s18, 1
      %s186 = scalar_select %p185, %s18, 1
      %p187 = scmp.lt.s32.totalorder %s184, 1
      %s188 = scalar_select %p187, %s184, 1
      %s189 = smul.addr %s186, 2
      %s190 = sadd.s32 %s188, %s189
      %s191 = smul.addr %s190, 8
      %s192 = scalar_lea.vmem %s3, %s191
      %s193 = smul.u32 2, %s19
      %s194 = smul.u32 %s19, 16
      %s195 = smul.u32 %s194, 4
      %s196 = scalar_lea.vmem %s183, %s195
      %v197 = vld [vmem:[%s196] sm:$0xf]
      %vm198 = vcmask 125952
      %199 = vst.msk [vmem:[#allocation2] sm:$0xf] %vm198, %v197
      %s200 = sadd.s32 %s194, 1
      %s201 = smul.u32 %s200, 4
      %s202 = scalar_lea.vmem %s183, %s201
      %v203 = vld [vmem:[%s202] sm:$0xf]
      %205 = vrot.lane.b32.xlu0 %v203, 16
      %v206 = vpop.permute.xlu0 %205
      %vm208 = vcmask 257152
      %209 = vst.msk [vmem:[#allocation2] sm:$0xf] %vm208, %v206
      %s210 = sadd.s32 %s194, 2
      %s211 = smul.u32 %s210, 4
      %s212 = scalar_lea.vmem %s183, %s211
      %v213 = vld [vmem:[%s212] sm:$0xf]
      %215 = vrot.lane.b32.xlu0 %v213, 32
      %v216 = vpop.permute.xlu0 %215
      %vm218 = vcmask 388352
      %219 = vst.msk [vmem:[#allocation2] sm:$0xf] %vm218, %v216
      %s220 = sadd.s32 %s194, 3
      %s221 = smul.u32 %s220, 4
      %s222 = scalar_lea.vmem %s183, %s221
      %v223 = vld [vmem:[%s222] sm:$0xf]
      %225 = vrot.lane.b32.xlu0 %v223, 48
      %v226 = vpop.permute.xlu0 %225
      %vm228 = vcmask 519552
      %229 = vst.msk [vmem:[#allocation2] sm:$0xf] %vm228, %v226
      %s230 = sadd.s32 %s194, 4
      %s231 = smul.u32 %s230, 4
      %s232 = scalar_lea.vmem %s183, %s231
      %v233 = vld [vmem:[%s232] sm:$0xf]
      %235 = vrot.lane.b32.xlu0 %v233, 64
      %v236 = vpop.permute.xlu0 %235
      %vm238 = vcmask 650752
      %239 = vst.msk [vmem:[#allocation2] sm:$0xf] %vm238, %v236
      %s240 = sadd.s32 %s194, 5
      %s241 = smul.u32 %s240, 4
      %s242 = scalar_lea.vmem %s183, %s241
      %v243 = vld [vmem:[%s242] sm:$0xf]
      %245 = vrot.lane.b32.xlu0 %v243, 80
      %v246 = vpop.permute.xlu0 %245
      %vm248 = vcmask 781952
      %249 = vst.msk [vmem:[#allocation2] sm:$0xf] %vm248, %v246
      %s250 = sadd.s32 %s194, 6
      %s251 = smul.u32 %s250, 4
      %s252 = scalar_lea.vmem %s183, %s251
      %v253 = vld [vmem:[%s252] sm:$0xf]
      %255 = vrot.lane.b32.xlu0 %v253, 96
      %v256 = vpop.permute.xlu0 %255
      %vm258 = vcmask 913152
      %259 = vst.msk [vmem:[#allocation2] sm:$0xf] %vm258, %v256
      %s260 = sadd.s32 %s194, 7
      %s261 = smul.u32 %s260, 4
      %s262 = scalar_lea.vmem %s183, %s261
      %v263 = vld [vmem:[%s262] sm:$0xf]
      %265 = vrot.lane.b32.xlu0 %v263, 112
      %v266 = vpop.permute.xlu0 %265
      %vm268 = vcmask 1044352
      %269 = vst.msk [vmem:[#allocation2] sm:$0xf] %vm268, %v266
      %s270 = sadd.s32 %s194, 8
      %s271 = smul.u32 %s270, 4
      %s272 = scalar_lea.vmem %s183, %s271
      %v273 = vld [vmem:[%s272] sm:$0xf]
      %274 = vst.msk [vmem:[#allocation2 + $0x8] sm:$0xf] %vm198, %v273
      %s275 = sadd.s32 %s194, 9
      %s276 = smul.u32 %s275, 4
      %s277 = scalar_lea.vmem %s183, %s276
      %v278 = vld [vmem:[%s277] sm:$0xf]
      %280 = vrot.lane.b32.xlu0 %v278, 16
      %v281 = vpop.permute.xlu0 %280
      %283 = vst.msk [vmem:[#allocation2 + $0x8] sm:$0xf] %vm208, %v281
      %s284 = sadd.s32 %s194, 10
      %s285 = smul.u32 %s284, 4
      %s286 = scalar_lea.vmem %s183, %s285
      %v287 = vld [vmem:[%s286] sm:$0xf]
      %289 = vrot.lane.b32.xlu0 %v287, 32
      %v290 = vpop.permute.xlu0 %289
      %292 = vst.msk [vmem:[#allocation2 + $0x8] sm:$0xf] %vm218, %v290
      %s293 = sadd.s32 %s194, 11
      %s294 = smul.u32 %s293, 4
      %s295 = scalar_lea.vmem %s183, %s294
      %v296 = vld [vmem:[%s295] sm:$0xf]
      %298 = vrot.lane.b32.xlu0 %v296, 48
      %v299 = vpop.permute.xlu0 %298
      %301 = vst.msk [vmem:[#allocation2 + $0x8] sm:$0xf] %vm228, %v299
      %s302 = sadd.s32 %s194, 12
      %s303 = smul.u32 %s302, 4
      %s304 = scalar_lea.vmem %s183, %s303
      %v305 = vld [vmem:[%s304] sm:$0xf]
      %307 = vrot.lane.b32.xlu0 %v305, 64
      %v308 = vpop.permute.xlu0 %307
      %310 = vst.msk [vmem:[#allocation2 + $0x8] sm:$0xf] %vm238, %v308
      %s311 = sadd.s32 %s194, 13
      %s312 = smul.u32 %s311, 4
      %s313 = scalar_lea.vmem %s183, %s312
      %v314 = vld [vmem:[%s313] sm:$0xf]
      %316 = vrot.lane.b32.xlu0 %v314, 80
      %v317 = vpop.permute.xlu0 %316
      %319 = vst.msk [vmem:[#allocation2 + $0x8] sm:$0xf] %vm248, %v317
      %s320 = sadd.s32 %s194, 14
      %s321 = smul.u32 %s320, 4
      %s322 = scalar_lea.vmem %s183, %s321
      %v323 = vld [vmem:[%s322] sm:$0xf]
      %325 = vrot.lane.b32.xlu0 %v323, 96
      %v326 = vpop.permute.xlu0 %325
      %328 = vst.msk [vmem:[#allocation2 + $0x8] sm:$0xf] %vm258, %v326
      %s329 = sadd.s32 %s194, 15
      %s330 = smul.u32 %s329, 4
      %s331 = scalar_lea.vmem %s183, %s330
      %v332 = vld [vmem:[%s331] sm:$0xf]
      %334 = vrot.lane.b32.xlu0 %v332, 112
      %v335 = vpop.permute.xlu0 %334
      %337 = vst.msk [vmem:[#allocation2 + $0x8] sm:$0xf] %vm268, %v335
      %v338 = vld [vmem:[%s196] sm:$0xf]
      %v340 = vrot.slane %v338, 4
      %341 = vrot.lane.b32.xlu0 %v340, 127
      %v342 = vpop.permute.xlu0 %341
      %vm344 = vcmask 130052
      %345 = vst.msk [vmem:[#allocation2] sm:$0xf0] %vm344, %v342
      %v346 = vld [vmem:[%s202] sm:$0xf]
      %v348 = vrot.slane %v346, 4
      %349 = vrot.lane.b32.xlu0 %v348, 15
      %v350 = vpop.permute.xlu0 %349
      %vm352 = vcmask 261252
      %353 = vst.msk [vmem:[#allocation2] sm:$0xf0] %vm352, %v350
      %v354 = vld [vmem:[%s212] sm:$0xf]
      %v356 = vrot.slane %v354, 4
      %357 = vrot.lane.b32.xlu0 %v356, 31
      %v358 = vpop.permute.xlu0 %357
      %vm360 = vcmask 392452
      %361 = vst.msk [vmem:[#allocation2] sm:$0xf0] %vm360, %v358
      %v362 = vld [vmem:[%s222] sm:$0xf]
      %v364 = vrot.slane %v362, 4
      %365 = vrot.lane.b32.xlu0 %v364, 47
      %v366 = vpop.permute.xlu0 %365
      %vm368 = vcmask 523652
      %369 = vst.msk [vmem:[#allocation2] sm:$0xf0] %vm368, %v366
      %v370 = vld [vmem:[%s232] sm:$0xf]
      %v372 = vrot.slane %v370, 4
      %373 = vrot.lane.b32.xlu0 %v372, 63
      %v374 = vpop.permute.xlu0 %373
      %vm376 = vcmask 654852
      %377 = vst.msk [vmem:[#allocation2] sm:$0xf0] %vm376, %v374
      %v378 = vld [vmem:[%s242] sm:$0xf]
      %v380 = vrot.slane %v378, 4
      %381 = vrot.lane.b32.xlu0 %v380, 79
      %v382 = vpop.permute.xlu0 %381
      %vm384 = vcmask 786052
      %385 = vst.msk [vmem:[#allocation2] sm:$0xf0] %vm384, %v382
      %v386 = vld [vmem:[%s252] sm:$0xf]
      %v388 = vrot.slane %v386, 4
      %389 = vrot.lane.b32.xlu0 %v388, 95
      %v390 = vpop.permute.xlu0 %389
      %vm392 = vcmask 917252
      %393 = vst.msk [vmem:[#allocation2] sm:$0xf0] %vm392, %v390
      %v394 = vld [vmem:[%s262] sm:$0xf]
      %v396 = vrot.slane %v394, 4
      %397 = vrot.lane.b32.xlu0 %v396, 111
      %v398 = vpop.permute.xlu0 %397
      %vm400 = vcmask 1048452
      %401 = vst.msk [vmem:[#allocation2] sm:$0xf0] %vm400, %v398
      %v402 = vld [vmem:[%s272] sm:$0xf]
      %v404 = vrot.slane %v402, 4
      %405 = vrot.lane.b32.xlu0 %v404, 127
      %v406 = vpop.permute.xlu0 %405
      %408 = vst.msk [vmem:[#allocation2 + $0x8] sm:$0xf0] %vm344, %v406
      %v409 = vld [vmem:[%s277] sm:$0xf]
      %v411 = vrot.slane %v409, 4
      %412 = vrot.lane.b32.xlu0 %v411, 15
      %v413 = vpop.permute.xlu0 %412
      %415 = vst.msk [vmem:[#allocation2 + $0x8] sm:$0xf0] %vm352, %v413
      %v416 = vld [vmem:[%s286] sm:$0xf]
      %v418 = vrot.slane %v416, 4
      %419 = vrot.lane.b32.xlu0 %v418, 31
      %v420 = vpop.permute.xlu0 %419
      %422 = vst.msk [vmem:[#allocation2 + $0x8] sm:$0xf0] %vm360, %v420
      %v423 = vld [vmem:[%s295] sm:$0xf]
      %v425 = vrot.slane %v423, 4
      %426 = vrot.lane.b32.xlu0 %v425, 47
      %v427 = vpop.permute.xlu0 %426
      %429 = vst.msk [vmem:[#allocation2 + $0x8] sm:$0xf0] %vm368, %v427
      %v430 = vld [vmem:[%s304] sm:$0xf]
      %v432 = vrot.slane %v430, 4
      %433 = vrot.lane.b32.xlu0 %v432, 63
      %v434 = vpop.permute.xlu0 %433
      %436 = vst.msk [vmem:[#allocation2 + $0x8] sm:$0xf0] %vm376, %v434
      %v437 = vld [vmem:[%s313] sm:$0xf]
      %v439 = vrot.slane %v437, 4
      %440 = vrot.lane.b32.xlu0 %v439, 79
      %v441 = vpop.permute.xlu0 %440
      %443 = vst.msk [vmem:[#allocation2 + $0x8] sm:$0xf0] %vm384, %v441
      %v444 = vld [vmem:[%s322] sm:$0xf]
      %v446 = vrot.slane %v444, 4
      %447 = vrot.lane.b32.xlu0 %v446, 95
      %v448 = vpop.permute.xlu0 %447
      %450 = vst.msk [vmem:[#allocation2 + $0x8] sm:$0xf0] %vm392, %v448
      %v451 = vld [vmem:[%s331] sm:$0xf]
      %v453 = vrot.slane %v451, 4
      %454 = vrot.lane.b32.xlu0 %v453, 111
      %v455 = vpop.permute.xlu0 %454
      %457 = vst.msk [vmem:[#allocation2 + $0x8] sm:$0xf0] %vm400, %v455
      %v458 = vld [vmem:[%s196] sm:$0xf]
      %460 = vrot.lane.b32.xlu0 %v458, 126
      %v461 = vpop.permute.xlu0 %460
      %463 = vst.msk [vmem:[#allocation2 + $0x10] sm:$0xf] %vm198, %v461
      %v464 = vld [vmem:[%s202] sm:$0xf]
      %466 = vrot.lane.b32.xlu0 %v464, 14
      %v467 = vpop.permute.xlu0 %466
      %469 = vst.msk [vmem:[#allocation2 + $0x10] sm:$0xf] %vm208, %v467
      %v470 = vld [vmem:[%s212] sm:$0xf]
      %472 = vrot.lane.b32.xlu0 %v470, 30
      %v473 = vpop.permute.xlu0 %472
      %475 = vst.msk [vmem:[#allocation2 + $0x10] sm:$0xf] %vm218, %v473
      %v476 = vld [vmem:[%s222] sm:$0xf]
      %478 = vrot.lane.b32.xlu0 %v476, 46
      %v479 = vpop.permute.xlu0 %478
      %481 = vst.msk [vmem:[#allocation2 + $0x10] sm:$0xf] %vm228, %v479
      %v482 = vld [vmem:[%s232] sm:$0xf]
      %484 = vrot.lane.b32.xlu0 %v482, 62
      %v485 = vpop.permute.xlu0 %484
      %487 = vst.msk [vmem:[#allocation2 + $0x10] sm:$0xf] %vm238, %v485
      %v488 = vld [vmem:[%s242] sm:$0xf]
      %490 = vrot.lane.b32.xlu0 %v488, 78
      %v491 = vpop.permute.xlu0 %490
      %493 = vst.msk [vmem:[#allocation2 + $0x10] sm:$0xf] %vm248, %v491
      %v494 = vld [vmem:[%s252] sm:$0xf]
      %496 = vrot.lane.b32.xlu0 %v494, 94
      %v497 = vpop.permute.xlu0 %496
      %499 = vst.msk [vmem:[#allocation2 + $0x10] sm:$0xf] %vm258, %v497
      %v500 = vld [vmem:[%s262] sm:$0xf]
      %502 = vrot.lane.b32.xlu0 %v500, 110
      %v503 = vpop.permute.xlu0 %502
      %505 = vst.msk [vmem:[#allocation2 + $0x10] sm:$0xf] %vm268, %v503
      %v506 = vld [vmem:[%s272] sm:$0xf]
      %508 = vrot.lane.b32.xlu0 %v506, 126
      %v509 = vpop.permute.xlu0 %508
      %511 = vst.msk [vmem:[#allocation2 + $0x18] sm:$0xf] %vm198, %v509
      %v512 = vld [vmem:[%s277] sm:$0xf]
      %514 = vrot.lane.b32.xlu0 %v512, 14
      %v515 = vpop.permute.xlu0 %514
      %517 = vst.msk [vmem:[#allocation2 + $0x18] sm:$0xf] %vm208, %v515
      %v518 = vld [vmem:[%s286] sm:$0xf]
      %520 = vrot.lane.b32.xlu0 %v518, 30
      %v521 = vpop.permute.xlu0 %520
      %523 = vst.msk [vmem:[#allocation2 + $0x18] sm:$0xf] %vm218, %v521
      %v524 = vld [vmem:[%s295] sm:$0xf]
      %526 = vrot.lane.b32.xlu0 %v524, 46
      %v527 = vpop.permute.xlu0 %526
      %529 = vst.msk [vmem:[#allocation2 + $0x18] sm:$0xf] %vm228, %v527
      %v530 = vld [vmem:[%s304] sm:$0xf]
      %532 = vrot.lane.b32.xlu0 %v530, 62
      %v533 = vpop.permute.xlu0 %532
      %535 = vst.msk [vmem:[#allocation2 + $0x18] sm:$0xf] %vm238, %v533
      %v536 = vld [vmem:[%s313] sm:$0xf]
      %538 = vrot.lane.b32.xlu0 %v536, 78
      %v539 = vpop.permute.xlu0 %538
      %541 = vst.msk [vmem:[#allocation2 + $0x18] sm:$0xf] %vm248, %v539
      %v542 = vld [vmem:[%s322] sm:$0xf]
      %544 = vrot.lane.b32.xlu0 %v542, 94
      %v545 = vpop.permute.xlu0 %544
      %547 = vst.msk [vmem:[#allocation2 + $0x18] sm:$0xf] %vm258, %v545
      %v548 = vld [vmem:[%s331] sm:$0xf]
      %550 = vrot.lane.b32.xlu0 %v548, 110
      %v551 = vpop.permute.xlu0 %550
      %553 = vst.msk [vmem:[#allocation2 + $0x18] sm:$0xf] %vm268, %v551
      %v554 = vld [vmem:[%s202] sm:$0xf]
      %v556 = vrot.slane %v554, 4
      %558 = vst.msk [vmem:[#allocation2 + $0x10] sm:$0xf0] %vm344, %v556
      %v559 = vld [vmem:[%s212] sm:$0xf]
      %v561 = vrot.slane %v559, 4
      %562 = vrot.lane.b32.xlu0 %v561, 16
      %v563 = vpop.permute.xlu0 %562
      %565 = vst.msk [vmem:[#allocation2 + $0x10] sm:$0xf0] %vm352, %v563
      %v566 = vld [vmem:[%s222] sm:$0xf]
      %v568 = vrot.slane %v566, 4
      %569 = vrot.lane.b32.xlu0 %v568, 32
      %v570 = vpop.permute.xlu0 %569
      %572 = vst.msk [vmem:[#allocation2 + $0x10] sm:$0xf0] %vm360, %v570
      %v573 = vld [vmem:[%s232] sm:$0xf]
      %v575 = vrot.slane %v573, 4
      %576 = vrot.lane.b32.xlu0 %v575, 48
      %v577 = vpop.permute.xlu0 %576
      %579 = vst.msk [vmem:[#allocation2 + $0x10] sm:$0xf0] %vm368, %v577
      %v580 = vld [vmem:[%s242] sm:$0xf]
      %v582 = vrot.slane %v580, 4
      %583 = vrot.lane.b32.xlu0 %v582, 64
      %v584 = vpop.permute.xlu0 %583
      %586 = vst.msk [vmem:[#allocation2 + $0x10] sm:$0xf0] %vm376, %v584
      %v587 = vld [vmem:[%s252] sm:$0xf]
      %v589 = vrot.slane %v587, 4
      %590 = vrot.lane.b32.xlu0 %v589, 80
      %v591 = vpop.permute.xlu0 %590
      %593 = vst.msk [vmem:[#allocation2 + $0x10] sm:$0xf0] %vm384, %v591
      %v594 = vld [vmem:[%s262] sm:$0xf]
      %v596 = vrot.slane %v594, 4
      %597 = vrot.lane.b32.xlu0 %v596, 96
      %v598 = vpop.permute.xlu0 %597
      %600 = vst.msk [vmem:[#allocation2 + $0x10] sm:$0xf0] %vm392, %v598
      %v601 = vld [vmem:[%s272] sm:$0xf]
      %v603 = vrot.slane %v601, 4
      %604 = vrot.lane.b32.xlu0 %v603, 112
      %v605 = vpop.permute.xlu0 %604
      %607 = vst.msk [vmem:[#allocation2 + $0x10] sm:$0xf0] %vm400, %v605
      %v608 = vld [vmem:[%s277] sm:$0xf]
      %v610 = vrot.slane %v608, 4
      %612 = vst.msk [vmem:[#allocation2 + $0x18] sm:$0xf0] %vm344, %v610
      %v613 = vld [vmem:[%s286] sm:$0xf]
      %v615 = vrot.slane %v613, 4
      %616 = vrot.lane.b32.xlu0 %v615, 16
      %v617 = vpop.permute.xlu0 %616
      %619 = vst.msk [vmem:[#allocation2 + $0x18] sm:$0xf0] %vm352, %v617
      %v620 = vld [vmem:[%s295] sm:$0xf]
      %v622 = vrot.slane %v620, 4
      %623 = vrot.lane.b32.xlu0 %v622, 32
      %v624 = vpop.permute.xlu0 %623
      %626 = vst.msk [vmem:[#allocation2 + $0x18] sm:$0xf0] %vm360, %v624
      %v627 = vld [vmem:[%s304] sm:$0xf]
      %v629 = vrot.slane %v627, 4
      %630 = vrot.lane.b32.xlu0 %v629, 48
      %v631 = vpop.permute.xlu0 %630
      %633 = vst.msk [vmem:[#allocation2 + $0x18] sm:$0xf0] %vm368, %v631
      %v634 = vld [vmem:[%s313] sm:$0xf]
      %v636 = vrot.slane %v634, 4
      %637 = vrot.lane.b32.xlu0 %v636, 64
      %v638 = vpop.permute.xlu0 %637
      %640 = vst.msk [vmem:[#allocation2 + $0x18] sm:$0xf0] %vm376, %v638
      %v641 = vld [vmem:[%s322] sm:$0xf]
      %v643 = vrot.slane %v641, 4
      %644 = vrot.lane.b32.xlu0 %v643, 80
      %v645 = vpop.permute.xlu0 %644
      %647 = vst.msk [vmem:[#allocation2 + $0x18] sm:$0xf0] %vm384, %v645
      %v648 = vld [vmem:[%s331] sm:$0xf]
      %v650 = vrot.slane %v648, 4
      %651 = vrot.lane.b32.xlu0 %v650, 96
      %v652 = vpop.permute.xlu0 %651
      %654 = vst.msk [vmem:[#allocation2 + $0x18] sm:$0xf0] %vm392, %v652
      %s655 = sadd.s32 %s194, 16
      %s656 = smul.u32 %s655, 4
      %s657 = scalar_lea.vmem %s183, %s656
      %v658 = vld [vmem:[%s657] sm:$0xf]
      %v660 = vrot.slane %v658, 4
      %661 = vrot.lane.b32.xlu0 %v660, 112
      %v662 = vpop.permute.xlu0 %661
      %664 = vst.msk [vmem:[#allocation2 + $0x18] sm:$0xf0] %vm400, %v662
      %v665 = vld [vmem:[%s202] sm:$0xf]
      %667 = vrot.lane.b32.xlu0 %v665, 127
      %v668 = vpop.permute.xlu0 %667
      %670 = vst.msk [vmem:[#allocation2 + $0x20] sm:$0xf] %vm198, %v668
      %v671 = vld [vmem:[%s212] sm:$0xf]
      %673 = vrot.lane.b32.xlu0 %v671, 15
      %v674 = vpop.permute.xlu0 %673
      %676 = vst.msk [vmem:[#allocation2 + $0x20] sm:$0xf] %vm208, %v674
      %v677 = vld [vmem:[%s222] sm:$0xf]
      %679 = vrot.lane.b32.xlu0 %v677, 31
      %v680 = vpop.permute.xlu0 %679
      %682 = vst.msk [vmem:[#allocation2 + $0x20] sm:$0xf] %vm218, %v680
      %v683 = vld [vmem:[%s232] sm:$0xf]
      %685 = vrot.lane.b32.xlu0 %v683, 47
      %v686 = vpop.permute.xlu0 %685
      %688 = vst.msk [vmem:[#allocation2 + $0x20] sm:$0xf] %vm228, %v686
      %v689 = vld [vmem:[%s242] sm:$0xf]
      %691 = vrot.lane.b32.xlu0 %v689, 63
      %v692 = vpop.permute.xlu0 %691
      %694 = vst.msk [vmem:[#allocation2 + $0x20] sm:$0xf] %vm238, %v692
      %v695 = vld [vmem:[%s252] sm:$0xf]
      %697 = vrot.lane.b32.xlu0 %v695, 79
      %v698 = vpop.permute.xlu0 %697
      %700 = vst.msk [vmem:[#allocation2 + $0x20] sm:$0xf] %vm248, %v698
      %v701 = vld [vmem:[%s262] sm:$0xf]
      %703 = vrot.lane.b32.xlu0 %v701, 95
      %v704 = vpop.permute.xlu0 %703
      %706 = vst.msk [vmem:[#allocation2 + $0x20] sm:$0xf] %vm258, %v704
      %v707 = vld [vmem:[%s272] sm:$0xf]
      %709 = vrot.lane.b32.xlu0 %v707, 111
      %v710 = vpop.permute.xlu0 %709
      %712 = vst.msk [vmem:[#allocation2 + $0x20] sm:$0xf] %vm268, %v710
      %v713 = vld [vmem:[%s277] sm:$0xf]
      %715 = vrot.lane.b32.xlu0 %v713, 127
      %v716 = vpop.permute.xlu0 %715
      %718 = vst.msk [vmem:[#allocation2 + $0x28] sm:$0xf] %vm198, %v716
      %v719 = vld [vmem:[%s286] sm:$0xf]
      %721 = vrot.lane.b32.xlu0 %v719, 15
      %v722 = vpop.permute.xlu0 %721
      %724 = vst.msk [vmem:[#allocation2 + $0x28] sm:$0xf] %vm208, %v722
      %v725 = vld [vmem:[%s295] sm:$0xf]
      %727 = vrot.lane.b32.xlu0 %v725, 31
      %v728 = vpop.permute.xlu0 %727
      %730 = vst.msk [vmem:[#allocation2 + $0x28] sm:$0xf] %vm218, %v728
      %v731 = vld [vmem:[%s304] sm:$0xf]
      %733 = vrot.lane.b32.xlu0 %v731, 47
      %v734 = vpop.permute.xlu0 %733
      %736 = vst.msk [vmem:[#allocation2 + $0x28] sm:$0xf] %vm228, %v734
      %v737 = vld [vmem:[%s313] sm:$0xf]
      %739 = vrot.lane.b32.xlu0 %v737, 63
      %v740 = vpop.permute.xlu0 %739
      %742 = vst.msk [vmem:[#allocation2 + $0x28] sm:$0xf] %vm238, %v740
      %v743 = vld [vmem:[%s322] sm:$0xf]
      %745 = vrot.lane.b32.xlu0 %v743, 79
      %v746 = vpop.permute.xlu0 %745
      %748 = vst.msk [vmem:[#allocation2 + $0x28] sm:$0xf] %vm248, %v746
      %v749 = vld [vmem:[%s331] sm:$0xf]
      %751 = vrot.lane.b32.xlu0 %v749, 95
      %v752 = vpop.permute.xlu0 %751
      %754 = vst.msk [vmem:[#allocation2 + $0x28] sm:$0xf] %vm258, %v752
      %v755 = vld [vmem:[%s657] sm:$0xf]
      %757 = vrot.lane.b32.xlu0 %v755, 111
      %v758 = vpop.permute.xlu0 %757
      %760 = vst.msk [vmem:[#allocation2 + $0x28] sm:$0xf] %vm268, %v758
      %v761 = vld [vmem:[%s202] sm:$0xf]
      %v763 = vrot.slane %v761, 4
      %764 = vrot.lane.b32.xlu0 %v763, 126
      %v765 = vpop.permute.xlu0 %764
      %767 = vst.msk [vmem:[#allocation2 + $0x20] sm:$0xf0] %vm344, %v765
      %v768 = vld [vmem:[%s212] sm:$0xf]
      %v770 = vrot.slane %v768, 4
      %771 = vrot.lane.b32.xlu0 %v770, 14
      %v772 = vpop.permute.xlu0 %771
      %774 = vst.msk [vmem:[#allocation2 + $0x20] sm:$0xf0] %vm352, %v772
      %v775 = vld [vmem:[%s222] sm:$0xf]
      %v777 = vrot.slane %v775, 4
      %778 = vrot.lane.b32.xlu0 %v777, 30
      %v779 = vpop.permute.xlu0 %778
      %781 = vst.msk [vmem:[#allocation2 + $0x20] sm:$0xf0] %vm360, %v779
      %v782 = vld [vmem:[%s232] sm:$0xf]
      %v784 = vrot.slane %v782, 4
      %785 = vrot.lane.b32.xlu0 %v784, 46
      %v786 = vpop.permute.xlu0 %785
      %788 = vst.msk [vmem:[#allocation2 + $0x20] sm:$0xf0] %vm368, %v786
      %v789 = vld [vmem:[%s242] sm:$0xf]
      %v791 = vrot.slane %v789, 4
      %792 = vrot.lane.b32.xlu0 %v791, 62
      %v793 = vpop.permute.xlu0 %792
      %795 = vst.msk [vmem:[#allocation2 + $0x20] sm:$0xf0] %vm376, %v793
      %v796 = vld [vmem:[%s252] sm:$0xf]
      %v798 = vrot.slane %v796, 4
      %799 = vrot.lane.b32.xlu0 %v798, 78
      %v800 = vpop.permute.xlu0 %799
      %802 = vst.msk [vmem:[#allocation2 + $0x20] sm:$0xf0] %vm384, %v800
      %v803 = vld [vmem:[%s262] sm:$0xf]
      %v805 = vrot.slane %v803, 4
      %806 = vrot.lane.b32.xlu0 %v805, 94
      %v807 = vpop.permute.xlu0 %806
      %809 = vst.msk [vmem:[#allocation2 + $0x20] sm:$0xf0] %vm392, %v807
      %v810 = vld [vmem:[%s272] sm:$0xf]
      %v812 = vrot.slane %v810, 4
      %813 = vrot.lane.b32.xlu0 %v812, 110
      %v814 = vpop.permute.xlu0 %813
      %816 = vst.msk [vmem:[#allocation2 + $0x20] sm:$0xf0] %vm400, %v814
      %v817 = vld [vmem:[%s277] sm:$0xf]
      %v819 = vrot.slane %v817, 4
      %820 = vrot.lane.b32.xlu0 %v819, 126
      %v821 = vpop.permute.xlu0 %820
      %823 = vst.msk [vmem:[#allocation2 + $0x28] sm:$0xf0] %vm344, %v821
      %v824 = vld [vmem:[%s286] sm:$0xf]
      %v826 = vrot.slane %v824, 4
      %827 = vrot.lane.b32.xlu0 %v826, 14
      %v828 = vpop.permute.xlu0 %827
      %830 = vst.msk [vmem:[#allocation2 + $0x28] sm:$0xf0] %vm352, %v828
      %v831 = vld [vmem:[%s295] sm:$0xf]
      %v833 = vrot.slane %v831, 4
      %834 = vrot.lane.b32.xlu0 %v833, 30
      %v835 = vpop.permute.xlu0 %834
      %837 = vst.msk [vmem:[#allocation2 + $0x28] sm:$0xf0] %vm360, %v835
      %v838 = vld [vmem:[%s304] sm:$0xf]
      %v840 = vrot.slane %v838, 4
      %841 = vrot.lane.b32.xlu0 %v840, 46
      %v842 = vpop.permute.xlu0 %841
      %844 = vst.msk [vmem:[#allocation2 + $0x28] sm:$0xf0] %vm368, %v842
      %v845 = vld [vmem:[%s313] sm:$0xf]
      %v847 = vrot.slane %v845, 4
      %848 = vrot.lane.b32.xlu0 %v847, 62
      %v849 = vpop.permute.xlu0 %848
      %851 = vst.msk [vmem:[#allocation2 + $0x28] sm:$0xf0] %vm376, %v849
      %v852 = vld [vmem:[%s322] sm:$0xf]
      %v854 = vrot.slane %v852, 4
      %855 = vrot.lane.b32.xlu0 %v854, 78
      %v856 = vpop.permute.xlu0 %855
      %858 = vst.msk [vmem:[#allocation2 + $0x28] sm:$0xf0] %vm384, %v856
      %v859 = vld [vmem:[%s331] sm:$0xf]
      %v861 = vrot.slane %v859, 4
      %862 = vrot.lane.b32.xlu0 %v861, 94
      %v863 = vpop.permute.xlu0 %862
      %865 = vst.msk [vmem:[#allocation2 + $0x28] sm:$0xf0] %vm392, %v863
      %v866 = vld [vmem:[%s657] sm:$0xf]
      %v868 = vrot.slane %v866, 4
      %869 = vrot.lane.b32.xlu0 %v868, 110
      %v870 = vpop.permute.xlu0 %869
      %872 = vst.msk [vmem:[#allocation2 + $0x28] sm:$0xf0] %vm400, %v870
      %v873 = vld [vmem:[%s212] sm:$0xf]
      %874 = vst.msk [vmem:[#allocation2 + $0x30] sm:$0xf] %vm198, %v873
      %v875 = vld [vmem:[%s222] sm:$0xf]
      %877 = vrot.lane.b32.xlu0 %v875, 16
      %v878 = vpop.permute.xlu0 %877
      %880 = vst.msk [vmem:[#allocation2 + $0x30] sm:$0xf] %vm208, %v878
      %v881 = vld [vmem:[%s232] sm:$0xf]
      %883 = vrot.lane.b32.xlu0 %v881, 32
      %v884 = vpop.permute.xlu0 %883
      %886 = vst.msk [vmem:[#allocation2 + $0x30] sm:$0xf] %vm218, %v884
      %v887 = vld [vmem:[%s242] sm:$0xf]
      %889 = vrot.lane.b32.xlu0 %v887, 48
      %v890 = vpop.permute.xlu0 %889
      %892 = vst.msk [vmem:[#allocation2 + $0x30] sm:$0xf] %vm228, %v890
      %v893 = vld [vmem:[%s252] sm:$0xf]
      %895 = vrot.lane.b32.xlu0 %v893, 64
      %v896 = vpop.permute.xlu0 %895
      %898 = vst.msk [vmem:[#allocation2 + $0x30] sm:$0xf] %vm238, %v896
      %v899 = vld [vmem:[%s262] sm:$0xf]
      %901 = vrot.lane.b32.xlu0 %v899, 80
      %v902 = vpop.permute.xlu0 %901
      %904 = vst.msk [vmem:[#allocation2 + $0x30] sm:$0xf] %vm248, %v902
      %v905 = vld [vmem:[%s272] sm:$0xf]
      %907 = vrot.lane.b32.xlu0 %v905, 96
      %v908 = vpop.permute.xlu0 %907
      %910 = vst.msk [vmem:[#allocation2 + $0x30] sm:$0xf] %vm258, %v908
      %v911 = vld [vmem:[%s277] sm:$0xf]
      %913 = vrot.lane.b32.xlu0 %v911, 112
      %v914 = vpop.permute.xlu0 %913
      %916 = vst.msk [vmem:[#allocation2 + $0x30] sm:$0xf] %vm268, %v914
      %v917 = vld [vmem:[%s286] sm:$0xf]
      %918 = vst.msk [vmem:[#allocation2 + $0x38] sm:$0xf] %vm198, %v917
      %v919 = vld [vmem:[%s295] sm:$0xf]
      %921 = vrot.lane.b32.xlu0 %v919, 16
      %v922 = vpop.permute.xlu0 %921
      %924 = vst.msk [vmem:[#allocation2 + $0x38] sm:$0xf] %vm208, %v922
      %v925 = vld [vmem:[%s304] sm:$0xf]
      %927 = vrot.lane.b32.xlu0 %v925, 32
      %v928 = vpop.permute.xlu0 %927
      %930 = vst.msk [vmem:[#allocation2 + $0x38] sm:$0xf] %vm218, %v928
      %v931 = vld [vmem:[%s313] sm:$0xf]
      %933 = vrot.lane.b32.xlu0 %v931, 48
      %v934 = vpop.permute.xlu0 %933
      %936 = vst.msk [vmem:[#allocation2 + $0x38] sm:$0xf] %vm228, %v934
      %v937 = vld [vmem:[%s322] sm:$0xf]
      %939 = vrot.lane.b32.xlu0 %v937, 64
      %v940 = vpop.permute.xlu0 %939
      %942 = vst.msk [vmem:[#allocation2 + $0x38] sm:$0xf] %vm238, %v940
      %v943 = vld [vmem:[%s331] sm:$0xf]
      %945 = vrot.lane.b32.xlu0 %v943, 80
      %v946 = vpop.permute.xlu0 %945
      %948 = vst.msk [vmem:[#allocation2 + $0x38] sm:$0xf] %vm248, %v946
      %v949 = vld [vmem:[%s657] sm:$0xf]
      %951 = vrot.lane.b32.xlu0 %v949, 96
      %v952 = vpop.permute.xlu0 %951
      %954 = vst.msk [vmem:[#allocation2 + $0x38] sm:$0xf] %vm258, %v952
      %s955 = sadd.s32 %s194, 17
      %s956 = smul.u32 %s955, 4
      %s957 = scalar_lea.vmem %s183, %s956
      %v958 = vld [vmem:[%s957] sm:$0xf]
      %960 = vrot.lane.b32.xlu0 %v958, 112
      %v961 = vpop.permute.xlu0 %960
      %963 = vst.msk [vmem:[#allocation2 + $0x38] sm:$0xf] %vm268, %v961
      %v964 = vld [vmem:[%s212] sm:$0xf]
      %v966 = vrot.slane %v964, 4
      %967 = vrot.lane.b32.xlu0 %v966, 127
      %v968 = vpop.permute.xlu0 %967
      %970 = vst.msk [vmem:[#allocation2 + $0x30] sm:$0xf0] %vm344, %v968
      %v971 = vld [vmem:[%s222] sm:$0xf]
      %v973 = vrot.slane %v971, 4
      %974 = vrot.lane.b32.xlu0 %v973, 15
      %v975 = vpop.permute.xlu0 %974
      %977 = vst.msk [vmem:[#allocation2 + $0x30] sm:$0xf0] %vm352, %v975
      %v978 = vld [vmem:[%s232] sm:$0xf]
      %v980 = vrot.slane %v978, 4
      %981 = vrot.lane.b32.xlu0 %v980, 31
      %v982 = vpop.permute.xlu0 %981
      %984 = vst.msk [vmem:[#allocation2 + $0x30] sm:$0xf0] %vm360, %v982
      %v985 = vld [vmem:[%s242] sm:$0xf]
      %v987 = vrot.slane %v985, 4
      %988 = vrot.lane.b32.xlu0 %v987, 47
      %v989 = vpop.permute.xlu0 %988
      %991 = vst.msk [vmem:[#allocation2 + $0x30] sm:$0xf0] %vm368, %v989
      %v992 = vld [vmem:[%s252] sm:$0xf]
      %v994 = vrot.slane %v992, 4
      %995 = vrot.lane.b32.xlu0 %v994, 63
      %v996 = vpop.permute.xlu0 %995
      %998 = vst.msk [vmem:[#allocation2 + $0x30] sm:$0xf0] %vm376, %v996
      %v999 = vld [vmem:[%s262] sm:$0xf]
      %v1001 = vrot.slane %v999, 4
      %1002 = vrot.lane.b32.xlu0 %v1001, 79
      %v1003 = vpop.permute.xlu0 %1002
      %1005 = vst.msk [vmem:[#allocation2 + $0x30] sm:$0xf0] %vm384, %v1003
      %v1006 = vld [vmem:[%s272] sm:$0xf]
      %v1008 = vrot.slane %v1006, 4
      %1009 = vrot.lane.b32.xlu0 %v1008, 95
      %v1010 = vpop.permute.xlu0 %1009
      %1012 = vst.msk [vmem:[#allocation2 + $0x30] sm:$0xf0] %vm392, %v1010
      %v1013 = vld [vmem:[%s277] sm:$0xf]
      %v1015 = vrot.slane %v1013, 4
      %1016 = vrot.lane.b32.xlu0 %v1015, 111
      %v1017 = vpop.permute.xlu0 %1016
      %1019 = vst.msk [vmem:[#allocation2 + $0x30] sm:$0xf0] %vm400, %v1017
      %v1020 = vld [vmem:[%s286] sm:$0xf]
      %v1022 = vrot.slane %v1020, 4
      %1023 = vrot.lane.b32.xlu0 %v1022, 127
      %v1024 = vpop.permute.xlu0 %1023
      %1026 = vst.msk [vmem:[#allocation2 + $0x38] sm:$0xf0] %vm344, %v1024
      %v1027 = vld [vmem:[%s295] sm:$0xf]
      %v1029 = vrot.slane %v1027, 4
      %1030 = vrot.lane.b32.xlu0 %v1029, 15
      %v1031 = vpop.permute.xlu0 %1030
      %1033 = vst.msk [vmem:[#allocation2 + $0x38] sm:$0xf0] %vm352, %v1031
      %v1034 = vld [vmem:[%s304] sm:$0xf]
      %v1036 = vrot.slane %v1034, 4
      %1037 = vrot.lane.b32.xlu0 %v1036, 31
      %v1038 = vpop.permute.xlu0 %1037
      %1040 = vst.msk [vmem:[#allocation2 + $0x38] sm:$0xf0] %vm360, %v1038
      %v1041 = vld [vmem:[%s313] sm:$0xf]
      %v1043 = vrot.slane %v1041, 4
      %1044 = vrot.lane.b32.xlu0 %v1043, 47
      %v1045 = vpop.permute.xlu0 %1044
      %1047 = vst.msk [vmem:[#allocation2 + $0x38] sm:$0xf0] %vm368, %v1045
      %v1048 = vld [vmem:[%s322] sm:$0xf]
      %v1050 = vrot.slane %v1048, 4
      %1051 = vrot.lane.b32.xlu0 %v1050, 63
      %v1052 = vpop.permute.xlu0 %1051
      %1054 = vst.msk [vmem:[#allocation2 + $0x38] sm:$0xf0] %vm376, %v1052
      %v1055 = vld [vmem:[%s331] sm:$0xf]
      %v1057 = vrot.slane %v1055, 4
      %1058 = vrot.lane.b32.xlu0 %v1057, 79
      %v1059 = vpop.permute.xlu0 %1058
      %1061 = vst.msk [vmem:[#allocation2 + $0x38] sm:$0xf0] %vm384, %v1059
      %v1062 = vld [vmem:[%s657] sm:$0xf]
      %v1064 = vrot.slane %v1062, 4
      %1065 = vrot.lane.b32.xlu0 %v1064, 95
      %v1066 = vpop.permute.xlu0 %1065
      %1068 = vst.msk [vmem:[#allocation2 + $0x38] sm:$0xf0] %vm392, %v1066
      %v1069 = vld [vmem:[%s957] sm:$0xf]
      %v1071 = vrot.slane %v1069, 4
      %1072 = vrot.lane.b32.xlu0 %v1071, 111
      %v1073 = vpop.permute.xlu0 %1072
      %1075 = vst.msk [vmem:[#allocation2 + $0x38] sm:$0xf0] %vm400, %v1073
      %v1076 = vld [vmem:[%s212] sm:$0xf]
      %1078 = vrot.lane.b32.xlu0 %v1076, 126
      %v1079 = vpop.permute.xlu0 %1078
      %1081 = vst.msk [vmem:[#allocation2 + $0x40] sm:$0xf] %vm198, %v1079
      %v1082 = vld [vmem:[%s222] sm:$0xf]
      %1084 = vrot.lane.b32.xlu0 %v1082, 14
      %v1085 = vpop.permute.xlu0 %1084
      %1087 = vst.msk [vmem:[#allocation2 + $0x40] sm:$0xf] %vm208, %v1085
      %v1088 = vld [vmem:[%s232] sm:$0xf]
      %1090 = vrot.lane.b32.xlu0 %v1088, 30
      %v1091 = vpop.permute.xlu0 %1090
      %1093 = vst.msk [vmem:[#allocation2 + $0x40] sm:$0xf] %vm218, %v1091
      %v1094 = vld [vmem:[%s242] sm:$0xf]
      %1096 = vrot.lane.b32.xlu0 %v1094, 46
      %v1097 = vpop.permute.xlu0 %1096
      %1099 = vst.msk [vmem:[#allocation2 + $0x40] sm:$0xf] %vm228, %v1097
      %v1100 = vld [vmem:[%s252] sm:$0xf]
      %1102 = vrot.lane.b32.xlu0 %v1100, 62
      %v1103 = vpop.permute.xlu0 %1102
      %1105 = vst.msk [vmem:[#allocation2 + $0x40] sm:$0xf] %vm238, %v1103
      %v1106 = vld [vmem:[%s262] sm:$0xf]
      %1108 = vrot.lane.b32.xlu0 %v1106, 78
      %v1109 = vpop.permute.xlu0 %1108
      %1111 = vst.msk [vmem:[#allocation2 + $0x40] sm:$0xf] %vm248, %v1109
      %v1112 = vld [vmem:[%s272] sm:$0xf]
      %1114 = vrot.lane.b32.xlu0 %v1112, 94
      %v1115 = vpop.permute.xlu0 %1114
      %1117 = vst.msk [vmem:[#allocation2 + $0x40] sm:$0xf] %vm258, %v1115
      %v1118 = vld [vmem:[%s277] sm:$0xf]
      %1120 = vrot.lane.b32.xlu0 %v1118, 110
      %v1121 = vpop.permute.xlu0 %1120
      %1123 = vst.msk [vmem:[#allocation2 + $0x40] sm:$0xf] %vm268, %v1121
      %v1124 = vld [vmem:[%s286] sm:$0xf]
      %1126 = vrot.lane.b32.xlu0 %v1124, 126
      %v1127 = vpop.permute.xlu0 %1126
      %1129 = vst.msk [vmem:[#allocation2 + $0x48] sm:$0xf] %vm198, %v1127
      %v1130 = vld [vmem:[%s295] sm:$0xf]
      %1132 = vrot.lane.b32.xlu0 %v1130, 14
      %v1133 = vpop.permute.xlu0 %1132
      %1135 = vst.msk [vmem:[#allocation2 + $0x48] sm:$0xf] %vm208, %v1133
      %v1136 = vld [vmem:[%s304] sm:$0xf]
      %1138 = vrot.lane.b32.xlu0 %v1136, 30
      %v1139 = vpop.permute.xlu0 %1138
      %1141 = vst.msk [vmem:[#allocation2 + $0x48] sm:$0xf] %vm218, %v1139
      %v1142 = vld [vmem:[%s313] sm:$0xf]
      %1144 = vrot.lane.b32.xlu0 %v1142, 46
      %v1145 = vpop.permute.xlu0 %1144
      %1147 = vst.msk [vmem:[#allocation2 + $0x48] sm:$0xf] %vm228, %v1145
      %v1148 = vld [vmem:[%s322] sm:$0xf]
      %1150 = vrot.lane.b32.xlu0 %v1148, 62
      %v1151 = vpop.permute.xlu0 %1150
      %1153 = vst.msk [vmem:[#allocation2 + $0x48] sm:$0xf] %vm238, %v1151
      %v1154 = vld [vmem:[%s331] sm:$0xf]
      %1156 = vrot.lane.b32.xlu0 %v1154, 78
      %v1157 = vpop.permute.xlu0 %1156
      %1159 = vst.msk [vmem:[#allocation2 + $0x48] sm:$0xf] %vm248, %v1157
      %v1160 = vld [vmem:[%s657] sm:$0xf]
      %1162 = vrot.lane.b32.xlu0 %v1160, 94
      %v1163 = vpop.permute.xlu0 %1162
      %1165 = vst.msk [vmem:[#allocation2 + $0x48] sm:$0xf] %vm258, %v1163
      %v1166 = vld [vmem:[%s957] sm:$0xf]
      %1168 = vrot.lane.b32.xlu0 %v1166, 110
      %v1169 = vpop.permute.xlu0 %1168
      %1171 = vst.msk [vmem:[#allocation2 + $0x48] sm:$0xf] %vm268, %v1169
      %v1172 = vld [vmem:[%s1] sm:$0xff]
      %v1173 = vld [vmem:[#allocation2] sm:$0xff]
      %v1174 = vld [vmem:[#allocation2 + $0x8] sm:$0xff]
      %v1175 = vld [vmem:[#allocation2 + $0x10] sm:$0xff]
      %v1176 = vld [vmem:[#allocation2 + $0x18] sm:$0xff]
      %v1177 = vld [vmem:[#allocation2 + $0x20] sm:$0xff]
      %v1178 = vld [vmem:[#allocation2 + $0x28] sm:$0xff]
      %v1179 = vld [vmem:[#allocation2 + $0x30] sm:$0xff]
      %v1180 = vld [vmem:[#allocation2 + $0x38] sm:$0xff]
      %v1181 = vld [vmem:[#allocation2 + $0x40] sm:$0xf]
      %v1182 = vld [vmem:[#allocation2 + $0x48] sm:$0xf]
      %v1183 = vld [vmem:[%s2] sm:$0xff]
      %1185 = vset.pattern.permute.xlu0 0
      %1186 = vperm.xlu0 %1185, %v1183
      %v1187 = vpop.permute.xlu0 %1186
      %vm1189 = vcmask 293888
      %v1191 = vsel %vm1189, %v1172, 0
      %vm1193 = vcmask 1043456
      %v1195 = vsel %vm1193, %v1181, 0
      %v1198 = vsel %vm1193, %v1182, 0
      %1200 = vmatprep.subr.mxu0 %v1174
      %1201 = vmatpush1.msra.mxu0 %v1173
      %1202 = vmatprep.subr.mxu0 %v1176
      %1203 = vmatpush1.msra.mxu0 %v1175
      %1204 = vmatprep.subr.mxu0 %v1178
      %1205 = vmatpush1.msra.mxu0 %v1177
      %1206 = vmatprep.subr.mxu0 %v1180
      %1207 = vmatpush1.msra.mxu0 %v1179
      %1208 = vmatprep.subr.mxu0 %v1198
      %1209 = vmatpush1.msra.mxu0 %v1195
      %1210 = vmatprep.subr.mxu0 0.0
      %1211 = vmatpush1.msra.mxu0 0.0
      %1212 = vmatprep.subr.mxu0 0.0
      %1213 = vmatpush1.msra.mxu0 0.0
      %1214 = vmatprep.subr.mxu0 0.0
      %1215 = vmatpush1.msra.mxu0 0.0
      %1216 = vmatprep.subr.mxu0 0.0
      %1217 = vmatpush1.msra.mxu0 0.0
      %1218 = vmatprep.subr.mxu0 0.0
      %1219 = vmatpush1.msra.mxu0 0.0
      %1220 = vmatprep.subr.mxu0 0.0
      %1221 = vmatpush1.msra.mxu0 0.0
      %1222 = vmatprep.subr.mxu0 0.0
      %1223 = vmatpush1.msra.mxu0 0.0
      %1224 = vmatprep.subr.mxu0 0.0
      %1225 = vmatpush1.msra.mxu0 0.0
      %1226 = vmatprep.subr.mxu0 0.0
      %1227 = vmatpush1.msra.mxu0 0.0
      %1228 = vmatprep.subr.mxu0 0.0
      %1229 = vmatpush1.msra.mxu0 0.0
      %1230 = vmatprep.subr.mxu0 0.0
      %1231 = vmatpush1.msra.mxu0 0.0
      %1232 = vmatprep.subr.mxu0 0.0
      %1233 = vmatpush1.msra.mxu0 0.0
      %1234 = vmatprep.subr.mxu0 0.0
      %1235 = vmatpush1.msra.mxu0 0.0
      %1236 = vmatprep.subr.mxu0 0.0
      %1237 = vmatpush1.msra.mxu0 0.0
      %1238 = vmatprep.subr.mxu0 0.0
      %1239 = vmatpush1.msra.mxu0 0.0
      %1240 = vmatprep.subr.mxu0 0.0
      %1241 = vmatpush1.msra.mxu0 0.0
      %1242 = vmatprep.subr.mxu0 0.0
      %1243 = vmatpush1.msra.mxu0 0.0
      %1244 = vmatprep.subr.mxu0 0.0
      %1245 = vmatpush1.msra.mxu0 0.0
      %1246 = vmatprep.subr.mxu0 0.0
      %1247 = vmatpush1.msra.mxu0 0.0
      %1248 = vmatprep.subr.mxu0 0.0
      %1249 = vmatpush1.msra.mxu0 0.0
      %1250 = vmatprep.subr.mxu0 0.0
      %1251 = vmatpush1.msra.mxu0 0.0
      %1252 = vmatprep.subr.mxu0 0.0
      %1253 = vmatpush1.msra.mxu0 0.0
      %1254 = vmatprep.subr.mxu0 0.0
      %1255 = vmatpush1.msra.mxu0 0.0
      %1256 = vmatprep.subr.mxu0 0.0
      %1257 = vmatpush1.msra.mxu0 0.0
      %1258 = vmatprep.subr.mxu0 0.0
      %1259 = vmatpush1.msra.mxu0 0.0
      %1260 = vmatprep.subr.mxu0 0.0
      %1261 = vmatpush1.msra.mxu0 0.0
      %1262 = vmatprep.subr.mxu0 0.0
      %1263 = vmatpush1.msra.mxu0 0.0
      %1264 = vmatprep.mubr.f32.mxu0 0.0
      %1265 = vmatmul.mubr.f32.gmra.mrb[0].mxu0 %v1191
      %v1266 = vpop.f32.mrb[0].mxu0
      %v1267 = vadd.f32 %v1187, %v1266
      %v1268 = vpop.f32.mrb[0].mxu0
      %v1269 = vadd.f32 %v1187, %v1268
      %1270 = vdwg.mxu0
      %vm1271 = vcmp.ge.f32.partialorder %v1267, 0.0
      %vm1272 = vcmp.ge.f32.partialorder %v1269, 0.0
      %v1273 = vmul.f32 %v1267, 0.01
      %v1274 = vmul.f32 %v1269, 0.01
      %v1275 = vsel %vm1271, %v1267, %v1273
      %v1276 = vsel %vm1272, %v1269, %v1274
      %1277 = vst [vmem:[%s192] sm:$0xff] %v1275
      %1278 = vst [vmem:[%s192 + $0x8] sm:$0xff] %v1276
      %s1279 = smul.u32 2, %s19
      %p1280 = scmp.lt.s32.totalorder %s18, 1
      %s1281 = scalar_select %p1280, %s18, 1
      %p1282 = scmp.lt.s32.totalorder %s1279, 1
      %s1283 = scalar_select %p1282, %s1279, 1
      %s1284 = smul.addr %s1281, 2
      %s1285 = sadd.s32 %s1283, %s1284
      %s1286 = smul.addr %s1285, 8
      %s1287 = scalar_lea.vmem %s3, %s1286
      // Predicated region
      $region33: #{leaky_relu_conv2d.1} parent=31 // pred_check
        %p1288 = pneg %p114
      $region34: #{leaky_relu_conv2d.1} parent=31 // pred_check_branch
        %1290 = sbr.rel (%p1288) target = $region36
      $region35: #{leaky_relu_conv2d.1} parent=31 // pred_region
        %s1291 = smul.u32 2, %s19
      $region36: #{leaky_relu_conv2d.1} parent=31 // pred_fallthru
        _
    $region32: #{leaky_relu_conv2d.1} parent=5 // pred_fallthru
      _
    %p1292 = scmp.le.s32.totalorder 2, %s9
    // Predicated region
    $region37: #{leaky_relu_conv2d.1} parent=5 // pred_check
      %p1293 = pneg %p1292
    $region38: #{leaky_relu_conv2d.1} parent=5 // pred_check_branch
      %1295 = sbr.rel (%p1293) target = $region40
    $region39: #{leaky_relu_conv2d.1} parent=5 // pred_region
      %s1296 = ssub.s32 %s9, 2
      // Predicated region
      $region41: #{leaky_relu_conv2d.1} parent=39 // pred_check
        %p1297 = pneg %p120
      $region42: #{leaky_relu_conv2d.1} parent=39 // pred_check_branch
        %1299 = sbr.rel (%p1297) target = $region44
      $region43: #{leaky_relu_conv2d.1} parent=39 // pred_region
        %s1300 = smul.u32 2, %s21
        %p1301 = scmp.lt.s32.totalorder %s20, 1
        %s1302 = scalar_select %p1301, %s20, 1
        %p1303 = scmp.lt.s32.totalorder %s1300, 1
        %s1304 = scalar_select %p1303, %s1300, 1
        %s1305 = smul.addr %s1302, 2
        %s1306 = sadd.s32 %s1304, %s1305
        %s1307 = smul.addr %s1306, 8
        %s1308 = scalar_lea.vmem %s3, %s1307
      $region44: #{leaky_relu_conv2d.1} parent=39 // pred_fallthru
        _
    $region40: #{leaky_relu_conv2d.1} parent=5 // pred_fallthru
      _
  $region6: #{leaky_relu_conv2d.1} parent=0 // loop_footer
    %s13 = sadd.s32 1, %s9
  $region7: #{leaky_relu_conv2d.1} parent=0 // loop_footer_branch
    %8 = sbr.rel target = $region3
  $region8: #{leaky_relu_conv2d.1} parent=0 // loop_exit
    _

</llo_original>
